<compile_context>
chip_gen: v5e
topology: v5e:2x2
jax: 0.10.0
libtpu: 0.0.40
codegen_flags: <defaults>
</compile_context>

<pallas_src>
import functools

import jax
import jax.numpy as jnp
from jax.experimental import pallas as pl
from jax.experimental.pallas import tpu as pltpu

LN_EPS = 1e-5


def _layernorm(x, gamma, beta):
    # PyTorch LayerNorm: biased variance over the last dim, eps inside the sqrt.
    mu = jnp.mean(x, axis=-1, keepdims=True)
    var = jnp.mean((x - mu) ** 2, axis=-1, keepdims=True)
    return (x - mu) * jax.lax.rsqrt(var + LN_EPS) * gamma + beta


def surrogate_kernel(
    z_ref,                          # (TILE_B, D) activation tile
    wp_ref, bp_ref,                 # input_proj:            (D, D), (1, D)
    wvo_ref, bvo_ref,               # folded attn (Wv@Wo):   (NB, D, D), (NB, 1, D)
    g1_ref, be1_ref,                # per-block ln1:         (NB, 1, D) x2
    w1_ref, b1_ref,                 # per-block ff linear1:  (NB, D, F), (NB, 1, F)
    w2_ref, b2_ref,                 # per-block ff linear2:  (NB, F, D), (NB, 1, D)
    g2_ref, be2_ref,                # per-block ln2:         (NB, 1, D) x2
    wh_ref, bh_ref,                 # output_head:           (D, 1), (1, 1)
    out_ref,                        # (TILE_B, 1)
):
    f32 = jnp.float32

    # input projection
    x = jnp.dot(z_ref[...], wp_ref[...], preferred_element_type=f32) + bp_ref[...]

    n_blocks = wvo_ref.shape[0]
    for blk in range(n_blocks):  # static unroll; NB is tiny (2)
        # Hoist per-block parameter loads (single load each, reused below).
        wvo = wvo_ref[blk]
        bvo = bvo_ref[blk]
        g1 = g1_ref[blk]
        be1 = be1_ref[blk]
        w1 = w1_ref[blk]
        b1 = b1_ref[blk]
        w2 = w2_ref[blk]
        b2 = b2_ref[blk]
        g2 = g2_ref[blk]
        be2 = be2_ref[blk]

        # --- self-attention (seq_len == 1), folded into a single linear ---
        att = jnp.dot(x, wvo, preferred_element_type=f32) + bvo
        x = _layernorm(x + att, g1, be1)

        # --- feed-forward: Linear -> ReLU -> Linear ---
        h = jnp.maximum(jnp.dot(x, w1, preferred_element_type=f32) + b1, 0.0)
        ff = jnp.dot(h, w2, preferred_element_type=f32) + b2
        x = _layernorm(x + ff, g2, be2)

    # output head (last-dim-1 store; tiny compared to the block compute)
    out_ref[...] = jnp.dot(x, wh_ref[...], preferred_element_type=f32) + bh_ref[...]


@functools.partial(jax.jit, static_argnames=("tile_b",))
def baseline_surrogate_forward(z, params, *, tile_b=128):
    """Run the full BaselineSurrogate forward as one batch-tiled Pallas kernel."""
    B, D = z.shape
    NB = params["wv"].shape[0]
    F = params["w1"].shape[-1]

    # Host-side attention fold: Wvo = Wv @ Wo ; bvo = bv @ Wo + bo.
    wvo = jnp.einsum("nij,njk->nik", params["wv"], params["wo"])
    bvo = jnp.einsum("nij,njk->nik", params["bv"], params["wo"]) + params["bo"]

    # Batch tiling: stream TILE_B-row activation tiles, keep weights resident.
    if B >= tile_b:
        tb = tile_b
        b_pad = tb * pl.cdiv(B, tb)
    else:
        tb = B            # full-array block (allowed even if B % 8 != 0)
        b_pad = B
    zp = z if b_pad == B else jnp.pad(z, ((0, b_pad - B), (0, 0)))
    grid = (b_pad // tb,)

    const2 = lambda i: (0, 0)
    const3 = lambda i: (0, 0, 0)
    in_specs = [
        pl.BlockSpec((tb, D), lambda i: (i, 0)),        # z tile (pipelined)
        pl.BlockSpec((D, D), const2),                   # wp   (resident)
        pl.BlockSpec((1, D), const2),                   # bp
        pl.BlockSpec((NB, D, D), const3),               # wvo
        pl.BlockSpec((NB, 1, D), const3),               # bvo
        pl.BlockSpec((NB, 1, D), const3),               # g1
        pl.BlockSpec((NB, 1, D), const3),               # be1
        pl.BlockSpec((NB, D, F), const3),               # w1
        pl.BlockSpec((NB, 1, F), const3),               # b1
        pl.BlockSpec((NB, F, D), const3),               # w2
        pl.BlockSpec((NB, 1, D), const3),               # b2
        pl.BlockSpec((NB, 1, D), const3),               # g2
        pl.BlockSpec((NB, 1, D), const3),               # be2
        pl.BlockSpec((D, 1), const2),                   # wh
        pl.BlockSpec((1, 1), const2),                   # bh
    ]
    out_spec = pl.BlockSpec((tb, 1), lambda i: (i, 0))

    out = pl.pallas_call(
        surrogate_kernel,
        out_shape=jax.ShapeDtypeStruct((b_pad, 1), jnp.float32),
        grid_spec=pltpu.PrefetchScalarGridSpec(
            num_scalar_prefetch=0,
            grid=grid,
            in_specs=in_specs,
            out_specs=out_spec,
        ),
        compiler_params=pltpu.CompilerParams(
            # Independent batch tiles: lets v7x split the grid over its 2 TCs.
            dimension_semantics=("parallel",),
        ),
    )(
        zp,
        params["wp"], params["bp"],
        wvo, bvo,
        params["g1"], params["be1"],
        params["w1"], params["b1"],
        params["w2"], params["b2"],
        params["g2"], params["be2"],
        params["wh"], params["bh"],
    )
    return out[:B]


def init_params(key, latent_dim, n_blocks, d_ff):
    """Deterministic synthetic parameter init (shapes match the nn.Module)."""
    D, F, NB = latent_dim, d_ff, n_blocks
    ks = jax.random.split(key, 16)
    s = 0.05
    return {
        "wp": s * jax.random.normal(ks[0], (D, D), jnp.float32),
        "bp": s * jax.random.normal(ks[1], (1, D), jnp.float32),
        "wv": s * jax.random.normal(ks[2], (NB, D, D), jnp.float32),
        "bv": s * jax.random.normal(ks[3], (NB, 1, D), jnp.float32),
        "wo": s * jax.random.normal(ks[4], (NB, D, D), jnp.float32),
        "bo": s * jax.random.normal(ks[5], (NB, 1, D), jnp.float32),
        "g1": jnp.ones((NB, 1, D), jnp.float32)
              + s * jax.random.normal(ks[6], (NB, 1, D), jnp.float32),
        "be1": s * jax.random.normal(ks[7], (NB, 1, D), jnp.float32),
        "w1": s * jax.random.normal(ks[8], (NB, D, F), jnp.float32),
        "b1": s * jax.random.normal(ks[9], (NB, 1, F), jnp.float32),
        "w2": s * jax.random.normal(ks[10], (NB, F, D), jnp.float32),
        "b2": s * jax.random.normal(ks[11], (NB, 1, D), jnp.float32),
        "g2": jnp.ones((NB, 1, D), jnp.float32)
              + s * jax.random.normal(ks[12], (NB, 1, D), jnp.float32),
        "be2": s * jax.random.normal(ks[13], (NB, 1, D), jnp.float32),
        "wh": s * jax.random.normal(ks[14], (D, 1), jnp.float32),
        "bh": s * jax.random.normal(ks[15], (1, 1), jnp.float32),
    }


def reference_forward(z, p):
    """Pure-JAX reference mirroring the PyTorch forward (eval mode), unfolded."""
    x = z @ p["wp"] + p["bp"]
    nb = p["wv"].shape[0]
    for i in range(nb):
        v = x @ p["wv"][i] + p["bv"][i]
        att = v @ p["wo"][i] + p["bo"][i]
        x = _layernorm(x + att, p["g1"][i], p["be1"][i])
        h = jnp.maximum(x @ p["w1"][i] + p["b1"][i], 0.0)
        ff = h @ p["w2"][i] + p["b2"][i]
        x = _layernorm(x + ff, p["g2"][i], p["be2"][i])
    return x @ p["wh"] + p["bh"]


if __name__ == "__main__":
    # Module-consistent shapes: latent_dim=32, n_blocks=2, d_ff=64.
    # (heads=4 would be used by nn.MultiheadAttention, but with seq_len==1 the
    #  head split has no effect on the output, so it does not appear here.)
    LATENT_DIM, N_BLOCKS, D_FF = 32, 2, 64

    key = jax.random.PRNGKey(0)
    k_z, k_p = jax.random.split(key)
    params = init_params(k_p, LATENT_DIM, N_BLOCKS, D_FF)

    # Amortized-batch path: 256 rows -> grid of two 128-row tiles ("parallel").
    z_big = jax.random.normal(k_z, (256, LATENT_DIM), jnp.float32)
    out_big = jax.block_until_ready(baseline_surrogate_forward(z_big, params))
    ref_big = reference_forward(z_big, params)
    assert out_big.shape == (256, 1), out_big.shape
    assert jnp.allclose(out_big, ref_big, atol=1e-5, rtol=1e-5)

    # Tiny-batch path (B=2): single full-array tile, same kernel.
    z_small = z_big[:2]
    out_small = jax.block_until_ready(baseline_surrogate_forward(z_small, params))
    ref_small = reference_forward(z_small, params)
    assert out_small.shape == (2, 1), out_small.shape
    assert jnp.allclose(out_small, ref_small, atol=1e-5, rtol=1e-5)

    print("KERNEL_OK")
</pallas_src>

<mosaic_0001>
module attributes {stable_mosaic.version = 11 : i64} {
  func.func @surrogate_kernel(%arg0: i32, %arg1: memref<128x32xf32, #tpu.memory_space<vmem>>, %arg2: memref<32x32xf32, #tpu.memory_space<vmem>>, %arg3: memref<1x32xf32, #tpu.memory_space<vmem>>, %arg4: memref<2x32x32xf32, #tpu.memory_space<vmem>>, %arg5: memref<2x1x32xf32, #tpu.memory_space<vmem>>, %arg6: memref<2x1x32xf32, #tpu.memory_space<vmem>>, %arg7: memref<2x1x32xf32, #tpu.memory_space<vmem>>, %arg8: memref<2x32x64xf32, #tpu.memory_space<vmem>>, %arg9: memref<2x1x64xf32, #tpu.memory_space<vmem>>, %arg10: memref<2x64x32xf32, #tpu.memory_space<vmem>>, %arg11: memref<2x1x32xf32, #tpu.memory_space<vmem>>, %arg12: memref<2x1x32xf32, #tpu.memory_space<vmem>>, %arg13: memref<2x1x32xf32, #tpu.memory_space<vmem>>, %arg14: memref<32x1xf32, #tpu.memory_space<vmem>>, %arg15: memref<1x1xf32, #tpu.memory_space<vmem>>, %arg16: memref<128x1xf32, #tpu.memory_space<vmem>>) attributes {dimension_semantics = [#tpu.dimension_semantics<parallel>], iteration_bounds = array<i64: 2>, scalar_prefetch = 0 : i64, scratch_operands = 0 : i64, tpu.core_type = #tpu.core_type<tc>, window_params = [{transform_indices = @transform_0, window_bounds = array<i64: 128, 32>}, {pipeline_mode = #tpu.pipeline_mode<synchronous>, transform_indices = @transform_1, window_bounds = array<i64: 32, 32>}, {pipeline_mode = #tpu.pipeline_mode<synchronous>, transform_indices = @transform_2, window_bounds = array<i64: 1, 32>}, {pipeline_mode = #tpu.pipeline_mode<synchronous>, transform_indices = @transform_3, window_bounds = array<i64: 2, 32, 32>}, {pipeline_mode = #tpu.pipeline_mode<synchronous>, transform_indices = @transform_4, window_bounds = array<i64: 2, 1, 32>}, {pipeline_mode = #tpu.pipeline_mode<synchronous>, transform_indices = @transform_5, window_bounds = array<i64: 2, 1, 32>}, {pipeline_mode = #tpu.pipeline_mode<synchronous>, transform_indices = @transform_6, window_bounds = array<i64: 2, 1, 32>}, {pipeline_mode = #tpu.pipeline_mode<synchronous>, transform_indices = @transform_7, window_bounds = array<i64: 2, 32, 64>}, {pipeline_mode = #tpu.pipeline_mode<synchronous>, transform_indices = @transform_8, window_bounds = array<i64: 2, 1, 64>}, {pipeline_mode = #tpu.pipeline_mode<synchronous>, transform_indices = @transform_9, window_bounds = array<i64: 2, 64, 32>}, {pipeline_mode = #tpu.pipeline_mode<synchronous>, transform_indices = @transform_10, window_bounds = array<i64: 2, 1, 32>}, {pipeline_mode = #tpu.pipeline_mode<synchronous>, transform_indices = @transform_11, window_bounds = array<i64: 2, 1, 32>}, {pipeline_mode = #tpu.pipeline_mode<synchronous>, transform_indices = @transform_12, window_bounds = array<i64: 2, 1, 32>}, {pipeline_mode = #tpu.pipeline_mode<synchronous>, transform_indices = @transform_13, window_bounds = array<i64: 32, 1>}, {pipeline_mode = #tpu.pipeline_mode<synchronous>, transform_indices = @transform_14, window_bounds = array<i64: 1, 1>}, {transform_indices = @transform_15, window_bounds = array<i64: 128, 1>}]} {
    %c0 = arith.constant 0 : index
    %c0_0 = arith.constant 0 : index
    %0 = vector.load %arg1[%c0, %c0_0] : memref<128x32xf32, #tpu.memory_space<vmem>>, vector<128x32xf32>
    %c0_1 = arith.constant 0 : index
    %c0_2 = arith.constant 0 : index
    %1 = vector.load %arg2[%c0_1, %c0_2] : memref<32x32xf32, #tpu.memory_space<vmem>>, vector<32x32xf32>
    %cst = arith.constant dense<0.000000e+00> : vector<128x32xf32>
    %2 = tpu.matmul %0, %1, %cst {dimension_numbers = #tpu.dot_dimension_numbers<[1], [0], [0], [1], [0, 0, 1, 1], [], []>} : vector<128x32xf32>, vector<32x32xf32>, vector<128x32xf32> -> vector<128x32xf32>
    %c0_3 = arith.constant 0 : index
    %c0_4 = arith.constant 0 : index
    %3 = vector.load %arg3[%c0_3, %c0_4] : memref<1x32xf32, #tpu.memory_space<vmem>>, vector<1x32xf32>
    %4 = vector.broadcast %3 : vector<1x32xf32> to vector<128x32xf32>
    %5 = arith.addf %2, %4 : vector<128x32xf32>
    %c0_5 = arith.constant 0 : index
    %c0_6 = arith.constant 0 : index
    %c0_7 = arith.constant 0 : index
    %6 = vector.load %arg4[%c0_5, %c0_6, %c0_7] : memref<2x32x32xf32, #tpu.memory_space<vmem>>, vector<1x32x32xf32>
    %7 = vector.shape_cast %6 : vector<1x32x32xf32> to vector<32x32xf32>
    %c0_8 = arith.constant 0 : index
    %c0_9 = arith.constant 0 : index
    %c0_10 = arith.constant 0 : index
    %8 = vector.load %arg5[%c0_8, %c0_9, %c0_10] : memref<2x1x32xf32, #tpu.memory_space<vmem>>, vector<1x1x32xf32>
    %9 = vector.shape_cast %8 : vector<1x1x32xf32> to vector<1x32xf32>
    %c0_11 = arith.constant 0 : index
    %c0_12 = arith.constant 0 : index
    %c0_13 = arith.constant 0 : index
    %10 = vector.load %arg6[%c0_11, %c0_12, %c0_13] : memref<2x1x32xf32, #tpu.memory_space<vmem>>, vector<1x1x32xf32>
    %11 = vector.shape_cast %10 : vector<1x1x32xf32> to vector<1x32xf32>
    %c0_14 = arith.constant 0 : index
    %c0_15 = arith.constant 0 : index
    %c0_16 = arith.constant 0 : index
    %12 = vector.load %arg7[%c0_14, %c0_15, %c0_16] : memref<2x1x32xf32, #tpu.memory_space<vmem>>, vector<1x1x32xf32>
    %13 = vector.shape_cast %12 : vector<1x1x32xf32> to vector<1x32xf32>
    %c0_17 = arith.constant 0 : index
    %c0_18 = arith.constant 0 : index
    %c0_19 = arith.constant 0 : index
    %14 = vector.load %arg8[%c0_17, %c0_18, %c0_19] : memref<2x32x64xf32, #tpu.memory_space<vmem>>, vector<1x32x64xf32>
    %15 = vector.shape_cast %14 : vector<1x32x64xf32> to vector<32x64xf32>
    %c0_20 = arith.constant 0 : index
    %c0_21 = arith.constant 0 : index
    %c0_22 = arith.constant 0 : index
    %16 = vector.load %arg9[%c0_20, %c0_21, %c0_22] : memref<2x1x64xf32, #tpu.memory_space<vmem>>, vector<1x1x64xf32>
    %17 = vector.shape_cast %16 : vector<1x1x64xf32> to vector<1x64xf32>
    %c0_23 = arith.constant 0 : index
    %c0_24 = arith.constant 0 : index
    %c0_25 = arith.constant 0 : index
    %18 = vector.load %arg10[%c0_23, %c0_24, %c0_25] : memref<2x64x32xf32, #tpu.memory_space<vmem>>, vector<1x64x32xf32>
    %19 = vector.shape_cast %18 : vector<1x64x32xf32> to vector<64x32xf32>
    %c0_26 = arith.constant 0 : index
    %c0_27 = arith.constant 0 : index
    %c0_28 = arith.constant 0 : index
    %20 = vector.load %arg11[%c0_26, %c0_27, %c0_28] : memref<2x1x32xf32, #tpu.memory_space<vmem>>, vector<1x1x32xf32>
    %21 = vector.shape_cast %20 : vector<1x1x32xf32> to vector<1x32xf32>
    %c0_29 = arith.constant 0 : index
    %c0_30 = arith.constant 0 : index
    %c0_31 = arith.constant 0 : index
    %22 = vector.load %arg12[%c0_29, %c0_30, %c0_31] : memref<2x1x32xf32, #tpu.memory_space<vmem>>, vector<1x1x32xf32>
    %23 = vector.shape_cast %22 : vector<1x1x32xf32> to vector<1x32xf32>
    %c0_32 = arith.constant 0 : index
    %c0_33 = arith.constant 0 : index
    %c0_34 = arith.constant 0 : index
    %24 = vector.load %arg13[%c0_32, %c0_33, %c0_34] : memref<2x1x32xf32, #tpu.memory_space<vmem>>, vector<1x1x32xf32>
    %25 = vector.shape_cast %24 : vector<1x1x32xf32> to vector<1x32xf32>
    %cst_35 = arith.constant dense<0.000000e+00> : vector<128x32xf32>
    %26 = tpu.matmul %5, %7, %cst_35 {dimension_numbers = #tpu.dot_dimension_numbers<[1], [0], [0], [1], [0, 0, 1, 1], [], []>} : vector<128x32xf32>, vector<32x32xf32>, vector<128x32xf32> -> vector<128x32xf32>
    %27 = vector.broadcast %9 : vector<1x32xf32> to vector<128x32xf32>
    %28 = arith.addf %26, %27 : vector<128x32xf32>
    %29 = arith.addf %5, %28 : vector<128x32xf32>
    %cst_36 = arith.constant dense<0.000000e+00> : vector<128xf32>
    %30 = vector.multi_reduction <add>, %29, %cst_36 [1] : vector<128x32xf32> to vector<128xf32>
    %31 = vector.shape_cast %30 : vector<128xf32> to vector<128x1xf32>
    %cst_37 = arith.constant 3.200000e+01 : f32
    %32 = vector.broadcast %cst_37 : f32 to vector<128x1xf32>
    %33 = arith.divf %31, %32 : vector<128x1xf32>
    %34 = vector.broadcast %33 : vector<128x1xf32> to vector<128x32xf32>
    %35 = arith.subf %29, %34 : vector<128x32xf32>
    %36 = arith.mulf %35, %35 : vector<128x32xf32>
    %cst_38 = arith.constant dense<0.000000e+00> : vector<128xf32>
    %37 = vector.multi_reduction <add>, %36, %cst_38 [1] : vector<128x32xf32> to vector<128xf32>
    %38 = vector.shape_cast %37 : vector<128xf32> to vector<128x1xf32>
    %cst_39 = arith.constant 3.200000e+01 : f32
    %39 = vector.broadcast %cst_39 : f32 to vector<128x1xf32>
    %40 = arith.divf %38, %39 : vector<128x1xf32>
    %41 = vector.broadcast %33 : vector<128x1xf32> to vector<128x32xf32>
    %42 = arith.subf %29, %41 : vector<128x32xf32>
    %cst_40 = arith.constant 9.99999974E-6 : f32
    %43 = vector.broadcast %cst_40 : f32 to vector<128x1xf32>
    %44 = arith.addf %40, %43 : vector<128x1xf32>
    %45 = math.rsqrt %44 : vector<128x1xf32>
    %46 = vector.broadcast %45 : vector<128x1xf32> to vector<128x32xf32>
    %47 = arith.mulf %42, %46 : vector<128x32xf32>
    %48 = vector.broadcast %11 : vector<1x32xf32> to vector<128x32xf32>
    %49 = arith.mulf %47, %48 : vector<128x32xf32>
    %50 = vector.broadcast %13 : vector<1x32xf32> to vector<128x32xf32>
    %51 = arith.addf %49, %50 : vector<128x32xf32>
    %cst_41 = arith.constant dense<0.000000e+00> : vector<128x64xf32>
    %52 = tpu.matmul %51, %15, %cst_41 {dimension_numbers = #tpu.dot_dimension_numbers<[1], [0], [0], [1], [0, 0, 1, 1], [], []>} : vector<128x32xf32>, vector<32x64xf32>, vector<128x64xf32> -> vector<128x64xf32>
    %53 = vector.broadcast %17 : vector<1x64xf32> to vector<128x64xf32>
    %54 = arith.addf %52, %53 : vector<128x64xf32>
    %cst_42 = arith.constant 0.000000e+00 : f32
    %55 = vector.broadcast %cst_42 : f32 to vector<128x64xf32>
    %56 = arith.maximumf %54, %55 : vector<128x64xf32>
    %cst_43 = arith.constant dense<0.000000e+00> : vector<128x32xf32>
    %57 = tpu.matmul %56, %19, %cst_43 {dimension_numbers = #tpu.dot_dimension_numbers<[1], [0], [0], [1], [0, 0, 1, 1], [], []>} : vector<128x64xf32>, vector<64x32xf32>, vector<128x32xf32> -> vector<128x32xf32>
    %58 = vector.broadcast %21 : vector<1x32xf32> to vector<128x32xf32>
    %59 = arith.addf %57, %58 : vector<128x32xf32>
    %60 = arith.addf %51, %59 : vector<128x32xf32>
    %cst_44 = arith.constant dense<0.000000e+00> : vector<128xf32>
    %61 = vector.multi_reduction <add>, %60, %cst_44 [1] : vector<128x32xf32> to vector<128xf32>
    %62 = vector.shape_cast %61 : vector<128xf32> to vector<128x1xf32>
    %cst_45 = arith.constant 3.200000e+01 : f32
    %63 = vector.broadcast %cst_45 : f32 to vector<128x1xf32>
    %64 = arith.divf %62, %63 : vector<128x1xf32>
    %65 = vector.broadcast %64 : vector<128x1xf32> to vector<128x32xf32>
    %66 = arith.subf %60, %65 : vector<128x32xf32>
    %67 = arith.mulf %66, %66 : vector<128x32xf32>
    %cst_46 = arith.constant dense<0.000000e+00> : vector<128xf32>
    %68 = vector.multi_reduction <add>, %67, %cst_46 [1] : vector<128x32xf32> to vector<128xf32>
    %69 = vector.shape_cast %68 : vector<128xf32> to vector<128x1xf32>
    %cst_47 = arith.constant 3.200000e+01 : f32
    %70 = vector.broadcast %cst_47 : f32 to vector<128x1xf32>
    %71 = arith.divf %69, %70 : vector<128x1xf32>
    %72 = vector.broadcast %64 : vector<128x1xf32> to vector<128x32xf32>
    %73 = arith.subf %60, %72 : vector<128x32xf32>
    %cst_48 = arith.constant 9.99999974E-6 : f32
    %74 = vector.broadcast %cst_48 : f32 to vector<128x1xf32>
    %75 = arith.addf %71, %74 : vector<128x1xf32>
    %76 = math.rsqrt %75 : vector<128x1xf32>
    %77 = vector.broadcast %76 : vector<128x1xf32> to vector<128x32xf32>
    %78 = arith.mulf %73, %77 : vector<128x32xf32>
    %79 = vector.broadcast %23 : vector<1x32xf32> to vector<128x32xf32>
    %80 = arith.mulf %78, %79 : vector<128x32xf32>
    %81 = vector.broadcast %25 : vector<1x32xf32> to vector<128x32xf32>
    %82 = arith.addf %80, %81 : vector<128x32xf32>
    %c1 = arith.constant 1 : index
    %c0_49 = arith.constant 0 : index
    %c0_50 = arith.constant 0 : index
    %83 = vector.load %arg4[%c1, %c0_49, %c0_50] : memref<2x32x32xf32, #tpu.memory_space<vmem>>, vector<1x32x32xf32>
    %84 = vector.shape_cast %83 : vector<1x32x32xf32> to vector<32x32xf32>
    %c1_51 = arith.constant 1 : index
    %c0_52 = arith.constant 0 : index
    %c0_53 = arith.constant 0 : index
    %85 = vector.load %arg5[%c1_51, %c0_52, %c0_53] : memref<2x1x32xf32, #tpu.memory_space<vmem>>, vector<1x1x32xf32>
    %86 = vector.shape_cast %85 : vector<1x1x32xf32> to vector<1x32xf32>
    %c1_54 = arith.constant 1 : index
    %c0_55 = arith.constant 0 : index
    %c0_56 = arith.constant 0 : index
    %87 = vector.load %arg6[%c1_54, %c0_55, %c0_56] : memref<2x1x32xf32, #tpu.memory_space<vmem>>, vector<1x1x32xf32>
    %88 = vector.shape_cast %87 : vector<1x1x32xf32> to vector<1x32xf32>
    %c1_57 = arith.constant 1 : index
    %c0_58 = arith.constant 0 : index
    %c0_59 = arith.constant 0 : index
    %89 = vector.load %arg7[%c1_57, %c0_58, %c0_59] : memref<2x1x32xf32, #tpu.memory_space<vmem>>, vector<1x1x32xf32>
    %90 = vector.shape_cast %89 : vector<1x1x32xf32> to vector<1x32xf32>
    %c1_60 = arith.constant 1 : index
    %c0_61 = arith.constant 0 : index
    %c0_62 = arith.constant 0 : index
    %91 = vector.load %arg8[%c1_60, %c0_61, %c0_62] : memref<2x32x64xf32, #tpu.memory_space<vmem>>, vector<1x32x64xf32>
    %92 = vector.shape_cast %91 : vector<1x32x64xf32> to vector<32x64xf32>
    %c1_63 = arith.constant 1 : index
    %c0_64 = arith.constant 0 : index
    %c0_65 = arith.constant 0 : index
    %93 = vector.load %arg9[%c1_63, %c0_64, %c0_65] : memref<2x1x64xf32, #tpu.memory_space<vmem>>, vector<1x1x64xf32>
    %94 = vector.shape_cast %93 : vector<1x1x64xf32> to vector<1x64xf32>
    %c1_66 = arith.constant 1 : index
    %c0_67 = arith.constant 0 : index
    %c0_68 = arith.constant 0 : index
    %95 = vector.load %arg10[%c1_66, %c0_67, %c0_68] : memref<2x64x32xf32, #tpu.memory_space<vmem>>, vector<1x64x32xf32>
    %96 = vector.shape_cast %95 : vector<1x64x32xf32> to vector<64x32xf32>
    %c1_69 = arith.constant 1 : index
    %c0_70 = arith.constant 0 : index
    %c0_71 = arith.constant 0 : index
    %97 = vector.load %arg11[%c1_69, %c0_70, %c0_71] : memref<2x1x32xf32, #tpu.memory_space<vmem>>, vector<1x1x32xf32>
    %98 = vector.shape_cast %97 : vector<1x1x32xf32> to vector<1x32xf32>
    %c1_72 = arith.constant 1 : index
    %c0_73 = arith.constant 0 : index
    %c0_74 = arith.constant 0 : index
    %99 = vector.load %arg12[%c1_72, %c0_73, %c0_74] : memref<2x1x32xf32, #tpu.memory_space<vmem>>, vector<1x1x32xf32>
    %100 = vector.shape_cast %99 : vector<1x1x32xf32> to vector<1x32xf32>
    %c1_75 = arith.constant 1 : index
    %c0_76 = arith.constant 0 : index
    %c0_77 = arith.constant 0 : index
    %101 = vector.load %arg13[%c1_75, %c0_76, %c0_77] : memref<2x1x32xf32, #tpu.memory_space<vmem>>, vector<1x1x32xf32>
    %102 = vector.shape_cast %101 : vector<1x1x32xf32> to vector<1x32xf32>
    %cst_78 = arith.constant dense<0.000000e+00> : vector<128x32xf32>
    %103 = tpu.matmul %82, %84, %cst_78 {dimension_numbers = #tpu.dot_dimension_numbers<[1], [0], [0], [1], [0, 0, 1, 1], [], []>} : vector<128x32xf32>, vector<32x32xf32>, vector<128x32xf32> -> vector<128x32xf32>
    %104 = vector.broadcast %86 : vector<1x32xf32> to vector<128x32xf32>
    %105 = arith.addf %103, %104 : vector<128x32xf32>
    %106 = arith.addf %82, %105 : vector<128x32xf32>
    %cst_79 = arith.constant dense<0.000000e+00> : vector<128xf32>
    %107 = vector.multi_reduction <add>, %106, %cst_79 [1] : vector<128x32xf32> to vector<128xf32>
    %108 = vector.shape_cast %107 : vector<128xf32> to vector<128x1xf32>
    %cst_80 = arith.constant 3.200000e+01 : f32
    %109 = vector.broadcast %cst_80 : f32 to vector<128x1xf32>
    %110 = arith.divf %108, %109 : vector<128x1xf32>
    %111 = vector.broadcast %110 : vector<128x1xf32> to vector<128x32xf32>
    %112 = arith.subf %106, %111 : vector<128x32xf32>
    %113 = arith.mulf %112, %112 : vector<128x32xf32>
    %cst_81 = arith.constant dense<0.000000e+00> : vector<128xf32>
    %114 = vector.multi_reduction <add>, %113, %cst_81 [1] : vector<128x32xf32> to vector<128xf32>
    %115 = vector.shape_cast %114 : vector<128xf32> to vector<128x1xf32>
    %cst_82 = arith.constant 3.200000e+01 : f32
    %116 = vector.broadcast %cst_82 : f32 to vector<128x1xf32>
    %117 = arith.divf %115, %116 : vector<128x1xf32>
    %118 = vector.broadcast %110 : vector<128x1xf32> to vector<128x32xf32>
    %119 = arith.subf %106, %118 : vector<128x32xf32>
    %cst_83 = arith.constant 9.99999974E-6 : f32
    %120 = vector.broadcast %cst_83 : f32 to vector<128x1xf32>
    %121 = arith.addf %117, %120 : vector<128x1xf32>
    %122 = math.rsqrt %121 : vector<128x1xf32>
    %123 = vector.broadcast %122 : vector<128x1xf32> to vector<128x32xf32>
    %124 = arith.mulf %119, %123 : vector<128x32xf32>
    %125 = vector.broadcast %88 : vector<1x32xf32> to vector<128x32xf32>
    %126 = arith.mulf %124, %125 : vector<128x32xf32>
    %127 = vector.broadcast %90 : vector<1x32xf32> to vector<128x32xf32>
    %128 = arith.addf %126, %127 : vector<128x32xf32>
    %cst_84 = arith.constant dense<0.000000e+00> : vector<128x64xf32>
    %129 = tpu.matmul %128, %92, %cst_84 {dimension_numbers = #tpu.dot_dimension_numbers<[1], [0], [0], [1], [0, 0, 1, 1], [], []>} : vector<128x32xf32>, vector<32x64xf32>, vector<128x64xf32> -> vector<128x64xf32>
    %130 = vector.broadcast %94 : vector<1x64xf32> to vector<128x64xf32>
    %131 = arith.addf %129, %130 : vector<128x64xf32>
    %cst_85 = arith.constant 0.000000e+00 : f32
    %132 = vector.broadcast %cst_85 : f32 to vector<128x64xf32>
    %133 = arith.maximumf %131, %132 : vector<128x64xf32>
    %cst_86 = arith.constant dense<0.000000e+00> : vector<128x32xf32>
    %134 = tpu.matmul %133, %96, %cst_86 {dimension_numbers = #tpu.dot_dimension_numbers<[1], [0], [0], [1], [0, 0, 1, 1], [], []>} : vector<128x64xf32>, vector<64x32xf32>, vector<128x32xf32> -> vector<128x32xf32>
    %135 = vector.broadcast %98 : vector<1x32xf32> to vector<128x32xf32>
    %136 = arith.addf %134, %135 : vector<128x32xf32>
    %137 = arith.addf %128, %136 : vector<128x32xf32>
    %cst_87 = arith.constant dense<0.000000e+00> : vector<128xf32>
    %138 = vector.multi_reduction <add>, %137, %cst_87 [1] : vector<128x32xf32> to vector<128xf32>
    %139 = vector.shape_cast %138 : vector<128xf32> to vector<128x1xf32>
    %cst_88 = arith.constant 3.200000e+01 : f32
    %140 = vector.broadcast %cst_88 : f32 to vector<128x1xf32>
    %141 = arith.divf %139, %140 : vector<128x1xf32>
    %142 = vector.broadcast %141 : vector<128x1xf32> to vector<128x32xf32>
    %143 = arith.subf %137, %142 : vector<128x32xf32>
    %144 = arith.mulf %143, %143 : vector<128x32xf32>
    %cst_89 = arith.constant dense<0.000000e+00> : vector<128xf32>
    %145 = vector.multi_reduction <add>, %144, %cst_89 [1] : vector<128x32xf32> to vector<128xf32>
    %146 = vector.shape_cast %145 : vector<128xf32> to vector<128x1xf32>
    %cst_90 = arith.constant 3.200000e+01 : f32
    %147 = vector.broadcast %cst_90 : f32 to vector<128x1xf32>
    %148 = arith.divf %146, %147 : vector<128x1xf32>
    %149 = vector.broadcast %141 : vector<128x1xf32> to vector<128x32xf32>
    %150 = arith.subf %137, %149 : vector<128x32xf32>
    %cst_91 = arith.constant 9.99999974E-6 : f32
    %151 = vector.broadcast %cst_91 : f32 to vector<128x1xf32>
    %152 = arith.addf %148, %151 : vector<128x1xf32>
    %153 = math.rsqrt %152 : vector<128x1xf32>
    %154 = vector.broadcast %153 : vector<128x1xf32> to vector<128x32xf32>
    %155 = arith.mulf %150, %154 : vector<128x32xf32>
    %156 = vector.broadcast %100 : vector<1x32xf32> to vector<128x32xf32>
    %157 = arith.mulf %155, %156 : vector<128x32xf32>
    %158 = vector.broadcast %102 : vector<1x32xf32> to vector<128x32xf32>
    %159 = arith.addf %157, %158 : vector<128x32xf32>
    %c0_92 = arith.constant 0 : index
    %c0_93 = arith.constant 0 : index
    %160 = vector.load %arg14[%c0_92, %c0_93] : memref<32x1xf32, #tpu.memory_space<vmem>>, vector<32x1xf32>
    %cst_94 = arith.constant dense<0.000000e+00> : vector<128x1xf32>
    %161 = tpu.matmul %159, %160, %cst_94 {dimension_numbers = #tpu.dot_dimension_numbers<[1], [0], [0], [1], [0, 0, 1, 1], [], []>} : vector<128x32xf32>, vector<32x1xf32>, vector<128x1xf32> -> vector<128x1xf32>
    %c0_95 = arith.constant 0 : index
    %c0_96 = arith.constant 0 : index
    %162 = vector.load %arg15[%c0_95, %c0_96] : memref<1x1xf32, #tpu.memory_space<vmem>>, vector<1x1xf32>
    %163 = vector.broadcast %162 : vector<1x1xf32> to vector<128x1xf32>
    %164 = arith.addf %161, %163 : vector<128x1xf32>
    %c0_97 = arith.constant 0 : index
    %c0_98 = arith.constant 0 : index
    %165 = vector.load %arg16[%c0_97, %c0_98] : memref<128x1xf32, #tpu.memory_space<vmem>>, vector<128x1xf32>
    tpu.vector_store %arg16[%c0_97, %c0_98], %164 {strides = array<i32>} : memref<128x1xf32, #tpu.memory_space<vmem>>, vector<128x1xf32>,
    return
  }
  func.func @transform_0(%arg0: i32) -> (i32, i32) {
    %c0_i32 = arith.constant 0 : i32
    %c0_i32_0 = arith.constant 0 : i32
    return %arg0, %c0_i32 : i32, i32
  }
  func.func @transform_1(%arg0: i32) -> (i32, i32) {
    %c0_i32 = arith.constant 0 : i32
    %c0_i32_0 = arith.constant 0 : i32
    %c0_i32_1 = arith.constant 0 : i32
    return %c0_i32, %c0_i32_0 : i32, i32
  }
  func.func @transform_2(%arg0: i32) -> (i32, i32) {
    %c0_i32 = arith.constant 0 : i32
    %c0_i32_0 = arith.constant 0 : i32
    %c0_i32_1 = arith.constant 0 : i32
    return %c0_i32, %c0_i32_0 : i32, i32
  }
  func.func @transform_3(%arg0: i32) -> (i32, i32, i32) {
    %c0_i32 = arith.constant 0 : i32
    %c0_i32_0 = arith.constant 0 : i32
    %c0_i32_1 = arith.constant 0 : i32
    %c0_i32_2 = arith.constant 0 : i32
    return %c0_i32, %c0_i32_0, %c0_i32_1 : i32, i32, i32
  }
  func.func @transform_4(%arg0: i32) -> (i32, i32, i32) {
    %c0_i32 = arith.constant 0 : i32
    %c0_i32_0 = arith.constant 0 : i32
    %c0_i32_1 = arith.constant 0 : i32
    %c0_i32_2 = arith.constant 0 : i32
    return %c0_i32, %c0_i32_0, %c0_i32_1 : i32, i32, i32
  }
  func.func @transform_5(%arg0: i32) -> (i32, i32, i32) {
    %c0_i32 = arith.constant 0 : i32
    %c0_i32_0 = arith.constant 0 : i32
    %c0_i32_1 = arith.constant 0 : i32
    %c0_i32_2 = arith.constant 0 : i32
    return %c0_i32, %c0_i32_0, %c0_i32_1 : i32, i32, i32
  }
  func.func @transform_6(%arg0: i32) -> (i32, i32, i32) {
    %c0_i32 = arith.constant 0 : i32
    %c0_i32_0 = arith.constant 0 : i32
    %c0_i32_1 = arith.constant 0 : i32
    %c0_i32_2 = arith.constant 0 : i32
    return %c0_i32, %c0_i32_0, %c0_i32_1 : i32, i32, i32
  }
  func.func @transform_7(%arg0: i32) -> (i32, i32, i32) {
    %c0_i32 = arith.constant 0 : i32
    %c0_i32_0 = arith.constant 0 : i32
    %c0_i32_1 = arith.constant 0 : i32
    %c0_i32_2 = arith.constant 0 : i32
    return %c0_i32, %c0_i32_0, %c0_i32_1 : i32, i32, i32
  }
  func.func @transform_8(%arg0: i32) -> (i32, i32, i32) {
    %c0_i32 = arith.constant 0 : i32
    %c0_i32_0 = arith.constant 0 : i32
    %c0_i32_1 = arith.constant 0 : i32
    %c0_i32_2 = arith.constant 0 : i32
    return %c0_i32, %c0_i32_0, %c0_i32_1 : i32, i32, i32
  }
  func.func @transform_9(%arg0: i32) -> (i32, i32, i32) {
    %c0_i32 = arith.constant 0 : i32
    %c0_i32_0 = arith.constant 0 : i32
    %c0_i32_1 = arith.constant 0 : i32
    %c0_i32_2 = arith.constant 0 : i32
    return %c0_i32, %c0_i32_0, %c0_i32_1 : i32, i32, i32
  }
  func.func @transform_10(%arg0: i32) -> (i32, i32, i32) {
    %c0_i32 = arith.constant 0 : i32
    %c0_i32_0 = arith.constant 0 : i32
    %c0_i32_1 = arith.constant 0 : i32
    %c0_i32_2 = arith.constant 0 : i32
    return %c0_i32, %c0_i32_0, %c0_i32_1 : i32, i32, i32
  }
  func.func @transform_11(%arg0: i32) -> (i32, i32, i32) {
    %c0_i32 = arith.constant 0 : i32
    %c0_i32_0 = arith.constant 0 : i32
    %c0_i32_1 = arith.constant 0 : i32
    %c0_i32_2 = arith.constant 0 : i32
    return %c0_i32, %c0_i32_0, %c0_i32_1 : i32, i32, i32
  }
  func.func @transform_12(%arg0: i32) -> (i32, i32, i32) {
    %c0_i32 = arith.constant 0 : i32
    %c0_i32_0 = arith.constant 0 : i32
    %c0_i32_1 = arith.constant 0 : i32
    %c0_i32_2 = arith.constant 0 : i32
    return %c0_i32, %c0_i32_0, %c0_i32_1 : i32, i32, i32
  }
  func.func @transform_13(%arg0: i32) -> (i32, i32) {
    %c0_i32 = arith.constant 0 : i32
    %c0_i32_0 = arith.constant 0 : i32
    %c0_i32_1 = arith.constant 0 : i32
    return %c0_i32, %c0_i32_0 : i32, i32
  }
  func.func @transform_14(%arg0: i32) -> (i32, i32) {
    %c0_i32 = arith.constant 0 : i32
    %c0_i32_0 = arith.constant 0 : i32
    %c0_i32_1 = arith.constant 0 : i32
    return %c0_i32, %c0_i32_0 : i32, i32
  }
  func.func @transform_15(%arg0: i32) -> (i32, i32) {
    %c0_i32 = arith.constant 0 : i32
    %c0_i32_0 = arith.constant 0 : i32
    return %arg0, %c0_i32 : i32, i32
  }
}

</mosaic_0001>

<llo_original>
// kernel: baseline_surrogate_forward.1
$region0: #{baseline_surrogate_forward.1}
  #allocation0 [shape = 'u32[]', space=smem, size = 0x4, offset = 0x4, fixed_abs, tag = 'smem constant byte address 0x4 - core index']
  #allocation1 [shape = 'u32[72,128]{1,0:T(1,128)}', space=vmem, size = 0x9000, scoped, tag = 'internal scratch']
  #allocation2 [shape = 'f32[1,1]{1,0:T(1,128)S(1)}', space=vmem, size = 0x200, scoped, tag = 'scoped memory for baseline_surrogate_forward.1']
  %s0 = inlined_call_operand.vmem [shape: f32[256,32], index: 0, kind: input, shape index: {}]
  %s1 = inlined_call_operand.vmem [shape: f32[32,32], index: 1, kind: input, shape index: {}]
  %s2 = inlined_call_operand.vmem [shape: f32[1,32], index: 2, kind: input, shape index: {}]
  %s3 = inlined_call_operand.vmem [shape: f32[2,32,32], index: 3, kind: input, shape index: {}]
  %s4 = inlined_call_operand.vmem [shape: f32[2,1,32], index: 4, kind: input, shape index: {}]
  %s5 = inlined_call_operand.vmem [shape: f32[2,1,32], index: 5, kind: input, shape index: {}]
  %s6 = inlined_call_operand.vmem [shape: f32[2,1,32], index: 6, kind: input, shape index: {}]
  %s7 = inlined_call_operand.vmem [shape: f32[2,32,64], index: 7, kind: input, shape index: {}]
  %s8 = inlined_call_operand.vmem [shape: f32[2,1,64], index: 8, kind: input, shape index: {}]
  %s9 = inlined_call_operand.vmem [shape: f32[2,64,32], index: 9, kind: input, shape index: {}]
  %s10 = inlined_call_operand.vmem [shape: f32[2,1,32], index: 10, kind: input, shape index: {}]
  %s11 = inlined_call_operand.vmem [shape: f32[2,1,32], index: 11, kind: input, shape index: {}]
  %s12 = inlined_call_operand.vmem [shape: f32[2,1,32], index: 12, kind: input, shape index: {}]
  %s13 = inlined_call_operand.vmem [shape: f32[32,1], index: 13, kind: input, shape index: {}]
  %s14 = inlined_call_operand.<no memory space> [shape: f32[1,1], index: 14, kind: input, shape index: {}]
  %s15 = inlined_call_operand.vmem [shape: f32[256,1], index: 15, kind: output, shape index: {}]
  %s16 = sld [smem:[#allocation0]]
  $region93: #{baseline_surrogate_forward.1} parent=0
    _
  %s18 = ssub.s32 1, %s16
  %s19 = scalar_select 0, %s18, %s16
  %v20 = vstv %s14
  %21 = vst [vmem:[#allocation2] sm:$0x1] %v20
  loop: start=0, step=1, limit=4
  $region2: #{baseline_surrogate_forward.1} parent=0 // loop_pre_header
    _
  $region3: #{baseline_surrogate_forward.1} parent=0 // loop_header
    %s23 = sphi 0, %s27
    %p24 = scmp.ge.s32.totalorder %s23, 4
    %s33 = sphi 0, %s35
    %s36 = sphi 0, %s33
    %s37 = sphi 0, %s36
    %s53 = sphi 0, %s37
    %s57 = sphi 0, %s57
    %s59 = sphi 0, %s57
    %s60 = sphi 0, %s59
    %s74 = sphi 0, %s60
    %s78 = sphi 0, %s78
    %s80 = sphi 0, %s78
    %s81 = sphi 0, %s80
    %s95 = sphi 0, %s81
    %s99 = sphi 0, %s99
    %s101 = sphi 0, %s99
    %s102 = sphi 0, %s101
    %s116 = sphi 0, %s102
    %s120 = sphi 0, %s120
    %s122 = sphi 0, %s120
    %s123 = sphi 0, %s122
    %s137 = sphi 0, %s123
    %s141 = sphi 0, %s141
    %s143 = sphi 0, %s141
    %s144 = sphi 0, %s143
    %s158 = sphi 0, %s144
    %s162 = sphi 0, %s162
    %s164 = sphi 0, %s162
    %s165 = sphi 0, %s164
    %s179 = sphi 0, %s165
    %s183 = sphi 0, %s183
    %s185 = sphi 0, %s183
    %s186 = sphi 0, %s185
    %s200 = sphi 0, %s186
    %s204 = sphi 0, %s204
    %s206 = sphi 0, %s204
    %s207 = sphi 0, %s206
    %s221 = sphi 0, %s207
    %s225 = sphi 0, %s225
    %s227 = sphi 0, %s225
    %s228 = sphi 0, %s227
    %s242 = sphi 0, %s228
    %s246 = sphi 0, %s246
    %s248 = sphi 0, %s246
    %s249 = sphi 0, %s248
    %s263 = sphi 0, %s249
    %s267 = sphi 0, %s267
    %s269 = sphi 0, %s267
    %s270 = sphi 0, %s269
    %s284 = sphi 0, %s270
    %s288 = sphi 0, %s288
    %s290 = sphi 0, %s288
    %s291 = sphi 0, %s290
    %s305 = sphi 0, %s291
    %s309 = sphi 0, %s309
    %s311 = sphi 0, %s309
    %s312 = sphi 0, %s311
    %s326 = sphi 0, %s312
    %s330 = sphi 0, %s330
    %s332 = sphi 0, %s330
    %s333 = sphi 0, %s332
    %s347 = sphi 0, %s333
    %s353 = sphi 0, %s355
    %s356 = sphi 0, %s353
    %s357 = sphi 0, %s356
    %s373 = sphi 0, %s357
  $region4: #{baseline_surrogate_forward.1} parent=0 // loop_header_branch
    %26 = sbr.rel (%p24) target = $region8
  $region5: #{baseline_surrogate_forward.1} parent=0 // loop_body
    %s28 = ssub.s32 %s23, 1
    %s29 = ssub.s32 %s23, 2
    %s30 = sadd.s32 %s23, 1
    %s31 = ssub.s32 %s23, %s30
    %p32 = scmp.eq.s32.totalorder %s31, 0
    %s34 = sadd.s32 %s33, 1
    %s35 = scalar_select %p32, %s33, %s34
    %p38 = pneg %p32
    %p39 = scmp.eq.s32.totalorder %s23, 1
    %p40 = por %p38, %p39
    %p41 = scmp.ne.s32.totalorder %s33, %s36
    %p42 = scmp.eq.s32.totalorder %s23, 0
    %p43 = por %p41, %p42
    %p44 = scmp.ne.s32.totalorder %s33, %s36
    %p45 = scmp.eq.s32.totalorder %s28, 1
    %p46 = por %p44, %p45
    %p47 = scmp.ne.s32.totalorder %s36, %s37
    %p48 = scmp.eq.s32.totalorder %s28, 0
    %p49 = por %p47, %p48
    %p50 = scmp.ne.s32.totalorder %s36, %s37
    %p51 = scmp.eq.s32.totalorder %s29, 1
    %p52 = por %p50, %p51
    %p54 = scmp.ne.s32.totalorder %s37, %s53
    %p55 = scmp.eq.s32.totalorder %s29, 0
    %p56 = por %p54, %p55
    %s58 = sadd.s32 %s57, 1
    %p61 = scmp.eq.s32.totalorder %s23, 1
    %p62 = scmp.ne.s32.totalorder %s57, %s59
    %p63 = scmp.eq.s32.totalorder %s23, 0
    %p64 = por %p62, %p63
    %p65 = scmp.ne.s32.totalorder %s57, %s59
    %p66 = scmp.eq.s32.totalorder %s28, 1
    %p67 = por %p65, %p66
    %p68 = scmp.ne.s32.totalorder %s59, %s60
    %p69 = scmp.eq.s32.totalorder %s28, 0
    %p70 = por %p68, %p69
    %p71 = scmp.ne.s32.totalorder %s59, %s60
    %p72 = scmp.eq.s32.totalorder %s29, 1
    %p73 = por %p71, %p72
    %p75 = scmp.ne.s32.totalorder %s60, %s74
    %p76 = scmp.eq.s32.totalorder %s29, 0
    %p77 = por %p75, %p76
    %s79 = sadd.s32 %s78, 1
    %p82 = scmp.eq.s32.totalorder %s23, 1
    %p83 = scmp.ne.s32.totalorder %s78, %s80
    %p84 = scmp.eq.s32.totalorder %s23, 0
    %p85 = por %p83, %p84
    %p86 = scmp.ne.s32.totalorder %s78, %s80
    %p87 = scmp.eq.s32.totalorder %s28, 1
    %p88 = por %p86, %p87
    %p89 = scmp.ne.s32.totalorder %s80, %s81
    %p90 = scmp.eq.s32.totalorder %s28, 0
    %p91 = por %p89, %p90
    %p92 = scmp.ne.s32.totalorder %s80, %s81
    %p93 = scmp.eq.s32.totalorder %s29, 1
    %p94 = por %p92, %p93
    %p96 = scmp.ne.s32.totalorder %s81, %s95
    %p97 = scmp.eq.s32.totalorder %s29, 0
    %p98 = por %p96, %p97
    %s100 = sadd.s32 %s99, 1
    %p103 = scmp.eq.s32.totalorder %s23, 1
    %p104 = scmp.ne.s32.totalorder %s99, %s101
    %p105 = scmp.eq.s32.totalorder %s23, 0
    %p106 = por %p104, %p105
    %p107 = scmp.ne.s32.totalorder %s99, %s101
    %p108 = scmp.eq.s32.totalorder %s28, 1
    %p109 = por %p107, %p108
    %p110 = scmp.ne.s32.totalorder %s101, %s102
    %p111 = scmp.eq.s32.totalorder %s28, 0
    %p112 = por %p110, %p111
    %p113 = scmp.ne.s32.totalorder %s101, %s102
    %p114 = scmp.eq.s32.totalorder %s29, 1
    %p115 = por %p113, %p114
    %p117 = scmp.ne.s32.totalorder %s102, %s116
    %p118 = scmp.eq.s32.totalorder %s29, 0
    %p119 = por %p117, %p118
    %s121 = sadd.s32 %s120, 1
    %p124 = scmp.eq.s32.totalorder %s23, 1
    %p125 = scmp.ne.s32.totalorder %s120, %s122
    %p126 = scmp.eq.s32.totalorder %s23, 0
    %p127 = por %p125, %p126
    %p128 = scmp.ne.s32.totalorder %s120, %s122
    %p129 = scmp.eq.s32.totalorder %s28, 1
    %p130 = por %p128, %p129
    %p131 = scmp.ne.s32.totalorder %s122, %s123
    %p132 = scmp.eq.s32.totalorder %s28, 0
    %p133 = por %p131, %p132
    %p134 = scmp.ne.s32.totalorder %s122, %s123
    %p135 = scmp.eq.s32.totalorder %s29, 1
    %p136 = por %p134, %p135
    %p138 = scmp.ne.s32.totalorder %s123, %s137
    %p139 = scmp.eq.s32.totalorder %s29, 0
    %p140 = por %p138, %p139
    %s142 = sadd.s32 %s141, 1
    %p145 = scmp.eq.s32.totalorder %s23, 1
    %p146 = scmp.ne.s32.totalorder %s141, %s143
    %p147 = scmp.eq.s32.totalorder %s23, 0
    %p148 = por %p146, %p147
    %p149 = scmp.ne.s32.totalorder %s141, %s143
    %p150 = scmp.eq.s32.totalorder %s28, 1
    %p151 = por %p149, %p150
    %p152 = scmp.ne.s32.totalorder %s143, %s144
    %p153 = scmp.eq.s32.totalorder %s28, 0
    %p154 = por %p152, %p153
    %p155 = scmp.ne.s32.totalorder %s143, %s144
    %p156 = scmp.eq.s32.totalorder %s29, 1
    %p157 = por %p155, %p156
    %p159 = scmp.ne.s32.totalorder %s144, %s158
    %p160 = scmp.eq.s32.totalorder %s29, 0
    %p161 = por %p159, %p160
    %s163 = sadd.s32 %s162, 1
    %p166 = scmp.eq.s32.totalorder %s23, 1
    %p167 = scmp.ne.s32.totalorder %s162, %s164
    %p168 = scmp.eq.s32.totalorder %s23, 0
    %p169 = por %p167, %p168
    %p170 = scmp.ne.s32.totalorder %s162, %s164
    %p171 = scmp.eq.s32.totalorder %s28, 1
    %p172 = por %p170, %p171
    %p173 = scmp.ne.s32.totalorder %s164, %s165
    %p174 = scmp.eq.s32.totalorder %s28, 0
    %p175 = por %p173, %p174
    %p176 = scmp.ne.s32.totalorder %s164, %s165
    %p177 = scmp.eq.s32.totalorder %s29, 1
    %p178 = por %p176, %p177
    %p180 = scmp.ne.s32.totalorder %s165, %s179
    %p181 = scmp.eq.s32.totalorder %s29, 0
    %p182 = por %p180, %p181
    %s184 = sadd.s32 %s183, 1
    %p187 = scmp.eq.s32.totalorder %s23, 1
    %p188 = scmp.ne.s32.totalorder %s183, %s185
    %p189 = scmp.eq.s32.totalorder %s23, 0
    %p190 = por %p188, %p189
    %p191 = scmp.ne.s32.totalorder %s183, %s185
    %p192 = scmp.eq.s32.totalorder %s28, 1
    %p193 = por %p191, %p192
    %p194 = scmp.ne.s32.totalorder %s185, %s186
    %p195 = scmp.eq.s32.totalorder %s28, 0
    %p196 = por %p194, %p195
    %p197 = scmp.ne.s32.totalorder %s185, %s186
    %p198 = scmp.eq.s32.totalorder %s29, 1
    %p199 = por %p197, %p198
    %p201 = scmp.ne.s32.totalorder %s186, %s200
    %p202 = scmp.eq.s32.totalorder %s29, 0
    %p203 = por %p201, %p202
    %s205 = sadd.s32 %s204, 1
    %p208 = scmp.eq.s32.totalorder %s23, 1
    %p209 = scmp.ne.s32.totalorder %s204, %s206
    %p210 = scmp.eq.s32.totalorder %s23, 0
    %p211 = por %p209, %p210
    %p212 = scmp.ne.s32.totalorder %s204, %s206
    %p213 = scmp.eq.s32.totalorder %s28, 1
    %p214 = por %p212, %p213
    %p215 = scmp.ne.s32.totalorder %s206, %s207
    %p216 = scmp.eq.s32.totalorder %s28, 0
    %p217 = por %p215, %p216
    %p218 = scmp.ne.s32.totalorder %s206, %s207
    %p219 = scmp.eq.s32.totalorder %s29, 1
    %p220 = por %p218, %p219
    %p222 = scmp.ne.s32.totalorder %s207, %s221
    %p223 = scmp.eq.s32.totalorder %s29, 0
    %p224 = por %p222, %p223
    %s226 = sadd.s32 %s225, 1
    %p229 = scmp.eq.s32.totalorder %s23, 1
    %p230 = scmp.ne.s32.totalorder %s225, %s227
    %p231 = scmp.eq.s32.totalorder %s23, 0
    %p232 = por %p230, %p231
    %p233 = scmp.ne.s32.totalorder %s225, %s227
    %p234 = scmp.eq.s32.totalorder %s28, 1
    %p235 = por %p233, %p234
    %p236 = scmp.ne.s32.totalorder %s227, %s228
    %p237 = scmp.eq.s32.totalorder %s28, 0
    %p238 = por %p236, %p237
    %p239 = scmp.ne.s32.totalorder %s227, %s228
    %p240 = scmp.eq.s32.totalorder %s29, 1
    %p241 = por %p239, %p240
    %p243 = scmp.ne.s32.totalorder %s228, %s242
    %p244 = scmp.eq.s32.totalorder %s29, 0
    %p245 = por %p243, %p244
    %s247 = sadd.s32 %s246, 1
    %p250 = scmp.eq.s32.totalorder %s23, 1
    %p251 = scmp.ne.s32.totalorder %s246, %s248
    %p252 = scmp.eq.s32.totalorder %s23, 0
    %p253 = por %p251, %p252
    %p254 = scmp.ne.s32.totalorder %s246, %s248
    %p255 = scmp.eq.s32.totalorder %s28, 1
    %p256 = por %p254, %p255
    %p257 = scmp.ne.s32.totalorder %s248, %s249
    %p258 = scmp.eq.s32.totalorder %s28, 0
    %p259 = por %p257, %p258
    %p260 = scmp.ne.s32.totalorder %s248, %s249
    %p261 = scmp.eq.s32.totalorder %s29, 1
    %p262 = por %p260, %p261
    %p264 = scmp.ne.s32.totalorder %s249, %s263
    %p265 = scmp.eq.s32.totalorder %s29, 0
    %p266 = por %p264, %p265
    %s268 = sadd.s32 %s267, 1
    %p271 = scmp.eq.s32.totalorder %s23, 1
    %p272 = scmp.ne.s32.totalorder %s267, %s269
    %p273 = scmp.eq.s32.totalorder %s23, 0
    %p274 = por %p272, %p273
    %p275 = scmp.ne.s32.totalorder %s267, %s269
    %p276 = scmp.eq.s32.totalorder %s28, 1
    %p277 = por %p275, %p276
    %p278 = scmp.ne.s32.totalorder %s269, %s270
    %p279 = scmp.eq.s32.totalorder %s28, 0
    %p280 = por %p278, %p279
    %p281 = scmp.ne.s32.totalorder %s269, %s270
    %p282 = scmp.eq.s32.totalorder %s29, 1
    %p283 = por %p281, %p282
    %p285 = scmp.ne.s32.totalorder %s270, %s284
    %p286 = scmp.eq.s32.totalorder %s29, 0
    %p287 = por %p285, %p286
    %s289 = sadd.s32 %s288, 1
    %p292 = scmp.eq.s32.totalorder %s23, 1
    %p293 = scmp.ne.s32.totalorder %s288, %s290
    %p294 = scmp.eq.s32.totalorder %s23, 0
    %p295 = por %p293, %p294
    %p296 = scmp.ne.s32.totalorder %s288, %s290
    %p297 = scmp.eq.s32.totalorder %s28, 1
    %p298 = por %p296, %p297
    %p299 = scmp.ne.s32.totalorder %s290, %s291
    %p300 = scmp.eq.s32.totalorder %s28, 0
    %p301 = por %p299, %p300
    %p302 = scmp.ne.s32.totalorder %s290, %s291
    %p303 = scmp.eq.s32.totalorder %s29, 1
    %p304 = por %p302, %p303
    %p306 = scmp.ne.s32.totalorder %s291, %s305
    %p307 = scmp.eq.s32.totalorder %s29, 0
    %p308 = por %p306, %p307
    %s310 = sadd.s32 %s309, 1
    %p313 = scmp.eq.s32.totalorder %s23, 1
    %p314 = scmp.ne.s32.totalorder %s309, %s311
    %p315 = scmp.eq.s32.totalorder %s23, 0
    %p316 = por %p314, %p315
    %p317 = scmp.ne.s32.totalorder %s309, %s311
    %p318 = scmp.eq.s32.totalorder %s28, 1
    %p319 = por %p317, %p318
    %p320 = scmp.ne.s32.totalorder %s311, %s312
    %p321 = scmp.eq.s32.totalorder %s28, 0
    %p322 = por %p320, %p321
    %p323 = scmp.ne.s32.totalorder %s311, %s312
    %p324 = scmp.eq.s32.totalorder %s29, 1
    %p325 = por %p323, %p324
    %p327 = scmp.ne.s32.totalorder %s312, %s326
    %p328 = scmp.eq.s32.totalorder %s29, 0
    %p329 = por %p327, %p328
    %s331 = sadd.s32 %s330, 1
    %p334 = scmp.eq.s32.totalorder %s23, 1
    %p335 = scmp.ne.s32.totalorder %s330, %s332
    %p336 = scmp.eq.s32.totalorder %s23, 0
    %p337 = por %p335, %p336
    %p338 = scmp.ne.s32.totalorder %s330, %s332
    %p339 = scmp.eq.s32.totalorder %s28, 1
    %p340 = por %p338, %p339
    %p341 = scmp.ne.s32.totalorder %s332, %s333
    %p342 = scmp.eq.s32.totalorder %s28, 0
    %p343 = por %p341, %p342
    %p344 = scmp.ne.s32.totalorder %s332, %s333
    %p345 = scmp.eq.s32.totalorder %s29, 1
    %p346 = por %p344, %p345
    %p348 = scmp.ne.s32.totalorder %s333, %s347
    %p349 = scmp.eq.s32.totalorder %s29, 0
    %p350 = por %p348, %p349
    %s351 = ssub.s32 %s23, %s30
    %p352 = scmp.eq.s32.totalorder %s351, 0
    %s354 = sadd.s32 %s353, 1
    %s355 = scalar_select %p352, %s353, %s354
    %p358 = pneg %p352
    %p359 = scmp.eq.s32.totalorder %s23, 1
    %p360 = por %p358, %p359
    %p361 = scmp.ne.s32.totalorder %s353, %s356
    %p362 = scmp.eq.s32.totalorder %s23, 0
    %p363 = por %p361, %p362
    %p364 = scmp.ne.s32.totalorder %s353, %s356
    %p365 = scmp.eq.s32.totalorder %s28, 1
    %p366 = por %p364, %p365
    %p367 = scmp.ne.s32.totalorder %s356, %s357
    %p368 = scmp.eq.s32.totalorder %s28, 0
    %p369 = por %p367, %p368
    %p370 = scmp.ne.s32.totalorder %s356, %s357
    %p371 = scmp.eq.s32.totalorder %s29, 1
    %p372 = por %p370, %p371
    %p374 = scmp.ne.s32.totalorder %s357, %s373
    %p375 = scmp.eq.s32.totalorder %s29, 0
    %p376 = por %p374, %p375
    %p377 = scmp.le.s32.totalorder 1, %s23
    %p378 = scmp.lt.s32.totalorder %s23, 3
    %p379 = pnand %p377, %p378
    %p380 = pneg %p379
    // Predicated region
    $region9: #{baseline_surrogate_forward.1} parent=5 // pred_check
      _
    $region10: #{baseline_surrogate_forward.1} parent=5 // pred_check_branch
      %382 = sbr.rel (%p379) target = $region12
    $region11: #{baseline_surrogate_forward.1} parent=5 // pred_region
      %s383 = ssub.s32 %s23, 1
      // Predicated region
      $region13: #{baseline_surrogate_forward.1} parent=11 // pred_check
        %p384 = pneg %p70
      $region14: #{baseline_surrogate_forward.1} parent=11 // pred_check_branch
        %386 = sbr.rel (%p384) target = $region16
      $region15: #{baseline_surrogate_forward.1} parent=11 // pred_region
        _
      $region16: #{baseline_surrogate_forward.1} parent=11 // pred_fallthru
        _
      // Predicated region
      $region17: #{baseline_surrogate_forward.1} parent=11 // pred_check
        %p387 = pneg %p91
      $region18: #{baseline_surrogate_forward.1} parent=11 // pred_check_branch
        %389 = sbr.rel (%p387) target = $region20
      $region19: #{baseline_surrogate_forward.1} parent=11 // pred_region
        _
      $region20: #{baseline_surrogate_forward.1} parent=11 // pred_fallthru
        _
      // Predicated region
      $region21: #{baseline_surrogate_forward.1} parent=11 // pred_check
        %p390 = pneg %p112
      $region22: #{baseline_surrogate_forward.1} parent=11 // pred_check_branch
        %392 = sbr.rel (%p390) target = $region24
      $region23: #{baseline_surrogate_forward.1} parent=11 // pred_region
        _
      $region24: #{baseline_surrogate_forward.1} parent=11 // pred_fallthru
        _
      // Predicated region
      $region25: #{baseline_surrogate_forward.1} parent=11 // pred_check
        %p393 = pneg %p133
      $region26: #{baseline_surrogate_forward.1} parent=11 // pred_check_branch
        %395 = sbr.rel (%p393) target = $region28
      $region27: #{baseline_surrogate_forward.1} parent=11 // pred_region
        _
      $region28: #{baseline_surrogate_forward.1} parent=11 // pred_fallthru
        _
      // Predicated region
      $region29: #{baseline_surrogate_forward.1} parent=11 // pred_check
        %p396 = pneg %p154
      $region30: #{baseline_surrogate_forward.1} parent=11 // pred_check_branch
        %398 = sbr.rel (%p396) target = $region32
      $region31: #{baseline_surrogate_forward.1} parent=11 // pred_region
        _
      $region32: #{baseline_surrogate_forward.1} parent=11 // pred_fallthru
        _
      // Predicated region
      $region33: #{baseline_surrogate_forward.1} parent=11 // pred_check
        %p399 = pneg %p175
      $region34: #{baseline_surrogate_forward.1} parent=11 // pred_check_branch
        %401 = sbr.rel (%p399) target = $region36
      $region35: #{baseline_surrogate_forward.1} parent=11 // pred_region
        _
      $region36: #{baseline_surrogate_forward.1} parent=11 // pred_fallthru
        _
      // Predicated region
      $region37: #{baseline_surrogate_forward.1} parent=11 // pred_check
        %p402 = pneg %p196
      $region38: #{baseline_surrogate_forward.1} parent=11 // pred_check_branch
        %404 = sbr.rel (%p402) target = $region40
      $region39: #{baseline_surrogate_forward.1} parent=11 // pred_region
        _
      $region40: #{baseline_surrogate_forward.1} parent=11 // pred_fallthru
        _
      // Predicated region
      $region41: #{baseline_surrogate_forward.1} parent=11 // pred_check
        %p405 = pneg %p217
      $region42: #{baseline_surrogate_forward.1} parent=11 // pred_check_branch
        %407 = sbr.rel (%p405) target = $region44
      $region43: #{baseline_surrogate_forward.1} parent=11 // pred_region
        _
      $region44: #{baseline_surrogate_forward.1} parent=11 // pred_fallthru
        _
      // Predicated region
      $region45: #{baseline_surrogate_forward.1} parent=11 // pred_check
        %p408 = pneg %p238
      $region46: #{baseline_surrogate_forward.1} parent=11 // pred_check_branch
        %410 = sbr.rel (%p408) target = $region48
      $region47: #{baseline_surrogate_forward.1} parent=11 // pred_region
        _
      $region48: #{baseline_surrogate_forward.1} parent=11 // pred_fallthru
        _
      // Predicated region
      $region49: #{baseline_surrogate_forward.1} parent=11 // pred_check
        %p411 = pneg %p259
      $region50: #{baseline_surrogate_forward.1} parent=11 // pred_check_branch
        %413 = sbr.rel (%p411) target = $region52
      $region51: #{baseline_surrogate_forward.1} parent=11 // pred_region
        _
      $region52: #{baseline_surrogate_forward.1} parent=11 // pred_fallthru
        _
      // Predicated region
      $region53: #{baseline_surrogate_forward.1} parent=11 // pred_check
        %p414 = pneg %p280
      $region54: #{baseline_surrogate_forward.1} parent=11 // pred_check_branch
        %416 = sbr.rel (%p414) target = $region56
      $region55: #{baseline_surrogate_forward.1} parent=11 // pred_region
        _
      $region56: #{baseline_surrogate_forward.1} parent=11 // pred_fallthru
        _
      // Predicated region
      $region57: #{baseline_surrogate_forward.1} parent=11 // pred_check
        %p417 = pneg %p301
      $region58: #{baseline_surrogate_forward.1} parent=11 // pred_check_branch
        %419 = sbr.rel (%p417) target = $region60
      $region59: #{baseline_surrogate_forward.1} parent=11 // pred_region
        _
      $region60: #{baseline_surrogate_forward.1} parent=11 // pred_fallthru
        _
      // Predicated region
      $region61: #{baseline_surrogate_forward.1} parent=11 // pred_check
        %p420 = pneg %p322
      $region62: #{baseline_surrogate_forward.1} parent=11 // pred_check_branch
        %422 = sbr.rel (%p420) target = $region64
      $region63: #{baseline_surrogate_forward.1} parent=11 // pred_region
        _
      $region64: #{baseline_surrogate_forward.1} parent=11 // pred_fallthru
        _
      // Predicated region
      $region65: #{baseline_surrogate_forward.1} parent=11 // pred_check
        %p423 = pneg %p343
      $region66: #{baseline_surrogate_forward.1} parent=11 // pred_check_branch
        %425 = sbr.rel (%p423) target = $region68
      $region67: #{baseline_surrogate_forward.1} parent=11 // pred_region
        _
      $region68: #{baseline_surrogate_forward.1} parent=11 // pred_fallthru
        _
    $region12: #{baseline_surrogate_forward.1} parent=5 // pred_fallthru
      _
    %p426 = scmp.lt.s32.totalorder %s23, 2
    // Predicated region
    $region69: #{baseline_surrogate_forward.1} parent=5 // pred_check
      %p427 = pneg %p426
    $region70: #{baseline_surrogate_forward.1} parent=5 // pred_check_branch
      %429 = sbr.rel (%p427) target = $region72
    $region71: #{baseline_surrogate_forward.1} parent=5 // pred_region
      // Predicated region
      $region73: #{baseline_surrogate_forward.1} parent=71 // pred_check
        %p430 = pneg %p43
      $region74: #{baseline_surrogate_forward.1} parent=71 // pred_check_branch
        %432 = sbr.rel (%p430) target = $region76
      $region75: #{baseline_surrogate_forward.1} parent=71 // pred_region
        %s433 = smul.u32 16, %s23
        %p434 = scmp.lt.s32.totalorder %s433, 31
        %s435 = scalar_select %p434, %s433, 31
        %s436 = smul.addr %s435, 8
        %s437 = scalar_lea.vmem %s0, %s436
        %s438 = smul.u32 16, %s23
      $region76: #{baseline_surrogate_forward.1} parent=71 // pred_fallthru
        _
    $region72: #{baseline_surrogate_forward.1} parent=5 // pred_fallthru
      _
    %p439 = scmp.le.s32.totalorder 1, %s23
    %p440 = scmp.lt.s32.totalorder %s23, 3
    %p441 = pnand %p439, %p440
    %p442 = pneg %p441
    // Predicated region
    $region77: #{baseline_surrogate_forward.1} parent=5 // pred_check
      _
    $region78: #{baseline_surrogate_forward.1} parent=5 // pred_check_branch
      %444 = sbr.rel (%p441) target = $region80
    $region79: #{baseline_surrogate_forward.1} parent=5 // pred_region
      %s445 = ssub.s32 %s23, 1
      %s446 = smul.u32 16, %s28
      %p447 = scmp.lt.s32.totalorder %s446, 31
      %s448 = scalar_select %p447, %s446, 31
      %s449 = smul.addr %s448, 8
      %s450 = scalar_lea.vmem %s0, %s449
      %p451 = pneg %p49
      %p452 = pneg %p46
      %p453 = pneg %p70
      %p454 = pneg %p67
      %p455 = pneg %p91
      %p456 = pneg %p88
      %p457 = pneg %p112
      %p458 = pneg %p109
      %p459 = pneg %p133
      %p460 = pneg %p130
      %p461 = pneg %p154
      %p462 = pneg %p151
      %p463 = pneg %p175
      %p464 = pneg %p172
      %p465 = pneg %p196
      %p466 = pneg %p193
      %p467 = pneg %p217
      %p468 = pneg %p214
      %p469 = pneg %p238
      %p470 = pneg %p235
      %p471 = pneg %p259
      %p472 = pneg %p256
      %p473 = pneg %p280
      %p474 = pneg %p277
      %p475 = pneg %p301
      %p476 = pneg %p298
      %p477 = pneg %p322
      %p478 = pneg %p319
      %p479 = pneg %p343
      %p480 = pneg %p340
      %p481 = pneg %p369
      %p482 = pneg %p366
      %s483 = smul.u32 16, %s28
      %p484 = scmp.lt.s32.totalorder %s483, 31
      %s485 = scalar_select %p484, %s483, 31
      %s486 = smul.addr %s485, 8
      %s487 = scalar_lea.vmem %s15, %s486
      %s488 = smul.u32 16, %s28
      %p489 = scmp.lt.s32.totalorder %s488, 31
      %s490 = scalar_select %p489, %s488, 31
      %s491 = smul.addr %s490, 8
      %s492 = scalar_lea.vmem %s0, %s491
      %s493 = smul.u32 16, %s28
      %s494 = smul.u32 16, %s28
      %p495 = scmp.lt.s32.totalorder %s494, 31
      %s496 = scalar_select %p495, %s494, 31
      %s497 = smul.addr %s496, 8
      %s498 = scalar_lea.vmem %s15, %s497
      %s499 = smul.u32 16, %s28
      %v500 = vld [vmem:[%s492] sm:$0xff]
      %v501 = vld [vmem:[%s492 + $0x8] sm:$0xff]
      %v502 = vld [vmem:[%s492 + $0x10] sm:$0xff]
      %v503 = vld [vmem:[%s492 + $0x18] sm:$0xff]
      %v504 = vld [vmem:[%s492 + $0x20] sm:$0xff]
      %v505 = vld [vmem:[%s492 + $0x28] sm:$0xff]
      %v506 = vld [vmem:[%s492 + $0x30] sm:$0xff]
      %v507 = vld [vmem:[%s492 + $0x38] sm:$0xff]
      %v508 = vld [vmem:[%s492 + $0x40] sm:$0xff]
      %v509 = vld [vmem:[%s492 + $0x48] sm:$0xff]
      %v510 = vld [vmem:[%s492 + $0x50] sm:$0xff]
      %v511 = vld [vmem:[%s492 + $0x58] sm:$0xff]
      %v512 = vld [vmem:[%s492 + $0x60] sm:$0xff]
      %v513 = vld [vmem:[%s492 + $0x68] sm:$0xff]
      %v514 = vld [vmem:[%s492 + $0x70] sm:$0xff]
      %v515 = vld [vmem:[%s492 + $0x78] sm:$0xff]
      %v516 = vld [vmem:[%s1] sm:$0xff]
      %v517 = vld [vmem:[%s1 + $0x8] sm:$0xff]
      %v518 = vld [vmem:[%s1 + $0x10] sm:$0xff]
      %v519 = vld [vmem:[%s1 + $0x18] sm:$0xff]
      %v520 = vld [vmem:[%s2] sm:$0x1]
      %v522 = vperm.slane %v520, 0
      %vm524 = vcmask 261120
      %v526 = vsel %vm524, %v500, 0
      %v529 = vsel %vm524, %v501, 0
      %v532 = vsel %vm524, %v502, 0
      %v535 = vsel %vm524, %v503, 0
      %v538 = vsel %vm524, %v504, 0
      %v541 = vsel %vm524, %v505, 0
      %v544 = vsel %vm524, %v506, 0
      %v547 = vsel %vm524, %v507, 0
      %v550 = vsel %vm524, %v508, 0
      %v553 = vsel %vm524, %v509, 0
      %v556 = vsel %vm524, %v510, 0
      %v559 = vsel %vm524, %v511, 0
      %v562 = vsel %vm524, %v512, 0
      %v565 = vsel %vm524, %v513, 0
      %v568 = vsel %vm524, %v514, 0
      %v571 = vsel %vm524, %v515, 0
      %573 = vmatpush.msra.mxu0 0.0
      %574 = vmatpush.msra.mxu0 0.0
      %575 = vmatpush.msra.mxu0 0.0
      %576 = vmatpush.msra.mxu0 0.0
      %577 = vmatpush.msra.mxu0 0.0
      %578 = vmatpush.msra.mxu0 0.0
      %579 = vmatpush.msra.mxu0 0.0
      %580 = vmatpush.msra.mxu0 0.0
      %581 = vmatpush.msra.mxu0 0.0
      %582 = vmatpush.msra.mxu0 0.0
      %583 = vmatpush.msra.mxu0 0.0
      %584 = vmatpush.msra.mxu0 0.0
      %585 = vmatpush.msra.mxu0 %v519
      %586 = vmatpush.msra.mxu0 %v518
      %587 = vmatpush.msra.mxu0 %v517
      %588 = vmatpush.msra.mxu0 %v516
      %589 = vmatmul.f32.gmra.mxu0 %v526
      %v590 = vpop.f32.mrf.mxu0
      %v591 = vadd.f32 %v522, %v590
      %592 = vmatmul.f32.gmra.mxu0 %v529
      %v593 = vpop.f32.mrf.mxu0
      %v594 = vadd.f32 %v522, %v593
      %595 = vmatmul.f32.gmra.mxu0 %v532
      %v596 = vpop.f32.mrf.mxu0
      %v597 = vadd.f32 %v522, %v596
      %598 = vmatmul.f32.gmra.mxu0 %v535
      %v599 = vpop.f32.mrf.mxu0
      %v600 = vadd.f32 %v522, %v599
      %601 = vmatmul.f32.gmra.mxu0 %v538
      %v602 = vpop.f32.mrf.mxu0
      %v603 = vadd.f32 %v522, %v602
      %604 = vmatmul.f32.gmra.mxu0 %v541
      %v605 = vpop.f32.mrf.mxu0
      %v606 = vadd.f32 %v522, %v605
      %607 = vmatmul.f32.gmra.mxu0 %v544
      %v608 = vpop.f32.mrf.mxu0
      %v609 = vadd.f32 %v522, %v608
      %610 = vmatmul.f32.gmra.mxu0 %v547
      %v611 = vpop.f32.mrf.mxu0
      %v612 = vadd.f32 %v522, %v611
      %613 = vmatmul.f32.gmra.mxu0 %v550
      %v614 = vpop.f32.mrf.mxu0
      %v615 = vadd.f32 %v522, %v614
      %616 = vmatmul.f32.gmra.mxu0 %v553
      %v617 = vpop.f32.mrf.mxu0
      %v618 = vadd.f32 %v522, %v617
      %619 = vmatmul.f32.gmra.mxu0 %v556
      %v620 = vpop.f32.mrf.mxu0
      %v621 = vadd.f32 %v522, %v620
      %622 = vmatmul.f32.gmra.mxu0 %v559
      %v623 = vpop.f32.mrf.mxu0
      %v624 = vadd.f32 %v522, %v623
      %625 = vmatmul.f32.gmra.mxu0 %v562
      %v626 = vpop.f32.mrf.mxu0
      %v627 = vadd.f32 %v522, %v626
      %628 = vmatmul.f32.gmra.mxu0 %v565
      %v629 = vpop.f32.mrf.mxu0
      %v630 = vadd.f32 %v522, %v629
      %631 = vmatmul.f32.gmra.mxu0 %v568
      %v632 = vpop.f32.mrf.mxu0
      %v633 = vadd.f32 %v522, %v632
      %634 = vmatmul.f32.gmra.mxu0 %v571
      %v635 = vpop.f32.mrf.mxu0
      %v636 = vadd.f32 %v522, %v635
      %637 = vdwg.mxu0
      %v638 = vld [vmem:[%s3] sm:$0xff]
      %v639 = vld [vmem:[%s3 + $0x8] sm:$0xff]
      %v640 = vld [vmem:[%s3 + $0x10] sm:$0xff]
      %v641 = vld [vmem:[%s3 + $0x18] sm:$0xff]
      %v642 = vld [vmem:[%s4] sm:$0x1]
      %v643 = vld [vmem:[%s5] sm:$0x1]
      %v644 = vld [vmem:[%s6] sm:$0x1]
      %v645 = vld [vmem:[%s7] sm:$0xff]
      %v646 = vld [vmem:[%s7 + $0x8] sm:$0xff]
      %v647 = vld [vmem:[%s7 + $0x10] sm:$0xff]
      %v648 = vld [vmem:[%s7 + $0x18] sm:$0xff]
      %v649 = vld [vmem:[%s8] sm:$0x1]
      %v650 = vld [vmem:[%s9] sm:$0xff]
      %v651 = vld [vmem:[%s9 + $0x8] sm:$0xff]
      %v652 = vld [vmem:[%s9 + $0x10] sm:$0xff]
      %v653 = vld [vmem:[%s9 + $0x18] sm:$0xff]
      %v654 = vld [vmem:[%s9 + $0x20] sm:$0xff]
      %v655 = vld [vmem:[%s9 + $0x28] sm:$0xff]
      %v656 = vld [vmem:[%s9 + $0x30] sm:$0xff]
      %v657 = vld [vmem:[%s9 + $0x38] sm:$0xff]
      %v658 = vld [vmem:[%s10] sm:$0x1]
      %v659 = vld [vmem:[%s11] sm:$0x1]
      %v660 = vld [vmem:[%s12] sm:$0x1]
      %v662 = vperm.slane %v642, 0
      %v665 = vsel %vm524, %v591, 0
      %v668 = vsel %vm524, %v594, 0
      %v671 = vsel %vm524, %v597, 0
      %v674 = vsel %vm524, %v600, 0
      %v677 = vsel %vm524, %v603, 0
      %v680 = vsel %vm524, %v606, 0
      %v683 = vsel %vm524, %v609, 0
      %v686 = vsel %vm524, %v612, 0
      %v689 = vsel %vm524, %v615, 0
      %v692 = vsel %vm524, %v618, 0
      %v695 = vsel %vm524, %v621, 0
      %v698 = vsel %vm524, %v624, 0
      %v701 = vsel %vm524, %v627, 0
      %v704 = vsel %vm524, %v630, 0
      %v707 = vsel %vm524, %v633, 0
      %v710 = vsel %vm524, %v636, 0
      %712 = vmatpush.msra.mxu0 0.0
      %713 = vmatpush.msra.mxu0 0.0
      %714 = vmatpush.msra.mxu0 0.0
      %715 = vmatpush.msra.mxu0 0.0
      %716 = vmatpush.msra.mxu0 0.0
      %717 = vmatpush.msra.mxu0 0.0
      %718 = vmatpush.msra.mxu0 0.0
      %719 = vmatpush.msra.mxu0 0.0
      %720 = vmatpush.msra.mxu0 0.0
      %721 = vmatpush.msra.mxu0 0.0
      %722 = vmatpush.msra.mxu0 0.0
      %723 = vmatpush.msra.mxu0 0.0
      %724 = vmatpush.msra.mxu0 %v641
      %725 = vmatpush.msra.mxu0 %v640
      %726 = vmatpush.msra.mxu0 %v639
      %727 = vmatpush.msra.mxu0 %v638
      %728 = vmatmul.f32.gmra.mxu0 %v665
      %v729 = vpop.f32.mrf.mxu0
      %v730 = vadd.f32 %v662, %v729
      %731 = vmatmul.f32.gmra.mxu0 %v668
      %v732 = vpop.f32.mrf.mxu0
      %v733 = vadd.f32 %v662, %v732
      %734 = vmatmul.f32.gmra.mxu0 %v671
      %v735 = vpop.f32.mrf.mxu0
      %v736 = vadd.f32 %v662, %v735
      %737 = vmatmul.f32.gmra.mxu0 %v674
      %v738 = vpop.f32.mrf.mxu0
      %v739 = vadd.f32 %v662, %v738
      %740 = vmatmul.f32.gmra.mxu0 %v677
      %v741 = vpop.f32.mrf.mxu0
      %v742 = vadd.f32 %v662, %v741
      %743 = vmatmul.f32.gmra.mxu0 %v680
      %v744 = vpop.f32.mrf.mxu0
      %v745 = vadd.f32 %v662, %v744
      %746 = vmatmul.f32.gmra.mxu0 %v683
      %v747 = vpop.f32.mrf.mxu0
      %v748 = vadd.f32 %v662, %v747
      %749 = vmatmul.f32.gmra.mxu0 %v686
      %v750 = vpop.f32.mrf.mxu0
      %v751 = vadd.f32 %v662, %v750
      %752 = vmatmul.f32.gmra.mxu0 %v689
      %v753 = vpop.f32.mrf.mxu0
      %v754 = vadd.f32 %v662, %v753
      %755 = vmatmul.f32.gmra.mxu0 %v692
      %v756 = vpop.f32.mrf.mxu0
      %v757 = vadd.f32 %v662, %v756
      %758 = vmatmul.f32.gmra.mxu0 %v695
      %v759 = vpop.f32.mrf.mxu0
      %v760 = vadd.f32 %v662, %v759
      %761 = vmatmul.f32.gmra.mxu0 %v698
      %v762 = vpop.f32.mrf.mxu0
      %v763 = vadd.f32 %v662, %v762
      %764 = vmatmul.f32.gmra.mxu0 %v701
      %v765 = vpop.f32.mrf.mxu0
      %v766 = vadd.f32 %v662, %v765
      %767 = vmatmul.f32.gmra.mxu0 %v704
      %v768 = vpop.f32.mrf.mxu0
      %v769 = vadd.f32 %v662, %v768
      %770 = vmatmul.f32.gmra.mxu0 %v707
      %v771 = vpop.f32.mrf.mxu0
      %v772 = vadd.f32 %v662, %v771
      %773 = vmatmul.f32.gmra.mxu0 %v710
      %v774 = vpop.f32.mrf.mxu0
      %v775 = vadd.f32 %v662, %v774
      %776 = vdwg.mxu0
      %v777 = vadd.f32 %v591, %v730
      %v778 = vadd.f32 %v594, %v733
      %v779 = vadd.f32 %v597, %v736
      %v780 = vadd.f32 %v600, %v739
      %v781 = vadd.f32 %v603, %v742
      %v782 = vadd.f32 %v606, %v745
      %v783 = vadd.f32 %v609, %v748
      %v784 = vadd.f32 %v612, %v751
      %v785 = vadd.f32 %v615, %v754
      %v786 = vadd.f32 %v618, %v757
      %v787 = vadd.f32 %v621, %v760
      %v788 = vadd.f32 %v624, %v763
      %v789 = vadd.f32 %v627, %v766
      %v790 = vadd.f32 %v630, %v769
      %v791 = vadd.f32 %v633, %v772
      %v792 = vadd.f32 %v636, %v775
      %v793 = vsel %vm524, %v777, 0.0
      %794 = vadd.xlane.f32.xlu0 %v793
      %v795 = vpop.xlane.xlu0 %794
      %v796 = vsel %vm524, %v778, 0.0
      %797 = vadd.xlane.f32.xlu0 %v796
      %v798 = vpop.xlane.xlu0 %797
      %v799 = vsel %vm524, %v779, 0.0
      %800 = vadd.xlane.f32.xlu0 %v799
      %v801 = vpop.xlane.xlu0 %800
      %v802 = vsel %vm524, %v780, 0.0
      %803 = vadd.xlane.f32.xlu0 %v802
      %v804 = vpop.xlane.xlu0 %803
      %v805 = vsel %vm524, %v781, 0.0
      %806 = vadd.xlane.f32.xlu0 %v805
      %v807 = vpop.xlane.xlu0 %806
      %v808 = vsel %vm524, %v782, 0.0
      %809 = vadd.xlane.f32.xlu0 %v808
      %v810 = vpop.xlane.xlu0 %809
      %v811 = vsel %vm524, %v783, 0.0
      %812 = vadd.xlane.f32.xlu0 %v811
      %v813 = vpop.xlane.xlu0 %812
      %v814 = vsel %vm524, %v784, 0.0
      %815 = vadd.xlane.f32.xlu0 %v814
      %v816 = vpop.xlane.xlu0 %815
      %v817 = vsel %vm524, %v785, 0.0
      %818 = vadd.xlane.f32.xlu0 %v817
      %v819 = vpop.xlane.xlu0 %818
      %v820 = vsel %vm524, %v786, 0.0
      %821 = vadd.xlane.f32.xlu0 %v820
      %v822 = vpop.xlane.xlu0 %821
      %v823 = vsel %vm524, %v787, 0.0
      %824 = vadd.xlane.f32.xlu0 %v823
      %v825 = vpop.xlane.xlu0 %824
      %v826 = vsel %vm524, %v788, 0.0
      %827 = vadd.xlane.f32.xlu0 %v826
      %v828 = vpop.xlane.xlu0 %827
      %v829 = vsel %vm524, %v789, 0.0
      %830 = vadd.xlane.f32.xlu0 %v829
      %v831 = vpop.xlane.xlu0 %830
      %v832 = vsel %vm524, %v790, 0.0
      %833 = vadd.xlane.f32.xlu0 %v832
      %v834 = vpop.xlane.xlu0 %833
      %v835 = vsel %vm524, %v791, 0.0
      %836 = vadd.xlane.f32.xlu0 %v835
      %v837 = vpop.xlane.xlu0 %836
      %v838 = vsel %vm524, %v792, 0.0
      %839 = vadd.xlane.f32.xlu0 %v838
      %v840 = vpop.xlane.xlu0 %839
      %v841 = vrcp.pop 32.0
      %v842 = vmul.f32 32.0, %v841
      %v843 = vsub.f32 1.0, %v842
      %v844 = vmul.f32 %v841, %v843
      %v845 = vadd.f32 %v841, %v844
      %vm846 = vweird.f32 %v841
      %v847 = vsel %vm846, %v841, %v845
      %v848 = vmul.f32 %v795, %v847
      %v849 = vmul.f32 %v798, %v847
      %v850 = vmul.f32 %v801, %v847
      %v851 = vmul.f32 %v804, %v847
      %v852 = vmul.f32 %v807, %v847
      %v853 = vmul.f32 %v810, %v847
      %v854 = vmul.f32 %v813, %v847
      %v855 = vmul.f32 %v816, %v847
      %v856 = vmul.f32 %v819, %v847
      %v857 = vmul.f32 %v822, %v847
      %v858 = vmul.f32 %v825, %v847
      %v859 = vmul.f32 %v828, %v847
      %v860 = vmul.f32 %v831, %v847
      %v861 = vmul.f32 %v834, %v847
      %v862 = vmul.f32 %v837, %v847
      %v863 = vmul.f32 %v840, %v847
      %v864 = vsub.f32 %v777, %v848
      %v865 = vsub.f32 %v778, %v849
      %v866 = vsub.f32 %v779, %v850
      %v867 = vsub.f32 %v780, %v851
      %v868 = vsub.f32 %v781, %v852
      %v869 = vsub.f32 %v782, %v853
      %v870 = vsub.f32 %v783, %v854
      %v871 = vsub.f32 %v784, %v855
      %v872 = vsub.f32 %v785, %v856
      %v873 = vsub.f32 %v786, %v857
      %v874 = vsub.f32 %v787, %v858
      %v875 = vsub.f32 %v788, %v859
      %v876 = vsub.f32 %v789, %v860
      %v877 = vsub.f32 %v790, %v861
      %v878 = vsub.f32 %v791, %v862
      %v879 = vsub.f32 %v792, %v863
      %v880 = vmul.f32 %v864, %v864
      %v881 = vmul.f32 %v865, %v865
      %v882 = vmul.f32 %v866, %v866
      %v883 = vmul.f32 %v867, %v867
      %v884 = vmul.f32 %v868, %v868
      %v885 = vmul.f32 %v869, %v869
      %v886 = vmul.f32 %v870, %v870
      %v887 = vmul.f32 %v871, %v871
      %v888 = vmul.f32 %v872, %v872
      %v889 = vmul.f32 %v873, %v873
      %v890 = vmul.f32 %v874, %v874
      %v891 = vmul.f32 %v875, %v875
      %v892 = vmul.f32 %v876, %v876
      %v893 = vmul.f32 %v877, %v877
      %v894 = vmul.f32 %v878, %v878
      %v895 = vmul.f32 %v879, %v879
      %v896 = vsel %vm524, %v880, 0.0
      %897 = vadd.xlane.f32.xlu0 %v896
      %v898 = vpop.xlane.xlu0 %897
      %v899 = vsel %vm524, %v881, 0.0
      %900 = vadd.xlane.f32.xlu0 %v899
      %v901 = vpop.xlane.xlu0 %900
      %v902 = vsel %vm524, %v882, 0.0
      %903 = vadd.xlane.f32.xlu0 %v902
      %v904 = vpop.xlane.xlu0 %903
      %v905 = vsel %vm524, %v883, 0.0
      %906 = vadd.xlane.f32.xlu0 %v905
      %v907 = vpop.xlane.xlu0 %906
      %v908 = vsel %vm524, %v884, 0.0
      %909 = vadd.xlane.f32.xlu0 %v908
      %v910 = vpop.xlane.xlu0 %909
      %v911 = vsel %vm524, %v885, 0.0
      %912 = vadd.xlane.f32.xlu0 %v911
      %v913 = vpop.xlane.xlu0 %912
      %v914 = vsel %vm524, %v886, 0.0
      %915 = vadd.xlane.f32.xlu0 %v914
      %v916 = vpop.xlane.xlu0 %915
      %v917 = vsel %vm524, %v887, 0.0
      %918 = vadd.xlane.f32.xlu0 %v917
      %v919 = vpop.xlane.xlu0 %918
      %v920 = vsel %vm524, %v888, 0.0
      %921 = vadd.xlane.f32.xlu0 %v920
      %v922 = vpop.xlane.xlu0 %921
      %v923 = vsel %vm524, %v889, 0.0
      %924 = vadd.xlane.f32.xlu0 %v923
      %v925 = vpop.xlane.xlu0 %924
      %v926 = vsel %vm524, %v890, 0.0
      %927 = vadd.xlane.f32.xlu0 %v926
      %v928 = vpop.xlane.xlu0 %927
      %v929 = vsel %vm524, %v891, 0.0
      %930 = vadd.xlane.f32.xlu0 %v929
      %v931 = vpop.xlane.xlu0 %930
      %v932 = vsel %vm524, %v892, 0.0
      %933 = vadd.xlane.f32.xlu0 %v932
      %v934 = vpop.xlane.xlu0 %933
      %v935 = vsel %vm524, %v893, 0.0
      %936 = vadd.xlane.f32.xlu0 %v935
      %v937 = vpop.xlane.xlu0 %936
      %v938 = vsel %vm524, %v894, 0.0
      %939 = vadd.xlane.f32.xlu0 %v938
      %v940 = vpop.xlane.xlu0 %939
      %v941 = vsel %vm524, %v895, 0.0
      %942 = vadd.xlane.f32.xlu0 %v941
      %v943 = vpop.xlane.xlu0 %942
      %v944 = vmul.f32 %v898, %v847
      %v945 = vmul.f32 %v901, %v847
      %v946 = vmul.f32 %v904, %v847
      %v947 = vmul.f32 %v907, %v847
      %v948 = vmul.f32 %v910, %v847
      %v949 = vmul.f32 %v913, %v847
      %v950 = vmul.f32 %v916, %v847
      %v951 = vmul.f32 %v919, %v847
      %v952 = vmul.f32 %v922, %v847
      %v953 = vmul.f32 %v925, %v847
      %v954 = vmul.f32 %v928, %v847
      %v955 = vmul.f32 %v931, %v847
      %v956 = vmul.f32 %v934, %v847
      %v957 = vmul.f32 %v937, %v847
      %v958 = vmul.f32 %v940, %v847
      %v959 = vmul.f32 %v943, %v847
      %v960 = vadd.f32 %v944, 1e-05
      %v961 = vadd.f32 %v945, 1e-05
      %v962 = vadd.f32 %v946, 1e-05
      %v963 = vadd.f32 %v947, 1e-05
      %v964 = vadd.f32 %v948, 1e-05
      %v965 = vadd.f32 %v949, 1e-05
      %v966 = vadd.f32 %v950, 1e-05
      %v967 = vadd.f32 %v951, 1e-05
      %v968 = vadd.f32 %v952, 1e-05
      %v969 = vadd.f32 %v953, 1e-05
      %v970 = vadd.f32 %v954, 1e-05
      %v971 = vadd.f32 %v955, 1e-05
      %v972 = vadd.f32 %v956, 1e-05
      %v973 = vadd.f32 %v957, 1e-05
      %v974 = vadd.f32 %v958, 1e-05
      %v975 = vadd.f32 %v959, 1e-05
      %v976 = vrsqrt.pop %v960
      %v977 = vmul.f32 %v976, %v960
      %v978 = vmul.f32 %v977, %v976
      %v979 = vmul.f32 0.5, %v978
      %v980 = vsub.f32 1.5, %v979
      %v981 = vmul.f32 %v976, %v980
      %vm982 = vweird.f32 %v960
      %vm983 = vweird.f32 %v976
      %vm984 = vmor %vm982, %vm983
      %v985 = vsel %vm984, %v976, %v981
      %v986 = vrsqrt.pop %v961
      %v987 = vmul.f32 %v986, %v961
      %v988 = vmul.f32 %v987, %v986
      %v989 = vmul.f32 0.5, %v988
      %v990 = vsub.f32 1.5, %v989
      %v991 = vmul.f32 %v986, %v990
      %vm992 = vweird.f32 %v961
      %vm993 = vweird.f32 %v986
      %vm994 = vmor %vm992, %vm993
      %v995 = vsel %vm994, %v986, %v991
      %v996 = vrsqrt.pop %v962
      %v997 = vmul.f32 %v996, %v962
      %v998 = vmul.f32 %v997, %v996
      %v999 = vmul.f32 0.5, %v998
      %v1000 = vsub.f32 1.5, %v999
      %v1001 = vmul.f32 %v996, %v1000
      %vm1002 = vweird.f32 %v962
      %vm1003 = vweird.f32 %v996
      %vm1004 = vmor %vm1002, %vm1003
      %v1005 = vsel %vm1004, %v996, %v1001
      %v1006 = vrsqrt.pop %v963
      %v1007 = vmul.f32 %v1006, %v963
      %v1008 = vmul.f32 %v1007, %v1006
      %v1009 = vmul.f32 0.5, %v1008
      %v1010 = vsub.f32 1.5, %v1009
      %v1011 = vmul.f32 %v1006, %v1010
      %vm1012 = vweird.f32 %v963
      %vm1013 = vweird.f32 %v1006
      %vm1014 = vmor %vm1012, %vm1013
      %v1015 = vsel %vm1014, %v1006, %v1011
      %v1016 = vrsqrt.pop %v964
      %v1017 = vmul.f32 %v1016, %v964
      %v1018 = vmul.f32 %v1017, %v1016
      %v1019 = vmul.f32 0.5, %v1018
      %v1020 = vsub.f32 1.5, %v1019
      %v1021 = vmul.f32 %v1016, %v1020
      %vm1022 = vweird.f32 %v964
      %vm1023 = vweird.f32 %v1016
      %vm1024 = vmor %vm1022, %vm1023
      %v1025 = vsel %vm1024, %v1016, %v1021
      %v1026 = vrsqrt.pop %v965
      %v1027 = vmul.f32 %v1026, %v965
      %v1028 = vmul.f32 %v1027, %v1026
      %v1029 = vmul.f32 0.5, %v1028
      %v1030 = vsub.f32 1.5, %v1029
      %v1031 = vmul.f32 %v1026, %v1030
      %vm1032 = vweird.f32 %v965
      %vm1033 = vweird.f32 %v1026
      %vm1034 = vmor %vm1032, %vm1033
      %v1035 = vsel %vm1034, %v1026, %v1031
      %v1036 = vrsqrt.pop %v966
      %v1037 = vmul.f32 %v1036, %v966
      %v1038 = vmul.f32 %v1037, %v1036
      %v1039 = vmul.f32 0.5, %v1038
      %v1040 = vsub.f32 1.5, %v1039
      %v1041 = vmul.f32 %v1036, %v1040
      %vm1042 = vweird.f32 %v966
      %vm1043 = vweird.f32 %v1036
      %vm1044 = vmor %vm1042, %vm1043
      %v1045 = vsel %vm1044, %v1036, %v1041
      %v1046 = vrsqrt.pop %v967
      %v1047 = vmul.f32 %v1046, %v967
      %v1048 = vmul.f32 %v1047, %v1046
      %v1049 = vmul.f32 0.5, %v1048
      %v1050 = vsub.f32 1.5, %v1049
      %v1051 = vmul.f32 %v1046, %v1050
      %vm1052 = vweird.f32 %v967
      %vm1053 = vweird.f32 %v1046
      %vm1054 = vmor %vm1052, %vm1053
      %v1055 = vsel %vm1054, %v1046, %v1051
      %v1056 = vrsqrt.pop %v968
      %v1057 = vmul.f32 %v1056, %v968
      %v1058 = vmul.f32 %v1057, %v1056
      %v1059 = vmul.f32 0.5, %v1058
      %v1060 = vsub.f32 1.5, %v1059
      %v1061 = vmul.f32 %v1056, %v1060
      %vm1062 = vweird.f32 %v968
      %vm1063 = vweird.f32 %v1056
      %vm1064 = vmor %vm1062, %vm1063
      %v1065 = vsel %vm1064, %v1056, %v1061
      %v1066 = vrsqrt.pop %v969
      %v1067 = vmul.f32 %v1066, %v969
      %v1068 = vmul.f32 %v1067, %v1066
      %v1069 = vmul.f32 0.5, %v1068
      %v1070 = vsub.f32 1.5, %v1069
      %v1071 = vmul.f32 %v1066, %v1070
      %vm1072 = vweird.f32 %v969
      %vm1073 = vweird.f32 %v1066
      %vm1074 = vmor %vm1072, %vm1073
      %v1075 = vsel %vm1074, %v1066, %v1071
      %v1076 = vrsqrt.pop %v970
      %v1077 = vmul.f32 %v1076, %v970
      %v1078 = vmul.f32 %v1077, %v1076
      %v1079 = vmul.f32 0.5, %v1078
      %v1080 = vsub.f32 1.5, %v1079
      %v1081 = vmul.f32 %v1076, %v1080
      %vm1082 = vweird.f32 %v970
      %vm1083 = vweird.f32 %v1076
      %vm1084 = vmor %vm1082, %vm1083
      %v1085 = vsel %vm1084, %v1076, %v1081
      %v1086 = vrsqrt.pop %v971
      %v1087 = vmul.f32 %v1086, %v971
      %v1088 = vmul.f32 %v1087, %v1086
      %v1089 = vmul.f32 0.5, %v1088
      %v1090 = vsub.f32 1.5, %v1089
      %v1091 = vmul.f32 %v1086, %v1090
      %vm1092 = vweird.f32 %v971
      %vm1093 = vweird.f32 %v1086
      %vm1094 = vmor %vm1092, %vm1093
      %v1095 = vsel %vm1094, %v1086, %v1091
      %v1096 = vrsqrt.pop %v972
      %v1097 = vmul.f32 %v1096, %v972
      %v1098 = vmul.f32 %v1097, %v1096
      %v1099 = vmul.f32 0.5, %v1098
      %v1100 = vsub.f32 1.5, %v1099
      %v1101 = vmul.f32 %v1096, %v1100
      %vm1102 = vweird.f32 %v972
      %vm1103 = vweird.f32 %v1096
      %vm1104 = vmor %vm1102, %vm1103
      %v1105 = vsel %vm1104, %v1096, %v1101
      %v1106 = vrsqrt.pop %v973
      %v1107 = vmul.f32 %v1106, %v973
      %v1108 = vmul.f32 %v1107, %v1106
      %v1109 = vmul.f32 0.5, %v1108
      %v1110 = vsub.f32 1.5, %v1109
      %v1111 = vmul.f32 %v1106, %v1110
      %vm1112 = vweird.f32 %v973
      %vm1113 = vweird.f32 %v1106
      %vm1114 = vmor %vm1112, %vm1113
      %v1115 = vsel %vm1114, %v1106, %v1111
      %v1116 = vrsqrt.pop %v974
      %v1117 = vmul.f32 %v1116, %v974
      %v1118 = vmul.f32 %v1117, %v1116
      %v1119 = vmul.f32 0.5, %v1118
      %v1120 = vsub.f32 1.5, %v1119
      %v1121 = vmul.f32 %v1116, %v1120
      %vm1122 = vweird.f32 %v974
      %vm1123 = vweird.f32 %v1116
      %vm1124 = vmor %vm1122, %vm1123
      %v1125 = vsel %vm1124, %v1116, %v1121
      %v1126 = vrsqrt.pop %v975
      %v1127 = vmul.f32 %v1126, %v975
      %v1128 = vmul.f32 %v1127, %v1126
      %v1129 = vmul.f32 0.5, %v1128
      %v1130 = vsub.f32 1.5, %v1129
      %v1131 = vmul.f32 %v1126, %v1130
      %vm1132 = vweird.f32 %v975
      %vm1133 = vweird.f32 %v1126
      %vm1134 = vmor %vm1132, %vm1133
      %v1135 = vsel %vm1134, %v1126, %v1131
      %v1136 = vmul.f32 %v864, %v985
      %v1137 = vmul.f32 %v865, %v995
      %v1138 = vmul.f32 %v866, %v1005
      %v1139 = vmul.f32 %v867, %v1015
      %v1140 = vmul.f32 %v868, %v1025
      %v1141 = vmul.f32 %v869, %v1035
      %v1142 = vmul.f32 %v870, %v1045
      %v1143 = vmul.f32 %v871, %v1055
      %v1144 = vmul.f32 %v872, %v1065
      %v1145 = vmul.f32 %v873, %v1075
      %v1146 = vmul.f32 %v874, %v1085
      %v1147 = vmul.f32 %v875, %v1095
      %v1148 = vmul.f32 %v876, %v1105
      %v1149 = vmul.f32 %v877, %v1115
      %v1150 = vmul.f32 %v878, %v1125
      %v1151 = vmul.f32 %v879, %v1135
      %v1153 = vperm.slane %v643, 0
      %v1155 = vmul.f32 %v1136, %v1153
      %v1156 = vmul.f32 %v1137, %v1153
      %v1157 = vmul.f32 %v1138, %v1153
      %v1158 = vmul.f32 %v1139, %v1153
      %v1159 = vmul.f32 %v1140, %v1153
      %v1160 = vmul.f32 %v1141, %v1153
      %v1161 = vmul.f32 %v1142, %v1153
      %v1162 = vmul.f32 %v1143, %v1153
      %v1163 = vmul.f32 %v1144, %v1153
      %v1164 = vmul.f32 %v1145, %v1153
      %v1165 = vmul.f32 %v1146, %v1153
      %v1166 = vmul.f32 %v1147, %v1153
      %v1167 = vmul.f32 %v1148, %v1153
      %v1168 = vmul.f32 %v1149, %v1153
      %v1169 = vmul.f32 %v1150, %v1153
      %v1170 = vmul.f32 %v1151, %v1153
      %v1172 = vperm.slane %v644, 0
      %v1174 = vadd.f32 %v1155, %v1172
      %v1175 = vadd.f32 %v1156, %v1172
      %v1176 = vadd.f32 %v1157, %v1172
      %v1177 = vadd.f32 %v1158, %v1172
      %v1178 = vadd.f32 %v1159, %v1172
      %v1179 = vadd.f32 %v1160, %v1172
      %v1180 = vadd.f32 %v1161, %v1172
      %v1181 = vadd.f32 %v1162, %v1172
      %v1182 = vadd.f32 %v1163, %v1172
      %v1183 = vadd.f32 %v1164, %v1172
      %v1184 = vadd.f32 %v1165, %v1172
      %v1185 = vadd.f32 %v1166, %v1172
      %v1186 = vadd.f32 %v1167, %v1172
      %v1187 = vadd.f32 %v1168, %v1172
      %v1188 = vadd.f32 %v1169, %v1172
      %v1189 = vadd.f32 %v1170, %v1172
      %v1191 = vperm.slane %v649, 0
      %v1194 = vsel %vm524, %v1174, 0
      %v1197 = vsel %vm524, %v1175, 0
      %v1200 = vsel %vm524, %v1176, 0
      %v1203 = vsel %vm524, %v1177, 0
      %v1206 = vsel %vm524, %v1178, 0
      %v1209 = vsel %vm524, %v1179, 0
      %v1212 = vsel %vm524, %v1180, 0
      %v1215 = vsel %vm524, %v1181, 0
      %v1218 = vsel %vm524, %v1182, 0
      %v1221 = vsel %vm524, %v1183, 0
      %v1224 = vsel %vm524, %v1184, 0
      %v1227 = vsel %vm524, %v1185, 0
      %v1230 = vsel %vm524, %v1186, 0
      %v1233 = vsel %vm524, %v1187, 0
      %v1236 = vsel %vm524, %v1188, 0
      %v1239 = vsel %vm524, %v1189, 0
      %1241 = vmatpush.msra.mxu0 0.0
      %1242 = vmatpush.msra.mxu0 0.0
      %1243 = vmatpush.msra.mxu0 0.0
      %1244 = vmatpush.msra.mxu0 0.0
      %1245 = vmatpush.msra.mxu0 0.0
      %1246 = vmatpush.msra.mxu0 0.0
      %1247 = vmatpush.msra.mxu0 0.0
      %1248 = vmatpush.msra.mxu0 0.0
      %1249 = vmatpush.msra.mxu0 0.0
      %1250 = vmatpush.msra.mxu0 0.0
      %1251 = vmatpush.msra.mxu0 0.0
      %1252 = vmatpush.msra.mxu0 0.0
      %1253 = vmatpush.msra.mxu0 %v648
      %1254 = vmatpush.msra.mxu0 %v647
      %1255 = vmatpush.msra.mxu0 %v646
      %1256 = vmatpush.msra.mxu0 %v645
      %1257 = vmatmul.f32.gmra.mxu0 %v1194
      %v1258 = vpop.f32.mrf.mxu0
      %v1259 = vadd.f32 %v1191, %v1258
      %1260 = vmatmul.f32.gmra.mxu0 %v1197
      %v1261 = vpop.f32.mrf.mxu0
      %v1262 = vadd.f32 %v1191, %v1261
      %1263 = vmatmul.f32.gmra.mxu0 %v1200
      %v1264 = vpop.f32.mrf.mxu0
      %v1265 = vadd.f32 %v1191, %v1264
      %1266 = vmatmul.f32.gmra.mxu0 %v1203
      %v1267 = vpop.f32.mrf.mxu0
      %v1268 = vadd.f32 %v1191, %v1267
      %1269 = vmatmul.f32.gmra.mxu0 %v1206
      %v1270 = vpop.f32.mrf.mxu0
      %v1271 = vadd.f32 %v1191, %v1270
      %1272 = vmatmul.f32.gmra.mxu0 %v1209
      %v1273 = vpop.f32.mrf.mxu0
      %v1274 = vadd.f32 %v1191, %v1273
      %1275 = vmatmul.f32.gmra.mxu0 %v1212
      %v1276 = vpop.f32.mrf.mxu0
      %v1277 = vadd.f32 %v1191, %v1276
      %1278 = vmatmul.f32.gmra.mxu0 %v1215
      %v1279 = vpop.f32.mrf.mxu0
      %v1280 = vadd.f32 %v1191, %v1279
      %1281 = vmatmul.f32.gmra.mxu0 %v1218
      %v1282 = vpop.f32.mrf.mxu0
      %v1283 = vadd.f32 %v1191, %v1282
      %1284 = vmatmul.f32.gmra.mxu0 %v1221
      %v1285 = vpop.f32.mrf.mxu0
      %v1286 = vadd.f32 %v1191, %v1285
      %1287 = vmatmul.f32.gmra.mxu0 %v1224
      %v1288 = vpop.f32.mrf.mxu0
      %v1289 = vadd.f32 %v1191, %v1288
      %1290 = vmatmul.f32.gmra.mxu0 %v1227
      %v1291 = vpop.f32.mrf.mxu0
      %v1292 = vadd.f32 %v1191, %v1291
      %1293 = vmatmul.f32.gmra.mxu0 %v1230
      %v1294 = vpop.f32.mrf.mxu0
      %v1295 = vadd.f32 %v1191, %v1294
      %1296 = vmatmul.f32.gmra.mxu0 %v1233
      %v1297 = vpop.f32.mrf.mxu0
      %v1298 = vadd.f32 %v1191, %v1297
      %1299 = vmatmul.f32.gmra.mxu0 %v1236
      %v1300 = vpop.f32.mrf.mxu0
      %v1301 = vadd.f32 %v1191, %v1300
      %1302 = vmatmul.f32.gmra.mxu0 %v1239
      %v1303 = vpop.f32.mrf.mxu0
      %v1304 = vadd.f32 %v1191, %v1303
      %1305 = vdwg.mxu0
      %v1306 = vmax.f32 %v1259, 0.0
      %v1307 = vmax.f32 %v1262, 0.0
      %v1308 = vmax.f32 %v1265, 0.0
      %v1309 = vmax.f32 %v1268, 0.0
      %v1310 = vmax.f32 %v1271, 0.0
      %v1311 = vmax.f32 %v1274, 0.0
      %v1312 = vmax.f32 %v1277, 0.0
      %v1313 = vmax.f32 %v1280, 0.0
      %v1314 = vmax.f32 %v1283, 0.0
      %v1315 = vmax.f32 %v1286, 0.0
      %v1316 = vmax.f32 %v1289, 0.0
      %v1317 = vmax.f32 %v1292, 0.0
      %v1318 = vmax.f32 %v1295, 0.0
      %v1319 = vmax.f32 %v1298, 0.0
      %v1320 = vmax.f32 %v1301, 0.0
      %v1321 = vmax.f32 %v1304, 0.0
      %v1323 = vperm.slane %v658, 0
      %vm1325 = vcmask 523264
      %v1327 = vsel %vm1325, %v1306, 0
      %v1330 = vsel %vm1325, %v1307, 0
      %v1333 = vsel %vm1325, %v1308, 0
      %v1336 = vsel %vm1325, %v1309, 0
      %v1339 = vsel %vm1325, %v1310, 0
      %v1342 = vsel %vm1325, %v1311, 0
      %v1345 = vsel %vm1325, %v1312, 0
      %v1348 = vsel %vm1325, %v1313, 0
      %v1351 = vsel %vm1325, %v1314, 0
      %v1354 = vsel %vm1325, %v1315, 0
      %v1357 = vsel %vm1325, %v1316, 0
      %v1360 = vsel %vm1325, %v1317, 0
      %v1363 = vsel %vm1325, %v1318, 0
      %v1366 = vsel %vm1325, %v1319, 0
      %v1369 = vsel %vm1325, %v1320, 0
      %v1372 = vsel %vm1325, %v1321, 0
      %1374 = vmatpush.msra.mxu0 0.0
      %1375 = vmatpush.msra.mxu0 0.0
      %1376 = vmatpush.msra.mxu0 0.0
      %1377 = vmatpush.msra.mxu0 0.0
      %1378 = vmatpush.msra.mxu0 0.0
      %1379 = vmatpush.msra.mxu0 0.0
      %1380 = vmatpush.msra.mxu0 0.0
      %1381 = vmatpush.msra.mxu0 0.0
      %1382 = vmatpush.msra.mxu0 %v657
      %1383 = vmatpush.msra.mxu0 %v656
      %1384 = vmatpush.msra.mxu0 %v655
      %1385 = vmatpush.msra.mxu0 %v654
      %1386 = vmatpush.msra.mxu0 %v653
      %1387 = vmatpush.msra.mxu0 %v652
      %1388 = vmatpush.msra.mxu0 %v651
      %1389 = vmatpush.msra.mxu0 %v650
      %1390 = vmatmul.f32.gmra.mxu0 %v1327
      %v1391 = vpop.f32.mrf.mxu0
      %v1392 = vadd.f32 %v1323, %v1391
      %1393 = vmatmul.f32.gmra.mxu0 %v1330
      %v1394 = vpop.f32.mrf.mxu0
      %v1395 = vadd.f32 %v1323, %v1394
      %1396 = vmatmul.f32.gmra.mxu0 %v1333
      %v1397 = vpop.f32.mrf.mxu0
      %v1398 = vadd.f32 %v1323, %v1397
      %1399 = vmatmul.f32.gmra.mxu0 %v1336
      %v1400 = vpop.f32.mrf.mxu0
      %v1401 = vadd.f32 %v1323, %v1400
      %1402 = vmatmul.f32.gmra.mxu0 %v1339
      %v1403 = vpop.f32.mrf.mxu0
      %v1404 = vadd.f32 %v1323, %v1403
      %1405 = vmatmul.f32.gmra.mxu0 %v1342
      %v1406 = vpop.f32.mrf.mxu0
      %v1407 = vadd.f32 %v1323, %v1406
      %1408 = vmatmul.f32.gmra.mxu0 %v1345
      %v1409 = vpop.f32.mrf.mxu0
      %v1410 = vadd.f32 %v1323, %v1409
      %1411 = vmatmul.f32.gmra.mxu0 %v1348
      %v1412 = vpop.f32.mrf.mxu0
      %v1413 = vadd.f32 %v1323, %v1412
      %1414 = vmatmul.f32.gmra.mxu0 %v1351
      %v1415 = vpop.f32.mrf.mxu0
      %v1416 = vadd.f32 %v1323, %v1415
      %1417 = vmatmul.f32.gmra.mxu0 %v1354
      %v1418 = vpop.f32.mrf.mxu0
      %v1419 = vadd.f32 %v1323, %v1418
      %1420 = vmatmul.f32.gmra.mxu0 %v1357
      %v1421 = vpop.f32.mrf.mxu0
      %v1422 = vadd.f32 %v1323, %v1421
      %1423 = vmatmul.f32.gmra.mxu0 %v1360
      %v1424 = vpop.f32.mrf.mxu0
      %v1425 = vadd.f32 %v1323, %v1424
      %1426 = vmatmul.f32.gmra.mxu0 %v1363
      %v1427 = vpop.f32.mrf.mxu0
      %v1428 = vadd.f32 %v1323, %v1427
      %1429 = vmatmul.f32.gmra.mxu0 %v1366
      %v1430 = vpop.f32.mrf.mxu0
      %v1431 = vadd.f32 %v1323, %v1430
      %1432 = vmatmul.f32.gmra.mxu0 %v1369
      %v1433 = vpop.f32.mrf.mxu0
      %v1434 = vadd.f32 %v1323, %v1433
      %1435 = vmatmul.f32.gmra.mxu0 %v1372
      %v1436 = vpop.f32.mrf.mxu0
      %v1437 = vadd.f32 %v1323, %v1436
      %1438 = vdwg.mxu0
      %v1439 = vadd.f32 %v1174, %v1392
      %v1440 = vadd.f32 %v1175, %v1395
      %v1441 = vadd.f32 %v1176, %v1398
      %v1442 = vadd.f32 %v1177, %v1401
      %v1443 = vadd.f32 %v1178, %v1404
      %v1444 = vadd.f32 %v1179, %v1407
      %v1445 = vadd.f32 %v1180, %v1410
      %v1446 = vadd.f32 %v1181, %v1413
      %v1447 = vadd.f32 %v1182, %v1416
      %v1448 = vadd.f32 %v1183, %v1419
      %v1449 = vadd.f32 %v1184, %v1422
      %v1450 = vadd.f32 %v1185, %v1425
      %v1451 = vadd.f32 %v1186, %v1428
      %v1452 = vadd.f32 %v1187, %v1431
      %v1453 = vadd.f32 %v1188, %v1434
      %v1454 = vadd.f32 %v1189, %v1437
      %v1455 = vsel %vm524, %v1439, 0.0
      %1456 = vadd.xlane.f32.xlu0 %v1455
      %v1457 = vpop.xlane.xlu0 %1456
      %v1458 = vsel %vm524, %v1440, 0.0
      %1459 = vadd.xlane.f32.xlu0 %v1458
      %v1460 = vpop.xlane.xlu0 %1459
      %v1461 = vsel %vm524, %v1441, 0.0
      %1462 = vadd.xlane.f32.xlu0 %v1461
      %v1463 = vpop.xlane.xlu0 %1462
      %v1464 = vsel %vm524, %v1442, 0.0
      %1465 = vadd.xlane.f32.xlu0 %v1464
      %v1466 = vpop.xlane.xlu0 %1465
      %v1467 = vsel %vm524, %v1443, 0.0
      %1468 = vadd.xlane.f32.xlu0 %v1467
      %v1469 = vpop.xlane.xlu0 %1468
      %v1470 = vsel %vm524, %v1444, 0.0
      %1471 = vadd.xlane.f32.xlu0 %v1470
      %v1472 = vpop.xlane.xlu0 %1471
      %v1473 = vsel %vm524, %v1445, 0.0
      %1474 = vadd.xlane.f32.xlu0 %v1473
      %v1475 = vpop.xlane.xlu0 %1474
      %v1476 = vsel %vm524, %v1446, 0.0
      %1477 = vadd.xlane.f32.xlu0 %v1476
      %v1478 = vpop.xlane.xlu0 %1477
      %v1479 = vsel %vm524, %v1447, 0.0
      %1480 = vadd.xlane.f32.xlu0 %v1479
      %v1481 = vpop.xlane.xlu0 %1480
      %v1482 = vsel %vm524, %v1448, 0.0
      %1483 = vadd.xlane.f32.xlu0 %v1482
      %v1484 = vpop.xlane.xlu0 %1483
      %v1485 = vsel %vm524, %v1449, 0.0
      %1486 = vadd.xlane.f32.xlu0 %v1485
      %v1487 = vpop.xlane.xlu0 %1486
      %v1488 = vsel %vm524, %v1450, 0.0
      %1489 = vadd.xlane.f32.xlu0 %v1488
      %v1490 = vpop.xlane.xlu0 %1489
      %v1491 = vsel %vm524, %v1451, 0.0
      %1492 = vadd.xlane.f32.xlu0 %v1491
      %v1493 = vpop.xlane.xlu0 %1492
      %v1494 = vsel %vm524, %v1452, 0.0
      %1495 = vadd.xlane.f32.xlu0 %v1494
      %v1496 = vpop.xlane.xlu0 %1495
      %v1497 = vsel %vm524, %v1453, 0.0
      %1498 = vadd.xlane.f32.xlu0 %v1497
      %v1499 = vpop.xlane.xlu0 %1498
      %v1500 = vsel %vm524, %v1454, 0.0
      %1501 = vadd.xlane.f32.xlu0 %v1500
      %v1502 = vpop.xlane.xlu0 %1501
      %v1503 = vmul.f32 %v1457, %v847
      %v1504 = vmul.f32 %v1460, %v847
      %v1505 = vmul.f32 %v1463, %v847
      %v1506 = vmul.f32 %v1466, %v847
      %v1507 = vmul.f32 %v1469, %v847
      %v1508 = vmul.f32 %v1472, %v847
      %v1509 = vmul.f32 %v1475, %v847
      %v1510 = vmul.f32 %v1478, %v847
      %v1511 = vmul.f32 %v1481, %v847
      %v1512 = vmul.f32 %v1484, %v847
      %v1513 = vmul.f32 %v1487, %v847
      %v1514 = vmul.f32 %v1490, %v847
      %v1515 = vmul.f32 %v1493, %v847
      %v1516 = vmul.f32 %v1496, %v847
      %v1517 = vmul.f32 %v1499, %v847
      %v1518 = vmul.f32 %v1502, %v847
      %v1519 = vsub.f32 %v1439, %v1503
      %v1520 = vsub.f32 %v1440, %v1504
      %v1521 = vsub.f32 %v1441, %v1505
      %v1522 = vsub.f32 %v1442, %v1506
      %v1523 = vsub.f32 %v1443, %v1507
      %v1524 = vsub.f32 %v1444, %v1508
      %v1525 = vsub.f32 %v1445, %v1509
      %v1526 = vsub.f32 %v1446, %v1510
      %v1527 = vsub.f32 %v1447, %v1511
      %v1528 = vsub.f32 %v1448, %v1512
      %v1529 = vsub.f32 %v1449, %v1513
      %v1530 = vsub.f32 %v1450, %v1514
      %v1531 = vsub.f32 %v1451, %v1515
      %v1532 = vsub.f32 %v1452, %v1516
      %v1533 = vsub.f32 %v1453, %v1517
      %v1534 = vsub.f32 %v1454, %v1518
      %v1535 = vmul.f32 %v1519, %v1519
      %v1536 = vmul.f32 %v1520, %v1520
      %v1537 = vmul.f32 %v1521, %v1521
      %v1538 = vmul.f32 %v1522, %v1522
      %v1539 = vmul.f32 %v1523, %v1523
      %v1540 = vmul.f32 %v1524, %v1524
      %v1541 = vmul.f32 %v1525, %v1525
      %v1542 = vmul.f32 %v1526, %v1526
      %v1543 = vmul.f32 %v1527, %v1527
      %v1544 = vmul.f32 %v1528, %v1528
      %v1545 = vmul.f32 %v1529, %v1529
      %v1546 = vmul.f32 %v1530, %v1530
      %v1547 = vmul.f32 %v1531, %v1531
      %v1548 = vmul.f32 %v1532, %v1532
      %v1549 = vmul.f32 %v1533, %v1533
      %v1550 = vmul.f32 %v1534, %v1534
      %v1551 = vsel %vm524, %v1535, 0.0
      %1552 = vadd.xlane.f32.xlu0 %v1551
      %v1553 = vpop.xlane.xlu0 %1552
      %v1554 = vsel %vm524, %v1536, 0.0
      %1555 = vadd.xlane.f32.xlu0 %v1554
      %v1556 = vpop.xlane.xlu0 %1555
      %v1557 = vsel %vm524, %v1537, 0.0
      %1558 = vadd.xlane.f32.xlu0 %v1557
      %v1559 = vpop.xlane.xlu0 %1558
      %v1560 = vsel %vm524, %v1538, 0.0
      %1561 = vadd.xlane.f32.xlu0 %v1560
      %v1562 = vpop.xlane.xlu0 %1561
      %v1563 = vsel %vm524, %v1539, 0.0
      %1564 = vadd.xlane.f32.xlu0 %v1563
      %v1565 = vpop.xlane.xlu0 %1564
      %v1566 = vsel %vm524, %v1540, 0.0
      %1567 = vadd.xlane.f32.xlu0 %v1566
      %v1568 = vpop.xlane.xlu0 %1567
      %v1569 = vsel %vm524, %v1541, 0.0
      %1570 = vadd.xlane.f32.xlu0 %v1569
      %v1571 = vpop.xlane.xlu0 %1570
      %v1572 = vsel %vm524, %v1542, 0.0
      %1573 = vadd.xlane.f32.xlu0 %v1572
      %v1574 = vpop.xlane.xlu0 %1573
      %v1575 = vsel %vm524, %v1543, 0.0
      %1576 = vadd.xlane.f32.xlu0 %v1575
      %v1577 = vpop.xlane.xlu0 %1576
      %v1578 = vsel %vm524, %v1544, 0.0
      %1579 = vadd.xlane.f32.xlu0 %v1578
      %v1580 = vpop.xlane.xlu0 %1579
      %v1581 = vsel %vm524, %v1545, 0.0
      %1582 = vadd.xlane.f32.xlu0 %v1581
      %v1583 = vpop.xlane.xlu0 %1582
      %v1584 = vsel %vm524, %v1546, 0.0
      %1585 = vadd.xlane.f32.xlu0 %v1584
      %v1586 = vpop.xlane.xlu0 %1585
      %v1587 = vsel %vm524, %v1547, 0.0
      %1588 = vadd.xlane.f32.xlu0 %v1587
      %v1589 = vpop.xlane.xlu0 %1588
      %v1590 = vsel %vm524, %v1548, 0.0
      %1591 = vadd.xlane.f32.xlu0 %v1590
      %v1592 = vpop.xlane.xlu0 %1591
      %v1593 = vsel %vm524, %v1549, 0.0
      %1594 = vadd.xlane.f32.xlu0 %v1593
      %v1595 = vpop.xlane.xlu0 %1594
      %v1596 = vsel %vm524, %v1550, 0.0
      %1597 = vadd.xlane.f32.xlu0 %v1596
      %v1598 = vpop.xlane.xlu0 %1597
      %v1599 = vmul.f32 %v1553, %v847
      %v1600 = vmul.f32 %v1556, %v847
      %v1601 = vmul.f32 %v1559, %v847
      %v1602 = vmul.f32 %v1562, %v847
      %v1603 = vmul.f32 %v1565, %v847
      %v1604 = vmul.f32 %v1568, %v847
      %v1605 = vmul.f32 %v1571, %v847
      %v1606 = vmul.f32 %v1574, %v847
      %v1607 = vmul.f32 %v1577, %v847
      %v1608 = vmul.f32 %v1580, %v847
      %v1609 = vmul.f32 %v1583, %v847
      %v1610 = vmul.f32 %v1586, %v847
      %v1611 = vmul.f32 %v1589, %v847
      %v1612 = vmul.f32 %v1592, %v847
      %v1613 = vmul.f32 %v1595, %v847
      %v1614 = vmul.f32 %v1598, %v847
      %v1615 = vadd.f32 %v1599, 1e-05
      %v1616 = vadd.f32 %v1600, 1e-05
      %v1617 = vadd.f32 %v1601, 1e-05
      %v1618 = vadd.f32 %v1602, 1e-05
      %v1619 = vadd.f32 %v1603, 1e-05
      %v1620 = vadd.f32 %v1604, 1e-05
      %v1621 = vadd.f32 %v1605, 1e-05
      %v1622 = vadd.f32 %v1606, 1e-05
      %v1623 = vadd.f32 %v1607, 1e-05
      %v1624 = vadd.f32 %v1608, 1e-05
      %v1625 = vadd.f32 %v1609, 1e-05
      %v1626 = vadd.f32 %v1610, 1e-05
      %v1627 = vadd.f32 %v1611, 1e-05
      %v1628 = vadd.f32 %v1612, 1e-05
      %v1629 = vadd.f32 %v1613, 1e-05
      %v1630 = vadd.f32 %v1614, 1e-05
      %v1631 = vrsqrt.pop %v1615
      %v1632 = vmul.f32 %v1631, %v1615
      %v1633 = vmul.f32 %v1632, %v1631
      %v1634 = vmul.f32 0.5, %v1633
      %v1635 = vsub.f32 1.5, %v1634
      %v1636 = vmul.f32 %v1631, %v1635
      %vm1637 = vweird.f32 %v1615
      %vm1638 = vweird.f32 %v1631
      %vm1639 = vmor %vm1637, %vm1638
      %v1640 = vsel %vm1639, %v1631, %v1636
      %v1641 = vrsqrt.pop %v1616
      %v1642 = vmul.f32 %v1641, %v1616
      %v1643 = vmul.f32 %v1642, %v1641
      %v1644 = vmul.f32 0.5, %v1643
      %v1645 = vsub.f32 1.5, %v1644
      %v1646 = vmul.f32 %v1641, %v1645
      %vm1647 = vweird.f32 %v1616
      %vm1648 = vweird.f32 %v1641
      %vm1649 = vmor %vm1647, %vm1648
      %v1650 = vsel %vm1649, %v1641, %v1646
      %v1651 = vrsqrt.pop %v1617
      %v1652 = vmul.f32 %v1651, %v1617
      %v1653 = vmul.f32 %v1652, %v1651
      %v1654 = vmul.f32 0.5, %v1653
      %v1655 = vsub.f32 1.5, %v1654
      %v1656 = vmul.f32 %v1651, %v1655
      %vm1657 = vweird.f32 %v1617
      %vm1658 = vweird.f32 %v1651
      %vm1659 = vmor %vm1657, %vm1658
      %v1660 = vsel %vm1659, %v1651, %v1656
      %v1661 = vrsqrt.pop %v1618
      %v1662 = vmul.f32 %v1661, %v1618
      %v1663 = vmul.f32 %v1662, %v1661
      %v1664 = vmul.f32 0.5, %v1663
      %v1665 = vsub.f32 1.5, %v1664
      %v1666 = vmul.f32 %v1661, %v1665
      %vm1667 = vweird.f32 %v1618
      %vm1668 = vweird.f32 %v1661
      %vm1669 = vmor %vm1667, %vm1668
      %v1670 = vsel %vm1669, %v1661, %v1666
      %v1671 = vrsqrt.pop %v1619
      %v1672 = vmul.f32 %v1671, %v1619
      %v1673 = vmul.f32 %v1672, %v1671
      %v1674 = vmul.f32 0.5, %v1673
      %v1675 = vsub.f32 1.5, %v1674
      %v1676 = vmul.f32 %v1671, %v1675
      %vm1677 = vweird.f32 %v1619
      %vm1678 = vweird.f32 %v1671
      %vm1679 = vmor %vm1677, %vm1678
      %v1680 = vsel %vm1679, %v1671, %v1676
      %v1681 = vrsqrt.pop %v1620
      %v1682 = vmul.f32 %v1681, %v1620
      %v1683 = vmul.f32 %v1682, %v1681
      %v1684 = vmul.f32 0.5, %v1683
      %v1685 = vsub.f32 1.5, %v1684
      %v1686 = vmul.f32 %v1681, %v1685
      %vm1687 = vweird.f32 %v1620
      %vm1688 = vweird.f32 %v1681
      %vm1689 = vmor %vm1687, %vm1688
      %v1690 = vsel %vm1689, %v1681, %v1686
      %v1691 = vrsqrt.pop %v1621
      %v1692 = vmul.f32 %v1691, %v1621
      %v1693 = vmul.f32 %v1692, %v1691
      %v1694 = vmul.f32 0.5, %v1693
      %v1695 = vsub.f32 1.5, %v1694
      %v1696 = vmul.f32 %v1691, %v1695
      %vm1697 = vweird.f32 %v1621
      %vm1698 = vweird.f32 %v1691
      %vm1699 = vmor %vm1697, %vm1698
      %v1700 = vsel %vm1699, %v1691, %v1696
      %v1701 = vrsqrt.pop %v1622
      %v1702 = vmul.f32 %v1701, %v1622
      %v1703 = vmul.f32 %v1702, %v1701
      %v1704 = vmul.f32 0.5, %v1703
      %v1705 = vsub.f32 1.5, %v1704
      %v1706 = vmul.f32 %v1701, %v1705
      %vm1707 = vweird.f32 %v1622
      %vm1708 = vweird.f32 %v1701
      %vm1709 = vmor %vm1707, %vm1708
      %v1710 = vsel %vm1709, %v1701, %v1706
      %v1711 = vrsqrt.pop %v1623
      %v1712 = vmul.f32 %v1711, %v1623
      %v1713 = vmul.f32 %v1712, %v1711
      %v1714 = vmul.f32 0.5, %v1713
      %v1715 = vsub.f32 1.5, %v1714
      %v1716 = vmul.f32 %v1711, %v1715
      %vm1717 = vweird.f32 %v1623
      %vm1718 = vweird.f32 %v1711
      %vm1719 = vmor %vm1717, %vm1718
      %v1720 = vsel %vm1719, %v1711, %v1716
      %v1721 = vrsqrt.pop %v1624
      %v1722 = vmul.f32 %v1721, %v1624
      %v1723 = vmul.f32 %v1722, %v1721
      %v1724 = vmul.f32 0.5, %v1723
      %v1725 = vsub.f32 1.5, %v1724
      %v1726 = vmul.f32 %v1721, %v1725
      %vm1727 = vweird.f32 %v1624
      %vm1728 = vweird.f32 %v1721
      %vm1729 = vmor %vm1727, %vm1728
      %v1730 = vsel %vm1729, %v1721, %v1726
      %v1731 = vrsqrt.pop %v1625
      %v1732 = vmul.f32 %v1731, %v1625
      %v1733 = vmul.f32 %v1732, %v1731
      %v1734 = vmul.f32 0.5, %v1733
      %v1735 = vsub.f32 1.5, %v1734
      %v1736 = vmul.f32 %v1731, %v1735
      %vm1737 = vweird.f32 %v1625
      %vm1738 = vweird.f32 %v1731
      %vm1739 = vmor %vm1737, %vm1738
      %v1740 = vsel %vm1739, %v1731, %v1736
      %v1741 = vrsqrt.pop %v1626
      %v1742 = vmul.f32 %v1741, %v1626
      %v1743 = vmul.f32 %v1742, %v1741
      %v1744 = vmul.f32 0.5, %v1743
      %v1745 = vsub.f32 1.5, %v1744
      %v1746 = vmul.f32 %v1741, %v1745
      %vm1747 = vweird.f32 %v1626
      %vm1748 = vweird.f32 %v1741
      %vm1749 = vmor %vm1747, %vm1748
      %v1750 = vsel %vm1749, %v1741, %v1746
      %v1751 = vrsqrt.pop %v1627
      %v1752 = vmul.f32 %v1751, %v1627
      %v1753 = vmul.f32 %v1752, %v1751
      %v1754 = vmul.f32 0.5, %v1753
      %v1755 = vsub.f32 1.5, %v1754
      %v1756 = vmul.f32 %v1751, %v1755
      %vm1757 = vweird.f32 %v1627
      %vm1758 = vweird.f32 %v1751
      %vm1759 = vmor %vm1757, %vm1758
      %v1760 = vsel %vm1759, %v1751, %v1756
      %v1761 = vrsqrt.pop %v1628
      %v1762 = vmul.f32 %v1761, %v1628
      %v1763 = vmul.f32 %v1762, %v1761
      %v1764 = vmul.f32 0.5, %v1763
      %v1765 = vsub.f32 1.5, %v1764
      %v1766 = vmul.f32 %v1761, %v1765
      %vm1767 = vweird.f32 %v1628
      %vm1768 = vweird.f32 %v1761
      %vm1769 = vmor %vm1767, %vm1768
      %v1770 = vsel %vm1769, %v1761, %v1766
      %v1771 = vrsqrt.pop %v1629
      %v1772 = vmul.f32 %v1771, %v1629
      %v1773 = vmul.f32 %v1772, %v1771
      %v1774 = vmul.f32 0.5, %v1773
      %v1775 = vsub.f32 1.5, %v1774
      %v1776 = vmul.f32 %v1771, %v1775
      %vm1777 = vweird.f32 %v1629
      %vm1778 = vweird.f32 %v1771
      %vm1779 = vmor %vm1777, %vm1778
      %v1780 = vsel %vm1779, %v1771, %v1776
      %v1781 = vrsqrt.pop %v1630
      %v1782 = vmul.f32 %v1781, %v1630
      %v1783 = vmul.f32 %v1782, %v1781
      %v1784 = vmul.f32 0.5, %v1783
      %v1785 = vsub.f32 1.5, %v1784
      %v1786 = vmul.f32 %v1781, %v1785
      %vm1787 = vweird.f32 %v1630
      %vm1788 = vweird.f32 %v1781
      %vm1789 = vmor %vm1787, %vm1788
      %v1790 = vsel %vm1789, %v1781, %v1786
      %v1791 = vmul.f32 %v1519, %v1640
      %v1792 = vmul.f32 %v1520, %v1650
      %v1793 = vmul.f32 %v1521, %v1660
      %v1794 = vmul.f32 %v1522, %v1670
      %v1795 = vmul.f32 %v1523, %v1680
      %v1796 = vmul.f32 %v1524, %v1690
      %v1797 = vmul.f32 %v1525, %v1700
      %v1798 = vmul.f32 %v1526, %v1710
      %v1799 = vmul.f32 %v1527, %v1720
      %v1800 = vmul.f32 %v1528, %v1730
      %v1801 = vmul.f32 %v1529, %v1740
      %v1802 = vmul.f32 %v1530, %v1750
      %v1803 = vmul.f32 %v1531, %v1760
      %v1804 = vmul.f32 %v1532, %v1770
      %v1805 = vmul.f32 %v1533, %v1780
      %v1806 = vmul.f32 %v1534, %v1790
      %v1808 = vperm.slane %v659, 0
      %v1810 = vmul.f32 %v1791, %v1808
      %v1811 = vmul.f32 %v1792, %v1808
      %v1812 = vmul.f32 %v1793, %v1808
      %v1813 = vmul.f32 %v1794, %v1808
      %v1814 = vmul.f32 %v1795, %v1808
      %v1815 = vmul.f32 %v1796, %v1808
      %v1816 = vmul.f32 %v1797, %v1808
      %v1817 = vmul.f32 %v1798, %v1808
      %v1818 = vmul.f32 %v1799, %v1808
      %v1819 = vmul.f32 %v1800, %v1808
      %v1820 = vmul.f32 %v1801, %v1808
      %v1821 = vmul.f32 %v1802, %v1808
      %v1822 = vmul.f32 %v1803, %v1808
      %v1823 = vmul.f32 %v1804, %v1808
      %v1824 = vmul.f32 %v1805, %v1808
      %v1825 = vmul.f32 %v1806, %v1808
      %v1827 = vperm.slane %v660, 0
      %v1829 = vadd.f32 %v1810, %v1827
      %v1830 = vadd.f32 %v1811, %v1827
      %v1831 = vadd.f32 %v1812, %v1827
      %v1832 = vadd.f32 %v1813, %v1827
      %v1833 = vadd.f32 %v1814, %v1827
      %v1834 = vadd.f32 %v1815, %v1827
      %v1835 = vadd.f32 %v1816, %v1827
      %v1836 = vadd.f32 %v1817, %v1827
      %v1837 = vadd.f32 %v1818, %v1827
      %v1838 = vadd.f32 %v1819, %v1827
      %v1839 = vadd.f32 %v1820, %v1827
      %v1840 = vadd.f32 %v1821, %v1827
      %v1841 = vadd.f32 %v1822, %v1827
      %v1842 = vadd.f32 %v1823, %v1827
      %v1843 = vadd.f32 %v1824, %v1827
      %v1844 = vadd.f32 %v1825, %v1827
      %s1845 = scalar_lea.vmem %s3, 32
      %v1846 = vld [vmem:[%s1845] sm:$0xff]
      %v1847 = vld [vmem:[%s1845 + $0x8] sm:$0xff]
      %v1848 = vld [vmem:[%s1845 + $0x10] sm:$0xff]
      %v1849 = vld [vmem:[%s1845 + $0x18] sm:$0xff]
      %s1850 = scalar_lea.vmem %s4, 1
      %v1851 = vld [vmem:[%s1850] sm:$0x1]
      %s1852 = scalar_lea.vmem %s5, 1
      %v1853 = vld [vmem:[%s1852] sm:$0x1]
      %s1854 = scalar_lea.vmem %s6, 1
      %v1855 = vld [vmem:[%s1854] sm:$0x1]
      %s1856 = scalar_lea.vmem %s7, 32
      %v1857 = vld [vmem:[%s1856] sm:$0xff]
      %v1858 = vld [vmem:[%s1856 + $0x8] sm:$0xff]
      %v1859 = vld [vmem:[%s1856 + $0x10] sm:$0xff]
      %v1860 = vld [vmem:[%s1856 + $0x18] sm:$0xff]
      %s1861 = scalar_lea.vmem %s8, 1
      %v1862 = vld [vmem:[%s1861] sm:$0x1]
      %s1863 = scalar_lea.vmem %s9, 64
      %v1864 = vld [vmem:[%s1863] sm:$0xff]
      %v1865 = vld [vmem:[%s1863 + $0x8] sm:$0xff]
      %v1866 = vld [vmem:[%s1863 + $0x10] sm:$0xff]
      %v1867 = vld [vmem:[%s1863 + $0x18] sm:$0xff]
      %v1868 = vld [vmem:[%s1863 + $0x20] sm:$0xff]
      %v1869 = vld [vmem:[%s1863 + $0x28] sm:$0xff]
      %v1870 = vld [vmem:[%s1863 + $0x30] sm:$0xff]
      %v1871 = vld [vmem:[%s1863 + $0x38] sm:$0xff]
      %s1872 = scalar_lea.vmem %s10, 1
      %v1873 = vld [vmem:[%s1872] sm:$0x1]
      %s1874 = scalar_lea.vmem %s11, 1
      %v1875 = vld [vmem:[%s1874] sm:$0x1]
      %s1876 = scalar_lea.vmem %s12, 1
      %v1877 = vld [vmem:[%s1876] sm:$0x1]
      %v1879 = vperm.slane %v1851, 0
      %v1882 = vsel %vm524, %v1829, 0
      %v1885 = vsel %vm524, %v1830, 0
      %v1888 = vsel %vm524, %v1831, 0
      %v1891 = vsel %vm524, %v1832, 0
      %v1894 = vsel %vm524, %v1833, 0
      %v1897 = vsel %vm524, %v1834, 0
      %v1900 = vsel %vm524, %v1835, 0
      %v1903 = vsel %vm524, %v1836, 0
      %v1906 = vsel %vm524, %v1837, 0
      %v1909 = vsel %vm524, %v1838, 0
      %v1912 = vsel %vm524, %v1839, 0
      %v1915 = vsel %vm524, %v1840, 0
      %v1918 = vsel %vm524, %v1841, 0
      %v1921 = vsel %vm524, %v1842, 0
      %v1924 = vsel %vm524, %v1843, 0
      %v1927 = vsel %vm524, %v1844, 0
      %1929 = vmatpush.msra.mxu0 0.0
      %1930 = vmatpush.msra.mxu0 0.0
      %1931 = vmatpush.msra.mxu0 0.0
      %1932 = vmatpush.msra.mxu0 0.0
      %1933 = vmatpush.msra.mxu0 0.0
      %1934 = vmatpush.msra.mxu0 0.0
      %1935 = vmatpush.msra.mxu0 0.0
      %1936 = vmatpush.msra.mxu0 0.0
      %1937 = vmatpush.msra.mxu0 0.0
      %1938 = vmatpush.msra.mxu0 0.0
      %1939 = vmatpush.msra.mxu0 0.0
      %1940 = vmatpush.msra.mxu0 0.0
      %1941 = vmatpush.msra.mxu0 %v1849
      %1942 = vmatpush.msra.mxu0 %v1848
      %1943 = vmatpush.msra.mxu0 %v1847
      %1944 = vmatpush.msra.mxu0 %v1846
      %1945 = vmatmul.f32.gmra.mxu0 %v1882
      %v1946 = vpop.f32.mrf.mxu0
      %v1947 = vadd.f32 %v1879, %v1946
      %1948 = vmatmul.f32.gmra.mxu0 %v1885
      %v1949 = vpop.f32.mrf.mxu0
      %v1950 = vadd.f32 %v1879, %v1949
      %1951 = vmatmul.f32.gmra.mxu0 %v1888
      %v1952 = vpop.f32.mrf.mxu0
      %v1953 = vadd.f32 %v1879, %v1952
      %1954 = vmatmul.f32.gmra.mxu0 %v1891
      %v1955 = vpop.f32.mrf.mxu0
      %v1956 = vadd.f32 %v1879, %v1955
      %1957 = vmatmul.f32.gmra.mxu0 %v1894
      %v1958 = vpop.f32.mrf.mxu0
      %v1959 = vadd.f32 %v1879, %v1958
      %1960 = vmatmul.f32.gmra.mxu0 %v1897
      %v1961 = vpop.f32.mrf.mxu0
      %v1962 = vadd.f32 %v1879, %v1961
      %1963 = vmatmul.f32.gmra.mxu0 %v1900
      %v1964 = vpop.f32.mrf.mxu0
      %v1965 = vadd.f32 %v1879, %v1964
      %1966 = vmatmul.f32.gmra.mxu0 %v1903
      %v1967 = vpop.f32.mrf.mxu0
      %v1968 = vadd.f32 %v1879, %v1967
      %1969 = vmatmul.f32.gmra.mxu0 %v1906
      %v1970 = vpop.f32.mrf.mxu0
      %v1971 = vadd.f32 %v1879, %v1970
      %1972 = vmatmul.f32.gmra.mxu0 %v1909
      %v1973 = vpop.f32.mrf.mxu0
      %v1974 = vadd.f32 %v1879, %v1973
      %1975 = vmatmul.f32.gmra.mxu0 %v1912
      %v1976 = vpop.f32.mrf.mxu0
      %v1977 = vadd.f32 %v1879, %v1976
      %1978 = vmatmul.f32.gmra.mxu0 %v1915
      %v1979 = vpop.f32.mrf.mxu0
      %v1980 = vadd.f32 %v1879, %v1979
      %1981 = vmatmul.f32.gmra.mxu0 %v1918
      %v1982 = vpop.f32.mrf.mxu0
      %v1983 = vadd.f32 %v1879, %v1982
      %1984 = vmatmul.f32.gmra.mxu0 %v1921
      %v1985 = vpop.f32.mrf.mxu0
      %v1986 = vadd.f32 %v1879, %v1985
      %1987 = vmatmul.f32.gmra.mxu0 %v1924
      %v1988 = vpop.f32.mrf.mxu0
      %v1989 = vadd.f32 %v1879, %v1988
      %1990 = vmatmul.f32.gmra.mxu0 %v1927
      %v1991 = vpop.f32.mrf.mxu0
      %v1992 = vadd.f32 %v1879, %v1991
      %1993 = vdwg.mxu0
      %v1994 = vadd.f32 %v1829, %v1947
      %v1995 = vadd.f32 %v1830, %v1950
      %v1996 = vadd.f32 %v1831, %v1953
      %v1997 = vadd.f32 %v1832, %v1956
      %v1998 = vadd.f32 %v1833, %v1959
      %v1999 = vadd.f32 %v1834, %v1962
      %v2000 = vadd.f32 %v1835, %v1965
      %v2001 = vadd.f32 %v1836, %v1968
      %v2002 = vadd.f32 %v1837, %v1971
      %v2003 = vadd.f32 %v1838, %v1974
      %v2004 = vadd.f32 %v1839, %v1977
      %v2005 = vadd.f32 %v1840, %v1980
      %v2006 = vadd.f32 %v1841, %v1983
      %v2007 = vadd.f32 %v1842, %v1986
      %v2008 = vadd.f32 %v1843, %v1989
      %v2009 = vadd.f32 %v1844, %v1992
      %v2010 = vsel %vm524, %v1994, 0.0
      %2011 = vadd.xlane.f32.xlu0 %v2010
      %v2012 = vpop.xlane.xlu0 %2011
      %v2013 = vsel %vm524, %v1995, 0.0
      %2014 = vadd.xlane.f32.xlu0 %v2013
      %v2015 = vpop.xlane.xlu0 %2014
      %v2016 = vsel %vm524, %v1996, 0.0
      %2017 = vadd.xlane.f32.xlu0 %v2016
      %v2018 = vpop.xlane.xlu0 %2017
      %v2019 = vsel %vm524, %v1997, 0.0
      %2020 = vadd.xlane.f32.xlu0 %v2019
      %v2021 = vpop.xlane.xlu0 %2020
      %v2022 = vsel %vm524, %v1998, 0.0
      %2023 = vadd.xlane.f32.xlu0 %v2022
      %v2024 = vpop.xlane.xlu0 %2023
      %v2025 = vsel %vm524, %v1999, 0.0
      %2026 = vadd.xlane.f32.xlu0 %v2025
      %v2027 = vpop.xlane.xlu0 %2026
      %v2028 = vsel %vm524, %v2000, 0.0
      %2029 = vadd.xlane.f32.xlu0 %v2028
      %v2030 = vpop.xlane.xlu0 %2029
      %v2031 = vsel %vm524, %v2001, 0.0
      %2032 = vadd.xlane.f32.xlu0 %v2031
      %v2033 = vpop.xlane.xlu0 %2032
      %v2034 = vsel %vm524, %v2002, 0.0
      %2035 = vadd.xlane.f32.xlu0 %v2034
      %v2036 = vpop.xlane.xlu0 %2035
      %v2037 = vsel %vm524, %v2003, 0.0
      %2038 = vadd.xlane.f32.xlu0 %v2037
      %v2039 = vpop.xlane.xlu0 %2038
      %v2040 = vsel %vm524, %v2004, 0.0
      %2041 = vadd.xlane.f32.xlu0 %v2040
      %v2042 = vpop.xlane.xlu0 %2041
      %v2043 = vsel %vm524, %v2005, 0.0
      %2044 = vadd.xlane.f32.xlu0 %v2043
      %v2045 = vpop.xlane.xlu0 %2044
      %v2046 = vsel %vm524, %v2006, 0.0
      %2047 = vadd.xlane.f32.xlu0 %v2046
      %v2048 = vpop.xlane.xlu0 %2047
      %v2049 = vsel %vm524, %v2007, 0.0
      %2050 = vadd.xlane.f32.xlu0 %v2049
      %v2051 = vpop.xlane.xlu0 %2050
      %v2052 = vsel %vm524, %v2008, 0.0
      %2053 = vadd.xlane.f32.xlu0 %v2052
      %v2054 = vpop.xlane.xlu0 %2053
      %v2055 = vsel %vm524, %v2009, 0.0
      %2056 = vadd.xlane.f32.xlu0 %v2055
      %v2057 = vpop.xlane.xlu0 %2056
      %v2058 = vmul.f32 %v2012, %v847
      %v2059 = vmul.f32 %v2015, %v847
      %v2060 = vmul.f32 %v2018, %v847
      %v2061 = vmul.f32 %v2021, %v847
      %v2062 = vmul.f32 %v2024, %v847
      %v2063 = vmul.f32 %v2027, %v847
      %v2064 = vmul.f32 %v2030, %v847
      %v2065 = vmul.f32 %v2033, %v847
      %v2066 = vmul.f32 %v2036, %v847
      %v2067 = vmul.f32 %v2039, %v847
      %v2068 = vmul.f32 %v2042, %v847
      %v2069 = vmul.f32 %v2045, %v847
      %v2070 = vmul.f32 %v2048, %v847
      %v2071 = vmul.f32 %v2051, %v847
      %v2072 = vmul.f32 %v2054, %v847
      %v2073 = vmul.f32 %v2057, %v847
      %v2074 = vsub.f32 %v1994, %v2058
      %v2075 = vsub.f32 %v1995, %v2059
      %v2076 = vsub.f32 %v1996, %v2060
      %v2077 = vsub.f32 %v1997, %v2061
      %v2078 = vsub.f32 %v1998, %v2062
      %v2079 = vsub.f32 %v1999, %v2063
      %v2080 = vsub.f32 %v2000, %v2064
      %v2081 = vsub.f32 %v2001, %v2065
      %v2082 = vsub.f32 %v2002, %v2066
      %v2083 = vsub.f32 %v2003, %v2067
      %v2084 = vsub.f32 %v2004, %v2068
      %v2085 = vsub.f32 %v2005, %v2069
      %v2086 = vsub.f32 %v2006, %v2070
      %v2087 = vsub.f32 %v2007, %v2071
      %v2088 = vsub.f32 %v2008, %v2072
      %v2089 = vsub.f32 %v2009, %v2073
      %v2090 = vmul.f32 %v2074, %v2074
      %v2091 = vmul.f32 %v2075, %v2075
      %v2092 = vmul.f32 %v2076, %v2076
      %v2093 = vmul.f32 %v2077, %v2077
      %v2094 = vmul.f32 %v2078, %v2078
      %v2095 = vmul.f32 %v2079, %v2079
      %v2096 = vmul.f32 %v2080, %v2080
      %v2097 = vmul.f32 %v2081, %v2081
      %v2098 = vmul.f32 %v2082, %v2082
      %v2099 = vmul.f32 %v2083, %v2083
      %v2100 = vmul.f32 %v2084, %v2084
      %v2101 = vmul.f32 %v2085, %v2085
      %v2102 = vmul.f32 %v2086, %v2086
      %v2103 = vmul.f32 %v2087, %v2087
      %v2104 = vmul.f32 %v2088, %v2088
      %v2105 = vmul.f32 %v2089, %v2089
      %v2106 = vsel %vm524, %v2090, 0.0
      %2107 = vadd.xlane.f32.xlu0 %v2106
      %v2108 = vpop.xlane.xlu0 %2107
      %v2109 = vsel %vm524, %v2091, 0.0
      %2110 = vadd.xlane.f32.xlu0 %v2109
      %v2111 = vpop.xlane.xlu0 %2110
      %v2112 = vsel %vm524, %v2092, 0.0
      %2113 = vadd.xlane.f32.xlu0 %v2112
      %v2114 = vpop.xlane.xlu0 %2113
      %v2115 = vsel %vm524, %v2093, 0.0
      %2116 = vadd.xlane.f32.xlu0 %v2115
      %v2117 = vpop.xlane.xlu0 %2116
      %v2118 = vsel %vm524, %v2094, 0.0
      %2119 = vadd.xlane.f32.xlu0 %v2118
      %v2120 = vpop.xlane.xlu0 %2119
      %v2121 = vsel %vm524, %v2095, 0.0
      %2122 = vadd.xlane.f32.xlu0 %v2121
      %v2123 = vpop.xlane.xlu0 %2122
      %v2124 = vsel %vm524, %v2096, 0.0
      %2125 = vadd.xlane.f32.xlu0 %v2124
      %v2126 = vpop.xlane.xlu0 %2125
      %v2127 = vsel %vm524, %v2097, 0.0
      %2128 = vadd.xlane.f32.xlu0 %v2127
      %v2129 = vpop.xlane.xlu0 %2128
      %v2130 = vsel %vm524, %v2098, 0.0
      %2131 = vadd.xlane.f32.xlu0 %v2130
      %v2132 = vpop.xlane.xlu0 %2131
      %v2133 = vsel %vm524, %v2099, 0.0
      %2134 = vadd.xlane.f32.xlu0 %v2133
      %v2135 = vpop.xlane.xlu0 %2134
      %v2136 = vsel %vm524, %v2100, 0.0
      %2137 = vadd.xlane.f32.xlu0 %v2136
      %v2138 = vpop.xlane.xlu0 %2137
      %v2139 = vsel %vm524, %v2101, 0.0
      %2140 = vadd.xlane.f32.xlu0 %v2139
      %v2141 = vpop.xlane.xlu0 %2140
      %v2142 = vsel %vm524, %v2102, 0.0
      %2143 = vadd.xlane.f32.xlu0 %v2142
      %v2144 = vpop.xlane.xlu0 %2143
      %v2145 = vsel %vm524, %v2103, 0.0
      %2146 = vadd.xlane.f32.xlu0 %v2145
      %v2147 = vpop.xlane.xlu0 %2146
      %v2148 = vsel %vm524, %v2104, 0.0
      %2149 = vadd.xlane.f32.xlu0 %v2148
      %v2150 = vpop.xlane.xlu0 %2149
      %v2151 = vsel %vm524, %v2105, 0.0
      %2152 = vadd.xlane.f32.xlu0 %v2151
      %v2153 = vpop.xlane.xlu0 %2152
      %v2154 = vmul.f32 %v2108, %v847
      %v2155 = vmul.f32 %v2111, %v847
      %v2156 = vmul.f32 %v2114, %v847
      %v2157 = vmul.f32 %v2117, %v847
      %v2158 = vmul.f32 %v2120, %v847
      %v2159 = vmul.f32 %v2123, %v847
      %v2160 = vmul.f32 %v2126, %v847
      %v2161 = vmul.f32 %v2129, %v847
      %v2162 = vmul.f32 %v2132, %v847
      %v2163 = vmul.f32 %v2135, %v847
      %v2164 = vmul.f32 %v2138, %v847
      %v2165 = vmul.f32 %v2141, %v847
      %v2166 = vmul.f32 %v2144, %v847
      %v2167 = vmul.f32 %v2147, %v847
      %v2168 = vmul.f32 %v2150, %v847
      %v2169 = vmul.f32 %v2153, %v847
      %v2170 = vadd.f32 %v2154, 1e-05
      %v2171 = vadd.f32 %v2155, 1e-05
      %v2172 = vadd.f32 %v2156, 1e-05
      %v2173 = vadd.f32 %v2157, 1e-05
      %v2174 = vadd.f32 %v2158, 1e-05
      %v2175 = vadd.f32 %v2159, 1e-05
      %v2176 = vadd.f32 %v2160, 1e-05
      %v2177 = vadd.f32 %v2161, 1e-05
      %v2178 = vadd.f32 %v2162, 1e-05
      %v2179 = vadd.f32 %v2163, 1e-05
      %v2180 = vadd.f32 %v2164, 1e-05
      %v2181 = vadd.f32 %v2165, 1e-05
      %v2182 = vadd.f32 %v2166, 1e-05
      %v2183 = vadd.f32 %v2167, 1e-05
      %v2184 = vadd.f32 %v2168, 1e-05
      %v2185 = vadd.f32 %v2169, 1e-05
      %v2186 = vrsqrt.pop %v2170
      %v2187 = vmul.f32 %v2186, %v2170
      %v2188 = vmul.f32 %v2187, %v2186
      %v2189 = vmul.f32 0.5, %v2188
      %v2190 = vsub.f32 1.5, %v2189
      %v2191 = vmul.f32 %v2186, %v2190
      %vm2192 = vweird.f32 %v2170
      %vm2193 = vweird.f32 %v2186
      %vm2194 = vmor %vm2192, %vm2193
      %v2195 = vsel %vm2194, %v2186, %v2191
      %v2196 = vrsqrt.pop %v2171
      %v2197 = vmul.f32 %v2196, %v2171
      %v2198 = vmul.f32 %v2197, %v2196
      %v2199 = vmul.f32 0.5, %v2198
      %v2200 = vsub.f32 1.5, %v2199
      %v2201 = vmul.f32 %v2196, %v2200
      %vm2202 = vweird.f32 %v2171
      %vm2203 = vweird.f32 %v2196
      %vm2204 = vmor %vm2202, %vm2203
      %v2205 = vsel %vm2204, %v2196, %v2201
      %v2206 = vrsqrt.pop %v2172
      %v2207 = vmul.f32 %v2206, %v2172
      %v2208 = vmul.f32 %v2207, %v2206
      %v2209 = vmul.f32 0.5, %v2208
      %v2210 = vsub.f32 1.5, %v2209
      %v2211 = vmul.f32 %v2206, %v2210
      %vm2212 = vweird.f32 %v2172
      %vm2213 = vweird.f32 %v2206
      %vm2214 = vmor %vm2212, %vm2213
      %v2215 = vsel %vm2214, %v2206, %v2211
      %v2216 = vrsqrt.pop %v2173
      %v2217 = vmul.f32 %v2216, %v2173
      %v2218 = vmul.f32 %v2217, %v2216
      %v2219 = vmul.f32 0.5, %v2218
      %v2220 = vsub.f32 1.5, %v2219
      %v2221 = vmul.f32 %v2216, %v2220
      %vm2222 = vweird.f32 %v2173
      %vm2223 = vweird.f32 %v2216
      %vm2224 = vmor %vm2222, %vm2223
      %v2225 = vsel %vm2224, %v2216, %v2221
      %v2226 = vrsqrt.pop %v2174
      %v2227 = vmul.f32 %v2226, %v2174
      %v2228 = vmul.f32 %v2227, %v2226
      %v2229 = vmul.f32 0.5, %v2228
      %v2230 = vsub.f32 1.5, %v2229
      %v2231 = vmul.f32 %v2226, %v2230
      %vm2232 = vweird.f32 %v2174
      %vm2233 = vweird.f32 %v2226
      %vm2234 = vmor %vm2232, %vm2233
      %v2235 = vsel %vm2234, %v2226, %v2231
      %v2236 = vrsqrt.pop %v2175
      %v2237 = vmul.f32 %v2236, %v2175
      %v2238 = vmul.f32 %v2237, %v2236
      %v2239 = vmul.f32 0.5, %v2238
      %v2240 = vsub.f32 1.5, %v2239
      %v2241 = vmul.f32 %v2236, %v2240
      %vm2242 = vweird.f32 %v2175
      %vm2243 = vweird.f32 %v2236
      %vm2244 = vmor %vm2242, %vm2243
      %v2245 = vsel %vm2244, %v2236, %v2241
      %v2246 = vrsqrt.pop %v2176
      %v2247 = vmul.f32 %v2246, %v2176
      %v2248 = vmul.f32 %v2247, %v2246
      %v2249 = vmul.f32 0.5, %v2248
      %v2250 = vsub.f32 1.5, %v2249
      %v2251 = vmul.f32 %v2246, %v2250
      %vm2252 = vweird.f32 %v2176
      %vm2253 = vweird.f32 %v2246
      %vm2254 = vmor %vm2252, %vm2253
      %v2255 = vsel %vm2254, %v2246, %v2251
      %v2256 = vrsqrt.pop %v2177
      %v2257 = vmul.f32 %v2256, %v2177
      %v2258 = vmul.f32 %v2257, %v2256
      %v2259 = vmul.f32 0.5, %v2258
      %v2260 = vsub.f32 1.5, %v2259
      %v2261 = vmul.f32 %v2256, %v2260
      %vm2262 = vweird.f32 %v2177
      %vm2263 = vweird.f32 %v2256
      %vm2264 = vmor %vm2262, %vm2263
      %v2265 = vsel %vm2264, %v2256, %v2261
      %v2266 = vrsqrt.pop %v2178
      %v2267 = vmul.f32 %v2266, %v2178
      %v2268 = vmul.f32 %v2267, %v2266
      %v2269 = vmul.f32 0.5, %v2268
      %v2270 = vsub.f32 1.5, %v2269
      %v2271 = vmul.f32 %v2266, %v2270
      %vm2272 = vweird.f32 %v2178
      %vm2273 = vweird.f32 %v2266
      %vm2274 = vmor %vm2272, %vm2273
      %v2275 = vsel %vm2274, %v2266, %v2271
      %v2276 = vrsqrt.pop %v2179
      %v2277 = vmul.f32 %v2276, %v2179
      %v2278 = vmul.f32 %v2277, %v2276
      %v2279 = vmul.f32 0.5, %v2278
      %v2280 = vsub.f32 1.5, %v2279
      %v2281 = vmul.f32 %v2276, %v2280
      %vm2282 = vweird.f32 %v2179
      %vm2283 = vweird.f32 %v2276
      %vm2284 = vmor %vm2282, %vm2283
      %v2285 = vsel %vm2284, %v2276, %v2281
      %v2286 = vrsqrt.pop %v2180
      %v2287 = vmul.f32 %v2286, %v2180
      %v2288 = vmul.f32 %v2287, %v2286
      %v2289 = vmul.f32 0.5, %v2288
      %v2290 = vsub.f32 1.5, %v2289
      %v2291 = vmul.f32 %v2286, %v2290
      %vm2292 = vweird.f32 %v2180
      %vm2293 = vweird.f32 %v2286
      %vm2294 = vmor %vm2292, %vm2293
      %v2295 = vsel %vm2294, %v2286, %v2291
      %v2296 = vrsqrt.pop %v2181
      %v2297 = vmul.f32 %v2296, %v2181
      %v2298 = vmul.f32 %v2297, %v2296
      %v2299 = vmul.f32 0.5, %v2298
      %v2300 = vsub.f32 1.5, %v2299
      %v2301 = vmul.f32 %v2296, %v2300
      %vm2302 = vweird.f32 %v2181
      %vm2303 = vweird.f32 %v2296
      %vm2304 = vmor %vm2302, %vm2303
      %v2305 = vsel %vm2304, %v2296, %v2301
      %v2306 = vrsqrt.pop %v2182
      %v2307 = vmul.f32 %v2306, %v2182
      %v2308 = vmul.f32 %v2307, %v2306
      %v2309 = vmul.f32 0.5, %v2308
      %v2310 = vsub.f32 1.5, %v2309
      %v2311 = vmul.f32 %v2306, %v2310
      %vm2312 = vweird.f32 %v2182
      %vm2313 = vweird.f32 %v2306
      %vm2314 = vmor %vm2312, %vm2313
      %v2315 = vsel %vm2314, %v2306, %v2311
      %v2316 = vrsqrt.pop %v2183
      %v2317 = vmul.f32 %v2316, %v2183
      %v2318 = vmul.f32 %v2317, %v2316
      %v2319 = vmul.f32 0.5, %v2318
      %v2320 = vsub.f32 1.5, %v2319
      %v2321 = vmul.f32 %v2316, %v2320
      %vm2322 = vweird.f32 %v2183
      %vm2323 = vweird.f32 %v2316
      %vm2324 = vmor %vm2322, %vm2323
      %v2325 = vsel %vm2324, %v2316, %v2321
      %v2326 = vrsqrt.pop %v2184
      %v2327 = vmul.f32 %v2326, %v2184
      %v2328 = vmul.f32 %v2327, %v2326
      %v2329 = vmul.f32 0.5, %v2328
      %v2330 = vsub.f32 1.5, %v2329
      %v2331 = vmul.f32 %v2326, %v2330
      %vm2332 = vweird.f32 %v2184
      %vm2333 = vweird.f32 %v2326
      %vm2334 = vmor %vm2332, %vm2333
      %v2335 = vsel %vm2334, %v2326, %v2331
      %v2336 = vrsqrt.pop %v2185
      %v2337 = vmul.f32 %v2336, %v2185
      %v2338 = vmul.f32 %v2337, %v2336
      %v2339 = vmul.f32 0.5, %v2338
      %v2340 = vsub.f32 1.5, %v2339
      %v2341 = vmul.f32 %v2336, %v2340
      %vm2342 = vweird.f32 %v2185
      %vm2343 = vweird.f32 %v2336
      %vm2344 = vmor %vm2342, %vm2343
      %v2345 = vsel %vm2344, %v2336, %v2341
      %v2346 = vmul.f32 %v2074, %v2195
      %v2347 = vmul.f32 %v2075, %v2205
      %v2348 = vmul.f32 %v2076, %v2215
      %v2349 = vmul.f32 %v2077, %v2225
      %v2350 = vmul.f32 %v2078, %v2235
      %v2351 = vmul.f32 %v2079, %v2245
      %v2352 = vmul.f32 %v2080, %v2255
      %v2353 = vmul.f32 %v2081, %v2265
      %v2354 = vmul.f32 %v2082, %v2275
      %v2355 = vmul.f32 %v2083, %v2285
      %v2356 = vmul.f32 %v2084, %v2295
      %v2357 = vmul.f32 %v2085, %v2305
      %v2358 = vmul.f32 %v2086, %v2315
      %v2359 = vmul.f32 %v2087, %v2325
      %v2360 = vmul.f32 %v2088, %v2335
      %v2361 = vmul.f32 %v2089, %v2345
      %v2363 = vperm.slane %v1853, 0
      %v2365 = vmul.f32 %v2346, %v2363
      %v2366 = vmul.f32 %v2347, %v2363
      %v2367 = vmul.f32 %v2348, %v2363
      %v2368 = vmul.f32 %v2349, %v2363
      %v2369 = vmul.f32 %v2350, %v2363
      %v2370 = vmul.f32 %v2351, %v2363
      %v2371 = vmul.f32 %v2352, %v2363
      %v2372 = vmul.f32 %v2353, %v2363
      %v2373 = vmul.f32 %v2354, %v2363
      %v2374 = vmul.f32 %v2355, %v2363
      %v2375 = vmul.f32 %v2356, %v2363
      %v2376 = vmul.f32 %v2357, %v2363
      %v2377 = vmul.f32 %v2358, %v2363
      %v2378 = vmul.f32 %v2359, %v2363
      %v2379 = vmul.f32 %v2360, %v2363
      %v2380 = vmul.f32 %v2361, %v2363
      %v2382 = vperm.slane %v1855, 0
      %v2384 = vadd.f32 %v2365, %v2382
      %v2385 = vadd.f32 %v2366, %v2382
      %v2386 = vadd.f32 %v2367, %v2382
      %v2387 = vadd.f32 %v2368, %v2382
      %v2388 = vadd.f32 %v2369, %v2382
      %v2389 = vadd.f32 %v2370, %v2382
      %v2390 = vadd.f32 %v2371, %v2382
      %v2391 = vadd.f32 %v2372, %v2382
      %v2392 = vadd.f32 %v2373, %v2382
      %v2393 = vadd.f32 %v2374, %v2382
      %v2394 = vadd.f32 %v2375, %v2382
      %v2395 = vadd.f32 %v2376, %v2382
      %v2396 = vadd.f32 %v2377, %v2382
      %v2397 = vadd.f32 %v2378, %v2382
      %v2398 = vadd.f32 %v2379, %v2382
      %v2399 = vadd.f32 %v2380, %v2382
      %v2401 = vperm.slane %v1862, 0
      %v2404 = vsel %vm524, %v2384, 0
      %v2407 = vsel %vm524, %v2385, 0
      %v2410 = vsel %vm524, %v2386, 0
      %v2413 = vsel %vm524, %v2387, 0
      %v2416 = vsel %vm524, %v2388, 0
      %v2419 = vsel %vm524, %v2389, 0
      %v2422 = vsel %vm524, %v2390, 0
      %v2425 = vsel %vm524, %v2391, 0
      %v2428 = vsel %vm524, %v2392, 0
      %v2431 = vsel %vm524, %v2393, 0
      %v2434 = vsel %vm524, %v2394, 0
      %v2437 = vsel %vm524, %v2395, 0
      %v2440 = vsel %vm524, %v2396, 0
      %v2443 = vsel %vm524, %v2397, 0
      %v2446 = vsel %vm524, %v2398, 0
      %v2449 = vsel %vm524, %v2399, 0
      %2451 = vmatpush.msra.mxu0 0.0
      %2452 = vmatpush.msra.mxu0 0.0
      %2453 = vmatpush.msra.mxu0 0.0
      %2454 = vmatpush.msra.mxu0 0.0
      %2455 = vmatpush.msra.mxu0 0.0
      %2456 = vmatpush.msra.mxu0 0.0
      %2457 = vmatpush.msra.mxu0 0.0
      %2458 = vmatpush.msra.mxu0 0.0
      %2459 = vmatpush.msra.mxu0 0.0
      %2460 = vmatpush.msra.mxu0 0.0
      %2461 = vmatpush.msra.mxu0 0.0
      %2462 = vmatpush.msra.mxu0 0.0
      %2463 = vmatpush.msra.mxu0 %v1860
      %2464 = vmatpush.msra.mxu0 %v1859
      %2465 = vmatpush.msra.mxu0 %v1858
      %2466 = vmatpush.msra.mxu0 %v1857
      %2467 = vmatmul.f32.gmra.mxu0 %v2404
      %v2468 = vpop.f32.mrf.mxu0
      %v2469 = vadd.f32 %v2401, %v2468
      %2470 = vmatmul.f32.gmra.mxu0 %v2407
      %v2471 = vpop.f32.mrf.mxu0
      %v2472 = vadd.f32 %v2401, %v2471
      %2473 = vmatmul.f32.gmra.mxu0 %v2410
      %v2474 = vpop.f32.mrf.mxu0
      %v2475 = vadd.f32 %v2401, %v2474
      %2476 = vmatmul.f32.gmra.mxu0 %v2413
      %v2477 = vpop.f32.mrf.mxu0
      %v2478 = vadd.f32 %v2401, %v2477
      %2479 = vmatmul.f32.gmra.mxu0 %v2416
      %v2480 = vpop.f32.mrf.mxu0
      %v2481 = vadd.f32 %v2401, %v2480
      %2482 = vmatmul.f32.gmra.mxu0 %v2419
      %v2483 = vpop.f32.mrf.mxu0
      %v2484 = vadd.f32 %v2401, %v2483
      %2485 = vmatmul.f32.gmra.mxu0 %v2422
      %v2486 = vpop.f32.mrf.mxu0
      %v2487 = vadd.f32 %v2401, %v2486
      %2488 = vmatmul.f32.gmra.mxu0 %v2425
      %v2489 = vpop.f32.mrf.mxu0
      %v2490 = vadd.f32 %v2401, %v2489
      %2491 = vmatmul.f32.gmra.mxu0 %v2428
      %v2492 = vpop.f32.mrf.mxu0
      %v2493 = vadd.f32 %v2401, %v2492
      %2494 = vmatmul.f32.gmra.mxu0 %v2431
      %v2495 = vpop.f32.mrf.mxu0
      %v2496 = vadd.f32 %v2401, %v2495
      %2497 = vmatmul.f32.gmra.mxu0 %v2434
      %v2498 = vpop.f32.mrf.mxu0
      %v2499 = vadd.f32 %v2401, %v2498
      %2500 = vmatmul.f32.gmra.mxu0 %v2437
      %v2501 = vpop.f32.mrf.mxu0
      %v2502 = vadd.f32 %v2401, %v2501
      %2503 = vmatmul.f32.gmra.mxu0 %v2440
      %v2504 = vpop.f32.mrf.mxu0
      %v2505 = vadd.f32 %v2401, %v2504
      %2506 = vmatmul.f32.gmra.mxu0 %v2443
      %v2507 = vpop.f32.mrf.mxu0
      %v2508 = vadd.f32 %v2401, %v2507
      %2509 = vmatmul.f32.gmra.mxu0 %v2446
      %v2510 = vpop.f32.mrf.mxu0
      %v2511 = vadd.f32 %v2401, %v2510
      %2512 = vmatmul.f32.gmra.mxu0 %v2449
      %v2513 = vpop.f32.mrf.mxu0
      %v2514 = vadd.f32 %v2401, %v2513
      %2515 = vdwg.mxu0
      %v2516 = vmax.f32 %v2469, 0.0
      %v2517 = vmax.f32 %v2472, 0.0
      %v2518 = vmax.f32 %v2475, 0.0
      %v2519 = vmax.f32 %v2478, 0.0
      %v2520 = vmax.f32 %v2481, 0.0
      %v2521 = vmax.f32 %v2484, 0.0
      %v2522 = vmax.f32 %v2487, 0.0
      %v2523 = vmax.f32 %v2490, 0.0
      %v2524 = vmax.f32 %v2493, 0.0
      %v2525 = vmax.f32 %v2496, 0.0
      %v2526 = vmax.f32 %v2499, 0.0
      %v2527 = vmax.f32 %v2502, 0.0
      %v2528 = vmax.f32 %v2505, 0.0
      %v2529 = vmax.f32 %v2508, 0.0
      %v2530 = vmax.f32 %v2511, 0.0
      %v2531 = vmax.f32 %v2514, 0.0
      %v2533 = vperm.slane %v1873, 0
      %v2536 = vsel %vm1325, %v2516, 0
      %v2539 = vsel %vm1325, %v2517, 0
      %v2542 = vsel %vm1325, %v2518, 0
      %v2545 = vsel %vm1325, %v2519, 0
      %v2548 = vsel %vm1325, %v2520, 0
      %v2551 = vsel %vm1325, %v2521, 0
      %v2554 = vsel %vm1325, %v2522, 0
      %v2557 = vsel %vm1325, %v2523, 0
      %v2560 = vsel %vm1325, %v2524, 0
      %v2563 = vsel %vm1325, %v2525, 0
      %v2566 = vsel %vm1325, %v2526, 0
      %v2569 = vsel %vm1325, %v2527, 0
      %v2572 = vsel %vm1325, %v2528, 0
      %v2575 = vsel %vm1325, %v2529, 0
      %v2578 = vsel %vm1325, %v2530, 0
      %v2581 = vsel %vm1325, %v2531, 0
      %2583 = vmatpush.msra.mxu0 0.0
      %2584 = vmatpush.msra.mxu0 0.0
      %2585 = vmatpush.msra.mxu0 0.0
      %2586 = vmatpush.msra.mxu0 0.0
      %2587 = vmatpush.msra.mxu0 0.0
      %2588 = vmatpush.msra.mxu0 0.0
      %2589 = vmatpush.msra.mxu0 0.0
      %2590 = vmatpush.msra.mxu0 0.0
      %2591 = vmatpush.msra.mxu0 %v1871
      %2592 = vmatpush.msra.mxu0 %v1870
      %2593 = vmatpush.msra.mxu0 %v1869
      %2594 = vmatpush.msra.mxu0 %v1868
      %2595 = vmatpush.msra.mxu0 %v1867
      %2596 = vmatpush.msra.mxu0 %v1866
      %2597 = vmatpush.msra.mxu0 %v1865
      %2598 = vmatpush.msra.mxu0 %v1864
      %2599 = vmatmul.f32.gmra.mxu0 %v2536
      %v2600 = vpop.f32.mrf.mxu0
      %v2601 = vadd.f32 %v2533, %v2600
      %2602 = vmatmul.f32.gmra.mxu0 %v2539
      %v2603 = vpop.f32.mrf.mxu0
      %v2604 = vadd.f32 %v2533, %v2603
      %2605 = vmatmul.f32.gmra.mxu0 %v2542
      %v2606 = vpop.f32.mrf.mxu0
      %v2607 = vadd.f32 %v2533, %v2606
      %2608 = vmatmul.f32.gmra.mxu0 %v2545
      %v2609 = vpop.f32.mrf.mxu0
      %v2610 = vadd.f32 %v2533, %v2609
      %2611 = vmatmul.f32.gmra.mxu0 %v2548
      %v2612 = vpop.f32.mrf.mxu0
      %v2613 = vadd.f32 %v2533, %v2612
      %2614 = vmatmul.f32.gmra.mxu0 %v2551
      %v2615 = vpop.f32.mrf.mxu0
      %v2616 = vadd.f32 %v2533, %v2615
      %2617 = vmatmul.f32.gmra.mxu0 %v2554
      %v2618 = vpop.f32.mrf.mxu0
      %v2619 = vadd.f32 %v2533, %v2618
      %2620 = vmatmul.f32.gmra.mxu0 %v2557
      %v2621 = vpop.f32.mrf.mxu0
      %v2622 = vadd.f32 %v2533, %v2621
      %2623 = vmatmul.f32.gmra.mxu0 %v2560
      %v2624 = vpop.f32.mrf.mxu0
      %v2625 = vadd.f32 %v2533, %v2624
      %2626 = vmatmul.f32.gmra.mxu0 %v2563
      %v2627 = vpop.f32.mrf.mxu0
      %v2628 = vadd.f32 %v2533, %v2627
      %2629 = vmatmul.f32.gmra.mxu0 %v2566
      %v2630 = vpop.f32.mrf.mxu0
      %v2631 = vadd.f32 %v2533, %v2630
      %2632 = vmatmul.f32.gmra.mxu0 %v2569
      %v2633 = vpop.f32.mrf.mxu0
      %v2634 = vadd.f32 %v2533, %v2633
      %2635 = vmatmul.f32.gmra.mxu0 %v2572
      %v2636 = vpop.f32.mrf.mxu0
      %v2637 = vadd.f32 %v2533, %v2636
      %2638 = vmatmul.f32.gmra.mxu0 %v2575
      %v2639 = vpop.f32.mrf.mxu0
      %v2640 = vadd.f32 %v2533, %v2639
      %2641 = vmatmul.f32.gmra.mxu0 %v2578
      %v2642 = vpop.f32.mrf.mxu0
      %v2643 = vadd.f32 %v2533, %v2642
      %2644 = vmatmul.f32.gmra.mxu0 %v2581
      %v2645 = vpop.f32.mrf.mxu0
      %v2646 = vadd.f32 %v2533, %v2645
      %2647 = vdwg.mxu0
      %v2648 = vadd.f32 %v2384, %v2601
      %v2649 = vadd.f32 %v2385, %v2604
      %v2650 = vadd.f32 %v2386, %v2607
      %v2651 = vadd.f32 %v2387, %v2610
      %v2652 = vadd.f32 %v2388, %v2613
      %v2653 = vadd.f32 %v2389, %v2616
      %v2654 = vadd.f32 %v2390, %v2619
      %v2655 = vadd.f32 %v2391, %v2622
      %v2656 = vadd.f32 %v2392, %v2625
      %v2657 = vadd.f32 %v2393, %v2628
      %v2658 = vadd.f32 %v2394, %v2631
      %v2659 = vadd.f32 %v2395, %v2634
      %v2660 = vadd.f32 %v2396, %v2637
      %v2661 = vadd.f32 %v2397, %v2640
      %v2662 = vadd.f32 %v2398, %v2643
      %v2663 = vadd.f32 %v2399, %v2646
      %v2664 = vsel %vm524, %v2648, 0.0
      %2665 = vadd.xlane.f32.xlu0 %v2664
      %v2666 = vpop.xlane.xlu0 %2665
      %v2667 = vsel %vm524, %v2649, 0.0
      %2668 = vadd.xlane.f32.xlu0 %v2667
      %v2669 = vpop.xlane.xlu0 %2668
      %v2670 = vsel %vm524, %v2650, 0.0
      %2671 = vadd.xlane.f32.xlu0 %v2670
      %v2672 = vpop.xlane.xlu0 %2671
      %v2673 = vsel %vm524, %v2651, 0.0
      %2674 = vadd.xlane.f32.xlu0 %v2673
      %v2675 = vpop.xlane.xlu0 %2674
      %v2676 = vsel %vm524, %v2652, 0.0
      %2677 = vadd.xlane.f32.xlu0 %v2676
      %v2678 = vpop.xlane.xlu0 %2677
      %v2679 = vsel %vm524, %v2653, 0.0
      %2680 = vadd.xlane.f32.xlu0 %v2679
      %v2681 = vpop.xlane.xlu0 %2680
      %v2682 = vsel %vm524, %v2654, 0.0
      %2683 = vadd.xlane.f32.xlu0 %v2682
      %v2684 = vpop.xlane.xlu0 %2683
      %v2685 = vsel %vm524, %v2655, 0.0
      %2686 = vadd.xlane.f32.xlu0 %v2685
      %v2687 = vpop.xlane.xlu0 %2686
      %v2688 = vsel %vm524, %v2656, 0.0
      %2689 = vadd.xlane.f32.xlu0 %v2688
      %v2690 = vpop.xlane.xlu0 %2689
      %v2691 = vsel %vm524, %v2657, 0.0
      %2692 = vadd.xlane.f32.xlu0 %v2691
      %v2693 = vpop.xlane.xlu0 %2692
      %v2694 = vsel %vm524, %v2658, 0.0
      %2695 = vadd.xlane.f32.xlu0 %v2694
      %v2696 = vpop.xlane.xlu0 %2695
      %v2697 = vsel %vm524, %v2659, 0.0
      %2698 = vadd.xlane.f32.xlu0 %v2697
      %v2699 = vpop.xlane.xlu0 %2698
      %v2700 = vsel %vm524, %v2660, 0.0
      %2701 = vadd.xlane.f32.xlu0 %v2700
      %v2702 = vpop.xlane.xlu0 %2701
      %v2703 = vsel %vm524, %v2661, 0.0
      %2704 = vadd.xlane.f32.xlu0 %v2703
      %v2705 = vpop.xlane.xlu0 %2704
      %v2706 = vsel %vm524, %v2662, 0.0
      %2707 = vadd.xlane.f32.xlu0 %v2706
      %v2708 = vpop.xlane.xlu0 %2707
      %v2709 = vsel %vm524, %v2663, 0.0
      %2710 = vadd.xlane.f32.xlu0 %v2709
      %v2711 = vpop.xlane.xlu0 %2710
      %v2712 = vmul.f32 %v2666, %v847
      %v2713 = vmul.f32 %v2669, %v847
      %v2714 = vmul.f32 %v2672, %v847
      %v2715 = vmul.f32 %v2675, %v847
      %v2716 = vmul.f32 %v2678, %v847
      %v2717 = vmul.f32 %v2681, %v847
      %v2718 = vmul.f32 %v2684, %v847
      %v2719 = vmul.f32 %v2687, %v847
      %v2720 = vmul.f32 %v2690, %v847
      %v2721 = vmul.f32 %v2693, %v847
      %v2722 = vmul.f32 %v2696, %v847
      %v2723 = vmul.f32 %v2699, %v847
      %v2724 = vmul.f32 %v2702, %v847
      %v2725 = vmul.f32 %v2705, %v847
      %v2726 = vmul.f32 %v2708, %v847
      %v2727 = vmul.f32 %v2711, %v847
      %v2728 = vsub.f32 %v2648, %v2712
      %v2729 = vsub.f32 %v2649, %v2713
      %v2730 = vsub.f32 %v2650, %v2714
      %v2731 = vsub.f32 %v2651, %v2715
      %v2732 = vsub.f32 %v2652, %v2716
      %v2733 = vsub.f32 %v2653, %v2717
      %v2734 = vsub.f32 %v2654, %v2718
      %v2735 = vsub.f32 %v2655, %v2719
      %v2736 = vsub.f32 %v2656, %v2720
      %v2737 = vsub.f32 %v2657, %v2721
      %v2738 = vsub.f32 %v2658, %v2722
      %v2739 = vsub.f32 %v2659, %v2723
      %v2740 = vsub.f32 %v2660, %v2724
      %v2741 = vsub.f32 %v2661, %v2725
      %v2742 = vsub.f32 %v2662, %v2726
      %v2743 = vsub.f32 %v2663, %v2727
      %v2744 = vmul.f32 %v2728, %v2728
      %v2745 = vmul.f32 %v2729, %v2729
      %v2746 = vmul.f32 %v2730, %v2730
      %v2747 = vmul.f32 %v2731, %v2731
      %v2748 = vmul.f32 %v2732, %v2732
      %v2749 = vmul.f32 %v2733, %v2733
      %v2750 = vmul.f32 %v2734, %v2734
      %v2751 = vmul.f32 %v2735, %v2735
      %v2752 = vmul.f32 %v2736, %v2736
      %v2753 = vmul.f32 %v2737, %v2737
      %v2754 = vmul.f32 %v2738, %v2738
      %v2755 = vmul.f32 %v2739, %v2739
      %v2756 = vmul.f32 %v2740, %v2740
      %v2757 = vmul.f32 %v2741, %v2741
      %v2758 = vmul.f32 %v2742, %v2742
      %v2759 = vmul.f32 %v2743, %v2743
      %v2760 = vsel %vm524, %v2744, 0.0
      %2761 = vadd.xlane.f32.xlu0 %v2760
      %v2762 = vpop.xlane.xlu0 %2761
      %v2763 = vsel %vm524, %v2745, 0.0
      %2764 = vadd.xlane.f32.xlu0 %v2763
      %v2765 = vpop.xlane.xlu0 %2764
      %v2766 = vsel %vm524, %v2746, 0.0
      %2767 = vadd.xlane.f32.xlu0 %v2766
      %v2768 = vpop.xlane.xlu0 %2767
      %v2769 = vsel %vm524, %v2747, 0.0
      %2770 = vadd.xlane.f32.xlu0 %v2769
      %v2771 = vpop.xlane.xlu0 %2770
      %v2772 = vsel %vm524, %v2748, 0.0
      %2773 = vadd.xlane.f32.xlu0 %v2772
      %v2774 = vpop.xlane.xlu0 %2773
      %v2775 = vsel %vm524, %v2749, 0.0
      %2776 = vadd.xlane.f32.xlu0 %v2775
      %v2777 = vpop.xlane.xlu0 %2776
      %v2778 = vsel %vm524, %v2750, 0.0
      %2779 = vadd.xlane.f32.xlu0 %v2778
      %v2780 = vpop.xlane.xlu0 %2779
      %v2781 = vsel %vm524, %v2751, 0.0
      %2782 = vadd.xlane.f32.xlu0 %v2781
      %v2783 = vpop.xlane.xlu0 %2782
      %v2784 = vsel %vm524, %v2752, 0.0
      %2785 = vadd.xlane.f32.xlu0 %v2784
      %v2786 = vpop.xlane.xlu0 %2785
      %v2787 = vsel %vm524, %v2753, 0.0
      %2788 = vadd.xlane.f32.xlu0 %v2787
      %v2789 = vpop.xlane.xlu0 %2788
      %v2790 = vsel %vm524, %v2754, 0.0
      %2791 = vadd.xlane.f32.xlu0 %v2790
      %v2792 = vpop.xlane.xlu0 %2791
      %v2793 = vsel %vm524, %v2755, 0.0
      %2794 = vadd.xlane.f32.xlu0 %v2793
      %v2795 = vpop.xlane.xlu0 %2794
      %v2796 = vsel %vm524, %v2756, 0.0
      %2797 = vadd.xlane.f32.xlu0 %v2796
      %v2798 = vpop.xlane.xlu0 %2797
      %v2799 = vsel %vm524, %v2757, 0.0
      %2800 = vadd.xlane.f32.xlu0 %v2799
      %v2801 = vpop.xlane.xlu0 %2800
      %v2802 = vsel %vm524, %v2758, 0.0
      %2803 = vadd.xlane.f32.xlu0 %v2802
      %v2804 = vpop.xlane.xlu0 %2803
      %v2805 = vsel %vm524, %v2759, 0.0
      %2806 = vadd.xlane.f32.xlu0 %v2805
      %v2807 = vpop.xlane.xlu0 %2806
      %v2808 = vmul.f32 %v2762, %v847
      %v2809 = vmul.f32 %v2765, %v847
      %v2810 = vmul.f32 %v2768, %v847
      %v2811 = vmul.f32 %v2771, %v847
      %v2812 = vmul.f32 %v2774, %v847
      %v2813 = vmul.f32 %v2777, %v847
      %v2814 = vmul.f32 %v2780, %v847
      %v2815 = vmul.f32 %v2783, %v847
      %v2816 = vmul.f32 %v2786, %v847
      %v2817 = vmul.f32 %v2789, %v847
      %v2818 = vmul.f32 %v2792, %v847
      %v2819 = vmul.f32 %v2795, %v847
      %v2820 = vmul.f32 %v2798, %v847
      %v2821 = vmul.f32 %v2801, %v847
      %v2822 = vmul.f32 %v2804, %v847
      %v2823 = vmul.f32 %v2807, %v847
      %v2824 = vadd.f32 %v2808, 1e-05
      %v2825 = vadd.f32 %v2809, 1e-05
      %v2826 = vadd.f32 %v2810, 1e-05
      %v2827 = vadd.f32 %v2811, 1e-05
      %v2828 = vadd.f32 %v2812, 1e-05
      %v2829 = vadd.f32 %v2813, 1e-05
      %v2830 = vadd.f32 %v2814, 1e-05
      %v2831 = vadd.f32 %v2815, 1e-05
      %v2832 = vadd.f32 %v2816, 1e-05
      %v2833 = vadd.f32 %v2817, 1e-05
      %v2834 = vadd.f32 %v2818, 1e-05
      %v2835 = vadd.f32 %v2819, 1e-05
      %v2836 = vadd.f32 %v2820, 1e-05
      %v2837 = vadd.f32 %v2821, 1e-05
      %v2838 = vadd.f32 %v2822, 1e-05
      %v2839 = vadd.f32 %v2823, 1e-05
      %v2840 = vrsqrt.pop %v2824
      %v2841 = vmul.f32 %v2840, %v2824
      %v2842 = vmul.f32 %v2841, %v2840
      %v2843 = vmul.f32 0.5, %v2842
      %v2844 = vsub.f32 1.5, %v2843
      %v2845 = vmul.f32 %v2840, %v2844
      %vm2846 = vweird.f32 %v2824
      %vm2847 = vweird.f32 %v2840
      %vm2848 = vmor %vm2846, %vm2847
      %v2849 = vsel %vm2848, %v2840, %v2845
      %v2850 = vrsqrt.pop %v2825
      %v2851 = vmul.f32 %v2850, %v2825
      %v2852 = vmul.f32 %v2851, %v2850
      %v2853 = vmul.f32 0.5, %v2852
      %v2854 = vsub.f32 1.5, %v2853
      %v2855 = vmul.f32 %v2850, %v2854
      %vm2856 = vweird.f32 %v2825
      %vm2857 = vweird.f32 %v2850
      %vm2858 = vmor %vm2856, %vm2857
      %v2859 = vsel %vm2858, %v2850, %v2855
      %v2860 = vrsqrt.pop %v2826
      %v2861 = vmul.f32 %v2860, %v2826
      %v2862 = vmul.f32 %v2861, %v2860
      %v2863 = vmul.f32 0.5, %v2862
      %v2864 = vsub.f32 1.5, %v2863
      %v2865 = vmul.f32 %v2860, %v2864
      %vm2866 = vweird.f32 %v2826
      %vm2867 = vweird.f32 %v2860
      %vm2868 = vmor %vm2866, %vm2867
      %v2869 = vsel %vm2868, %v2860, %v2865
      %v2870 = vrsqrt.pop %v2827
      %v2871 = vmul.f32 %v2870, %v2827
      %v2872 = vmul.f32 %v2871, %v2870
      %v2873 = vmul.f32 0.5, %v2872
      %v2874 = vsub.f32 1.5, %v2873
      %v2875 = vmul.f32 %v2870, %v2874
      %vm2876 = vweird.f32 %v2827
      %vm2877 = vweird.f32 %v2870
      %vm2878 = vmor %vm2876, %vm2877
      %v2879 = vsel %vm2878, %v2870, %v2875
      %v2880 = vrsqrt.pop %v2828
      %v2881 = vmul.f32 %v2880, %v2828
      %v2882 = vmul.f32 %v2881, %v2880
      %v2883 = vmul.f32 0.5, %v2882
      %v2884 = vsub.f32 1.5, %v2883
      %v2885 = vmul.f32 %v2880, %v2884
      %vm2886 = vweird.f32 %v2828
      %vm2887 = vweird.f32 %v2880
      %vm2888 = vmor %vm2886, %vm2887
      %v2889 = vsel %vm2888, %v2880, %v2885
      %v2890 = vrsqrt.pop %v2829
      %v2891 = vmul.f32 %v2890, %v2829
      %v2892 = vmul.f32 %v2891, %v2890
      %v2893 = vmul.f32 0.5, %v2892
      %v2894 = vsub.f32 1.5, %v2893
      %v2895 = vmul.f32 %v2890, %v2894
      %vm2896 = vweird.f32 %v2829
      %vm2897 = vweird.f32 %v2890
      %vm2898 = vmor %vm2896, %vm2897
      %v2899 = vsel %vm2898, %v2890, %v2895
      %v2900 = vrsqrt.pop %v2830
      %v2901 = vmul.f32 %v2900, %v2830
      %v2902 = vmul.f32 %v2901, %v2900
      %v2903 = vmul.f32 0.5, %v2902
      %v2904 = vsub.f32 1.5, %v2903
      %v2905 = vmul.f32 %v2900, %v2904
      %vm2906 = vweird.f32 %v2830
      %vm2907 = vweird.f32 %v2900
      %vm2908 = vmor %vm2906, %vm2907
      %v2909 = vsel %vm2908, %v2900, %v2905
      %v2910 = vrsqrt.pop %v2831
      %v2911 = vmul.f32 %v2910, %v2831
      %v2912 = vmul.f32 %v2911, %v2910
      %v2913 = vmul.f32 0.5, %v2912
      %v2914 = vsub.f32 1.5, %v2913
      %v2915 = vmul.f32 %v2910, %v2914
      %vm2916 = vweird.f32 %v2831
      %vm2917 = vweird.f32 %v2910
      %vm2918 = vmor %vm2916, %vm2917
      %v2919 = vsel %vm2918, %v2910, %v2915
      %v2920 = vrsqrt.pop %v2832
      %v2921 = vmul.f32 %v2920, %v2832
      %v2922 = vmul.f32 %v2921, %v2920
      %v2923 = vmul.f32 0.5, %v2922
      %v2924 = vsub.f32 1.5, %v2923
      %v2925 = vmul.f32 %v2920, %v2924
      %vm2926 = vweird.f32 %v2832
      %vm2927 = vweird.f32 %v2920
      %vm2928 = vmor %vm2926, %vm2927
      %v2929 = vsel %vm2928, %v2920, %v2925
      %v2930 = vrsqrt.pop %v2833
      %v2931 = vmul.f32 %v2930, %v2833
      %v2932 = vmul.f32 %v2931, %v2930
      %v2933 = vmul.f32 0.5, %v2932
      %v2934 = vsub.f32 1.5, %v2933
      %v2935 = vmul.f32 %v2930, %v2934
      %vm2936 = vweird.f32 %v2833
      %vm2937 = vweird.f32 %v2930
      %vm2938 = vmor %vm2936, %vm2937
      %v2939 = vsel %vm2938, %v2930, %v2935
      %v2940 = vrsqrt.pop %v2834
      %v2941 = vmul.f32 %v2940, %v2834
      %v2942 = vmul.f32 %v2941, %v2940
      %v2943 = vmul.f32 0.5, %v2942
      %v2944 = vsub.f32 1.5, %v2943
      %v2945 = vmul.f32 %v2940, %v2944
      %vm2946 = vweird.f32 %v2834
      %vm2947 = vweird.f32 %v2940
      %vm2948 = vmor %vm2946, %vm2947
      %v2949 = vsel %vm2948, %v2940, %v2945
      %v2950 = vrsqrt.pop %v2835
      %v2951 = vmul.f32 %v2950, %v2835
      %v2952 = vmul.f32 %v2951, %v2950
      %v2953 = vmul.f32 0.5, %v2952
      %v2954 = vsub.f32 1.5, %v2953
      %v2955 = vmul.f32 %v2950, %v2954
      %vm2956 = vweird.f32 %v2835
      %vm2957 = vweird.f32 %v2950
      %vm2958 = vmor %vm2956, %vm2957
      %v2959 = vsel %vm2958, %v2950, %v2955
      %v2960 = vrsqrt.pop %v2836
      %v2961 = vmul.f32 %v2960, %v2836
      %v2962 = vmul.f32 %v2961, %v2960
      %v2963 = vmul.f32 0.5, %v2962
      %v2964 = vsub.f32 1.5, %v2963
      %v2965 = vmul.f32 %v2960, %v2964
      %vm2966 = vweird.f32 %v2836
      %vm2967 = vweird.f32 %v2960
      %vm2968 = vmor %vm2966, %vm2967
      %v2969 = vsel %vm2968, %v2960, %v2965
      %v2970 = vrsqrt.pop %v2837
      %v2971 = vmul.f32 %v2970, %v2837
      %v2972 = vmul.f32 %v2971, %v2970
      %v2973 = vmul.f32 0.5, %v2972
      %v2974 = vsub.f32 1.5, %v2973
      %v2975 = vmul.f32 %v2970, %v2974
      %vm2976 = vweird.f32 %v2837
      %vm2977 = vweird.f32 %v2970
      %vm2978 = vmor %vm2976, %vm2977
      %v2979 = vsel %vm2978, %v2970, %v2975
      %v2980 = vrsqrt.pop %v2838
      %v2981 = vmul.f32 %v2980, %v2838
      %v2982 = vmul.f32 %v2981, %v2980
      %v2983 = vmul.f32 0.5, %v2982
      %v2984 = vsub.f32 1.5, %v2983
      %v2985 = vmul.f32 %v2980, %v2984
      %vm2986 = vweird.f32 %v2838
      %vm2987 = vweird.f32 %v2980
      %vm2988 = vmor %vm2986, %vm2987
      %v2989 = vsel %vm2988, %v2980, %v2985
      %v2990 = vrsqrt.pop %v2839
      %v2991 = vmul.f32 %v2990, %v2839
      %v2992 = vmul.f32 %v2991, %v2990
      %v2993 = vmul.f32 0.5, %v2992
      %v2994 = vsub.f32 1.5, %v2993
      %v2995 = vmul.f32 %v2990, %v2994
      %vm2996 = vweird.f32 %v2839
      %vm2997 = vweird.f32 %v2990
      %vm2998 = vmor %vm2996, %vm2997
      %v2999 = vsel %vm2998, %v2990, %v2995
      %v3000 = vmul.f32 %v2728, %v2849
      %v3001 = vmul.f32 %v2729, %v2859
      %v3002 = vmul.f32 %v2730, %v2869
      %v3003 = vmul.f32 %v2731, %v2879
      %v3004 = vmul.f32 %v2732, %v2889
      %v3005 = vmul.f32 %v2733, %v2899
      %v3006 = vmul.f32 %v2734, %v2909
      %v3007 = vmul.f32 %v2735, %v2919
      %v3008 = vmul.f32 %v2736, %v2929
      %v3009 = vmul.f32 %v2737, %v2939
      %v3010 = vmul.f32 %v2738, %v2949
      %v3011 = vmul.f32 %v2739, %v2959
      %v3012 = vmul.f32 %v2740, %v2969
      %v3013 = vmul.f32 %v2741, %v2979
      %v3014 = vmul.f32 %v2742, %v2989
      %v3015 = vmul.f32 %v2743, %v2999
      %v3017 = vperm.slane %v1875, 0
      %v3019 = vmul.f32 %v3000, %v3017
      %v3020 = vmul.f32 %v3001, %v3017
      %v3021 = vmul.f32 %v3002, %v3017
      %v3022 = vmul.f32 %v3003, %v3017
      %v3023 = vmul.f32 %v3004, %v3017
      %v3024 = vmul.f32 %v3005, %v3017
      %v3025 = vmul.f32 %v3006, %v3017
      %v3026 = vmul.f32 %v3007, %v3017
      %v3027 = vmul.f32 %v3008, %v3017
      %v3028 = vmul.f32 %v3009, %v3017
      %v3029 = vmul.f32 %v3010, %v3017
      %v3030 = vmul.f32 %v3011, %v3017
      %v3031 = vmul.f32 %v3012, %v3017
      %v3032 = vmul.f32 %v3013, %v3017
      %v3033 = vmul.f32 %v3014, %v3017
      %v3034 = vmul.f32 %v3015, %v3017
      %v3036 = vperm.slane %v1877, 0
      %v3038 = vadd.f32 %v3019, %v3036
      %v3039 = vadd.f32 %v3020, %v3036
      %v3040 = vadd.f32 %v3021, %v3036
      %v3041 = vadd.f32 %v3022, %v3036
      %v3042 = vadd.f32 %v3023, %v3036
      %v3043 = vadd.f32 %v3024, %v3036
      %v3044 = vadd.f32 %v3025, %v3036
      %v3045 = vadd.f32 %v3026, %v3036
      %v3046 = vadd.f32 %v3027, %v3036
      %v3047 = vadd.f32 %v3028, %v3036
      %v3048 = vadd.f32 %v3029, %v3036
      %v3049 = vadd.f32 %v3030, %v3036
      %v3050 = vadd.f32 %v3031, %v3036
      %v3051 = vadd.f32 %v3032, %v3036
      %v3052 = vadd.f32 %v3033, %v3036
      %v3053 = vadd.f32 %v3034, %v3036
      %v3054 = vld [vmem:[%s13] sm:$0xff]
      %v3055 = vld [vmem:[%s13 + $0x8] sm:$0xff]
      %v3056 = vld [vmem:[%s13 + $0x10] sm:$0xff]
      %v3057 = vld [vmem:[%s13 + $0x18] sm:$0xff]
      %v3058 = vld [vmem:[#allocation2] sm:$0x1]
      %v3060 = vperm.slane %v3058, 0
      %v3063 = vsel %vm524, %v3038, 0
      %v3066 = vsel %vm524, %v3039, 0
      %v3069 = vsel %vm524, %v3040, 0
      %v3072 = vsel %vm524, %v3041, 0
      %v3075 = vsel %vm524, %v3042, 0
      %v3078 = vsel %vm524, %v3043, 0
      %v3081 = vsel %vm524, %v3044, 0
      %v3084 = vsel %vm524, %v3045, 0
      %v3087 = vsel %vm524, %v3046, 0
      %v3090 = vsel %vm524, %v3047, 0
      %v3093 = vsel %vm524, %v3048, 0
      %v3096 = vsel %vm524, %v3049, 0
      %v3099 = vsel %vm524, %v3050, 0
      %v3102 = vsel %vm524, %v3051, 0
      %v3105 = vsel %vm524, %v3052, 0
      %v3108 = vsel %vm524, %v3053, 0
      %3110 = vmatpush.msra.mxu0 0.0
      %3111 = vmatpush.msra.mxu0 0.0
      %3112 = vmatpush.msra.mxu0 0.0
      %3113 = vmatpush.msra.mxu0 0.0
      %3114 = vmatpush.msra.mxu0 0.0
      %3115 = vmatpush.msra.mxu0 0.0
      %3116 = vmatpush.msra.mxu0 0.0
      %3117 = vmatpush.msra.mxu0 0.0
      %3118 = vmatpush.msra.mxu0 0.0
      %3119 = vmatpush.msra.mxu0 0.0
      %3120 = vmatpush.msra.mxu0 0.0
      %3121 = vmatpush.msra.mxu0 0.0
      %3122 = vmatpush.msra.mxu0 %v3057
      %3123 = vmatpush.msra.mxu0 %v3056
      %3124 = vmatpush.msra.mxu0 %v3055
      %3125 = vmatpush.msra.mxu0 %v3054
      %3126 = vmatmul.f32.gmra.mxu0 %v3063
      %v3127 = vpop.f32.mrf.mxu0
      %v3128 = vadd.f32 %v3060, %v3127
      %3129 = vmatmul.f32.gmra.mxu0 %v3066
      %v3130 = vpop.f32.mrf.mxu0
      %v3131 = vadd.f32 %v3060, %v3130
      %3132 = vmatmul.f32.gmra.mxu0 %v3069
      %v3133 = vpop.f32.mrf.mxu0
      %v3134 = vadd.f32 %v3060, %v3133
      %3135 = vmatmul.f32.gmra.mxu0 %v3072
      %v3136 = vpop.f32.mrf.mxu0
      %v3137 = vadd.f32 %v3060, %v3136
      %3138 = vmatmul.f32.gmra.mxu0 %v3075
      %v3139 = vpop.f32.mrf.mxu0
      %v3140 = vadd.f32 %v3060, %v3139
      %3141 = vmatmul.f32.gmra.mxu0 %v3078
      %v3142 = vpop.f32.mrf.mxu0
      %v3143 = vadd.f32 %v3060, %v3142
      %3144 = vmatmul.f32.gmra.mxu0 %v3081
      %v3145 = vpop.f32.mrf.mxu0
      %v3146 = vadd.f32 %v3060, %v3145
      %3147 = vmatmul.f32.gmra.mxu0 %v3084
      %v3148 = vpop.f32.mrf.mxu0
      %v3149 = vadd.f32 %v3060, %v3148
      %3150 = vmatmul.f32.gmra.mxu0 %v3087
      %v3151 = vpop.f32.mrf.mxu0
      %v3152 = vadd.f32 %v3060, %v3151
      %3153 = vmatmul.f32.gmra.mxu0 %v3090
      %v3154 = vpop.f32.mrf.mxu0
      %v3155 = vadd.f32 %v3060, %v3154
      %3156 = vmatmul.f32.gmra.mxu0 %v3093
      %v3157 = vpop.f32.mrf.mxu0
      %v3158 = vadd.f32 %v3060, %v3157
      %3159 = vmatmul.f32.gmra.mxu0 %v3096
      %v3160 = vpop.f32.mrf.mxu0
      %v3161 = vadd.f32 %v3060, %v3160
      %3162 = vmatmul.f32.gmra.mxu0 %v3099
      %v3163 = vpop.f32.mrf.mxu0
      %v3164 = vadd.f32 %v3060, %v3163
      %3165 = vmatmul.f32.gmra.mxu0 %v3102
      %v3166 = vpop.f32.mrf.mxu0
      %v3167 = vadd.f32 %v3060, %v3166
      %3168 = vmatmul.f32.gmra.mxu0 %v3105
      %v3169 = vpop.f32.mrf.mxu0
      %v3170 = vadd.f32 %v3060, %v3169
      %3171 = vmatmul.f32.gmra.mxu0 %v3108
      %v3172 = vpop.f32.mrf.mxu0
      %v3173 = vadd.f32 %v3060, %v3172
      %3174 = vdwg.mxu0
      %vm3175 = vcmask 7168
      %3176 = vst.msk [vmem:[%s498] sm:$0xff] %vm3175, %v3128
      %3177 = vst.msk [vmem:[%s498 + $0x8] sm:$0xff] %vm3175, %v3131
      %3178 = vst.msk [vmem:[%s498 + $0x10] sm:$0xff] %vm3175, %v3134
      %3179 = vst.msk [vmem:[%s498 + $0x18] sm:$0xff] %vm3175, %v3137
      %3180 = vst.msk [vmem:[%s498 + $0x20] sm:$0xff] %vm3175, %v3140
      %3181 = vst.msk [vmem:[%s498 + $0x28] sm:$0xff] %vm3175, %v3143
      %3182 = vst.msk [vmem:[%s498 + $0x30] sm:$0xff] %vm3175, %v3146
      %3183 = vst.msk [vmem:[%s498 + $0x38] sm:$0xff] %vm3175, %v3149
      %3184 = vst.msk [vmem:[%s498 + $0x40] sm:$0xff] %vm3175, %v3152
      %3185 = vst.msk [vmem:[%s498 + $0x48] sm:$0xff] %vm3175, %v3155
      %3186 = vst.msk [vmem:[%s498 + $0x50] sm:$0xff] %vm3175, %v3158
      %3187 = vst.msk [vmem:[%s498 + $0x58] sm:$0xff] %vm3175, %v3161
      %3188 = vst.msk [vmem:[%s498 + $0x60] sm:$0xff] %vm3175, %v3164
      %3189 = vst.msk [vmem:[%s498 + $0x68] sm:$0xff] %vm3175, %v3167
      %3190 = vst.msk [vmem:[%s498 + $0x70] sm:$0xff] %vm3175, %v3170
      %3191 = vst.msk [vmem:[%s498 + $0x78] sm:$0xff] %vm3175, %v3173
      %s3192 = smul.u32 16, %s28
      %p3193 = scmp.lt.s32.totalorder %s3192, 31
      %s3194 = scalar_select %p3193, %s3192, 31
      %s3195 = smul.addr %s3194, 8
      %s3196 = scalar_lea.vmem %s15, %s3195
      // Predicated region
      $region81: #{baseline_surrogate_forward.1} parent=79 // pred_check
        %p3197 = pneg %p366
      $region82: #{baseline_surrogate_forward.1} parent=79 // pred_check_branch
        %3199 = sbr.rel (%p3197) target = $region84
      $region83: #{baseline_surrogate_forward.1} parent=79 // pred_region
        %s3200 = smul.u32 16, %s28
      $region84: #{baseline_surrogate_forward.1} parent=79 // pred_fallthru
        _
    $region80: #{baseline_surrogate_forward.1} parent=5 // pred_fallthru
      _
    %p3201 = scmp.le.s32.totalorder 2, %s23
    // Predicated region
    $region85: #{baseline_surrogate_forward.1} parent=5 // pred_check
      %p3202 = pneg %p3201
    $region86: #{baseline_surrogate_forward.1} parent=5 // pred_check_branch
      %3204 = sbr.rel (%p3202) target = $region88
    $region87: #{baseline_surrogate_forward.1} parent=5 // pred_region
      %s3205 = ssub.s32 %s23, 2
      // Predicated region
      $region89: #{baseline_surrogate_forward.1} parent=87 // pred_check
        %p3206 = pneg %p372
      $region90: #{baseline_surrogate_forward.1} parent=87 // pred_check_branch
        %3208 = sbr.rel (%p3206) target = $region92
      $region91: #{baseline_surrogate_forward.1} parent=87 // pred_region
        %s3209 = smul.u32 16, %s29
        %p3210 = scmp.lt.s32.totalorder %s3209, 31
        %s3211 = scalar_select %p3210, %s3209, 31
        %s3212 = smul.addr %s3211, 8
        %s3213 = scalar_lea.vmem %s15, %s3212
      $region92: #{baseline_surrogate_forward.1} parent=87 // pred_fallthru
        _
    $region88: #{baseline_surrogate_forward.1} parent=5 // pred_fallthru
      _
  $region6: #{baseline_surrogate_forward.1} parent=0 // loop_footer
    %s27 = sadd.s32 1, %s23
  $region7: #{baseline_surrogate_forward.1} parent=0 // loop_footer_branch
    %22 = sbr.rel target = $region3
  $region8: #{baseline_surrogate_forward.1} parent=0 // loop_exit
    _

</llo_original>
